<compile_context>
chip_gen: v7x
topology: tpu7x:2x2x1
jax: 0.10.0
libtpu: 0.0.40
codegen_flags: <defaults>
</compile_context>

<pallas_src>
import functools

import jax
import jax.numpy as jnp
from jax import lax
from jax.experimental import pallas as pl
from jax.experimental.pallas import tpu as pltpu


_VMEM_LIMIT_BYTES = 48 * 1024 * 1024   # <= v7x physical 64 MiB; raise on v5e/v6e.


# ---------------------------------------------------------------------------
# small helpers (layout plumbing only)
# ---------------------------------------------------------------------------
def _round_up(x, m):
    return (x + m - 1) // m * m


def _pick_tile_h(h, target):
    # Largest divisor of h that is <= target (keeps the matmul M = tile_h * W
    # in the 512-2048 sweet spot for typical UNet widths).
    th = max(1, min(h, target))
    while h % th:
        th -= 1
    return th


def _const_block_spec(shape, index_map):
    """Constant-index input (weights/bias/scale): single-buffered when supported."""
    try:
        return pl.BlockSpec(shape, index_map, pipeline_mode=pl.Buffered(1))
    except (TypeError, AttributeError):
        return pl.BlockSpec(shape, index_map)


def _pack_conv_weight(w_oihw, cin_p, cout_p):
    """PyTorch OIHW (Cout, Cin, 3, 3) -> (3, 3*Cin_p, Cout_p) bf16.

    Output index [ky, kx*Cin_p + ci, co] == w_oihw[co, ci, ky, kx]; this matches
    the K-packed in-kernel operand layout (dx-major, input-channel-minor).
    """
    cout, cin = w_oihw.shape[0], w_oihw.shape[1]
    w = jnp.transpose(w_oihw, (2, 3, 1, 0))                   # (ky, kx, ci, co)
    w = jnp.pad(w, ((0, 0), (0, 0), (0, cin_p - cin), (0, cout_p - cout)))
    return w.reshape(3, 3 * cin_p, cout_p).astype(jnp.bfloat16)


def _pad_channel_vec(v, n):
    return jnp.pad(v.astype(jnp.float32), (0, n - v.shape[0])).reshape(1, n)


# ---------------------------------------------------------------------------
# in-kernel conv core (shared by both layers)
# ---------------------------------------------------------------------------
def _conv3x3_core(x_tile, w_ref, b_ref, *, tile_h, width):
    """3x3 'same' conv of one (tile_h+2, width, C) bf16 row tile.

    The two halo rows are included (already zeroed where the image ends).
    dx taps are K-packed along the channel axis (K = 3*C); dy taps are cheap
    major-axis slices -> 3 MXU matmuls per step.  Returns the
    (tile_h*width, Coutp) f32 pre-activation with bias added.
    """
    c = x_tile.shape[-1]
    coutp = w_ref.shape[-1]
    zcol = jnp.zeros((tile_h + 2, 1, c), x_tile.dtype)
    left = jnp.concatenate([zcol, x_tile[:, :width - 1, :]], axis=1)   # column w-1
    right = jnp.concatenate([x_tile[:, 1:, :], zcol], axis=1)          # column w+1
    xcat = jnp.concatenate([left, x_tile, right], axis=-1)             # (th+2, W, 3C)

    acc = jnp.zeros((tile_h * width, coutp), jnp.float32)
    for dy in range(3):                                                # ky taps
        lhs = xcat[dy:dy + tile_h].reshape(tile_h * width, 3 * c)
        acc = acc + jnp.dot(lhs, w_ref[dy], preferred_element_type=jnp.float32)
    return acc + b_ref[...]                                            # + bias (f32)


# ---------------------------------------------------------------------------
# Pallas kernels
# ---------------------------------------------------------------------------
def _conv_bias_kernel(top_ref, mid_ref, bot_ref, w_ref, b_ref, y_ref, *stat_refs,
                      tile_h, width, with_stats):
    """Layer 1: 3x3 conv + bias; stores bf16 pre-activation; optional per-step
    BatchNorm partial statistics (sum / sum_sq) from the f32 accumulator."""
    j = pl.program_id(1)
    nt = pl.num_programs(1)
    top = top_ref[0]                                   # (W, C) bf16 halo row
    bot = bot_ref[0]
    top = jnp.where(j == 0, jnp.zeros_like(top), top)          # image-top pad
    bot = jnp.where(j == nt - 1, jnp.zeros_like(bot), bot)     # image-bottom pad
    x_tile = jnp.concatenate([top[None], mid_ref[...], bot[None]], axis=0)

    acc = _conv3x3_core(x_tile, w_ref, b_ref, tile_h=tile_h, width=width)
    y_ref[...] = acc.reshape(tile_h, width, -1).astype(y_ref.dtype)

    if with_stats:
        (stats_ref,) = stat_refs                       # (2, Coutp) unique per step
        s = jnp.sum(acc, axis=0, keepdims=True)
        ss = jnp.sum(acc * acc, axis=0, keepdims=True)
        stats_ref[...] = jnp.concatenate([s, ss], axis=0)


def _affine_relu_conv_relu_kernel(top_ref, mid_ref, bot_ref, scale_ref, shift_ref,
                                  w_ref, b_ref, o_ref, *, tile_h, width):
    """Layer 2: relu(y1*scale + shift) (folded BN / identity) -> 3x3 conv
    -> + bias -> ReLU.  The affine+ReLU is applied only to real y1 rows;
    image-border padding is produced as explicit zeros."""
    scale = scale_ref[...]                             # (1, Coutp) f32
    shift = shift_ref[...]

    def act(v):
        return jnp.maximum(v.astype(jnp.float32) * scale + shift,
                           0.0).astype(jnp.bfloat16)

    j = pl.program_id(1)
    nt = pl.num_programs(1)
    top = act(top_ref[0])
    bot = act(bot_ref[0])
    top = jnp.where(j == 0, jnp.zeros_like(top), top)
    bot = jnp.where(j == nt - 1, jnp.zeros_like(bot), bot)
    x_tile = jnp.concatenate([top[None], act(mid_ref[...]), bot[None]], axis=0)

    acc = _conv3x3_core(x_tile, w_ref, b_ref, tile_h=tile_h, width=width)
    acc = jnp.maximum(acc, 0.0)
    o_ref[...] = acc.reshape(tile_h, width, -1).astype(o_ref.dtype)


# ---------------------------------------------------------------------------
# pallas_call wrappers
# ---------------------------------------------------------------------------
def _conv1_pallas(x, w_packed, b_packed, *, tile_h, with_stats):
    n, h, wd, cp = x.shape
    t = h // tile_h
    coutp = w_packed.shape[-1]

    kern = functools.partial(_conv_bias_kernel, tile_h=tile_h, width=wd,
                             with_stats=with_stats)

    out_shape = [jax.ShapeDtypeStruct((n, h, wd, coutp), jnp.bfloat16)]
    out_specs = [pl.BlockSpec((None, tile_h, wd, coutp), lambda i, j: (i, j, 0, 0))]
    if with_stats:
        out_shape.append(jax.ShapeDtypeStruct((n, t, 2, coutp), jnp.float32))
        out_specs.append(pl.BlockSpec((None, None, 2, coutp),
                                      lambda i, j: (i, j, 0, 0)))

    in_specs = [
        # top halo row (clamped; zeroed in-kernel when j == 0)
        pl.BlockSpec((None, 1, wd, cp),
                     lambda i, j: (i, jnp.maximum(j * tile_h - 1, 0), 0, 0)),
        # center row tile
        pl.BlockSpec((None, tile_h, wd, cp), lambda i, j: (i, j, 0, 0)),
        # bottom halo row (clamped; zeroed in-kernel when j == T-1)
        pl.BlockSpec((None, 1, wd, cp),
                     lambda i, j: (i, jnp.minimum((j + 1) * tile_h, h - 1), 0, 0)),
        _const_block_spec(w_packed.shape, lambda i, j: (0, 0, 0)),
        _const_block_spec((1, coutp), lambda i, j: (0, 0)),
    ]

    return pl.pallas_call(
        kern,
        out_shape=out_shape,
        grid_spec=pltpu.PrefetchScalarGridSpec(
            num_scalar_prefetch=0, grid=(n, t),
            in_specs=in_specs, out_specs=out_specs),
        compiler_params=pltpu.CompilerParams(
            dimension_semantics=("parallel", "parallel"),
            vmem_limit_bytes=_VMEM_LIMIT_BYTES),
    )(x, x, x, w_packed, b_packed)


def _conv2_pallas(y1, scale, shift, w_packed, b_packed, *, tile_h):
    n, h, wd, cp = y1.shape
    t = h // tile_h
    coutp = w_packed.shape[-1]

    kern = functools.partial(_affine_relu_conv_relu_kernel, tile_h=tile_h, width=wd)

    in_specs = [
        pl.BlockSpec((None, 1, wd, cp),
                     lambda i, j: (i, jnp.maximum(j * tile_h - 1, 0), 0, 0)),
        pl.BlockSpec((None, tile_h, wd, cp), lambda i, j: (i, j, 0, 0)),
        pl.BlockSpec((None, 1, wd, cp),
                     lambda i, j: (i, jnp.minimum((j + 1) * tile_h, h - 1), 0, 0)),
        _const_block_spec((1, coutp), lambda i, j: (0, 0)),   # scale
        _const_block_spec((1, coutp), lambda i, j: (0, 0)),   # shift
        _const_block_spec(w_packed.shape, lambda i, j: (0, 0, 0)),
        _const_block_spec((1, coutp), lambda i, j: (0, 0)),   # bias
    ]

    return pl.pallas_call(
        kern,
        out_shape=jax.ShapeDtypeStruct((n, h, wd, coutp), jnp.float32),
        grid_spec=pltpu.PrefetchScalarGridSpec(
            num_scalar_prefetch=0, grid=(n, t),
            in_specs=in_specs,
            out_specs=pl.BlockSpec((None, tile_h, wd, coutp),
                                   lambda i, j: (i, j, 0, 0))),
        compiler_params=pltpu.CompilerParams(
            dimension_semantics=("parallel", "parallel"),
            vmem_limit_bytes=_VMEM_LIMIT_BYTES),
    )(y1, y1, y1, scale, shift, w_packed, b_packed)


# ---------------------------------------------------------------------------
# parameters & forward pass
# ---------------------------------------------------------------------------
def init_conv_block_params(key, in_channels, out_channels):
    k1, k2, k3, k4 = jax.random.split(key, 4)
    # PyTorch Conv2d weight layout: (Cout, Cin, kh, kw)
    w1 = jax.random.normal(k1, (out_channels, in_channels, 3, 3), jnp.float32) * 0.1
    b1 = jax.random.normal(k2, (out_channels,), jnp.float32) * 0.1
    w2 = jax.random.normal(k3, (out_channels, out_channels, 3, 3), jnp.float32) * 0.1
    b2 = jax.random.normal(k4, (out_channels,), jnp.float32) * 0.1
    gamma = jnp.ones((out_channels,), jnp.float32)   # BatchNorm2d weight init
    beta = jnp.zeros((out_channels,), jnp.float32)   # BatchNorm2d bias init
    return dict(w1=w1, b1=b1, w2=w2, b2=b2, gamma=gamma, beta=beta)


def conv_block_forward(params, x_nchw, *, batch_norm, eps=1e-5, tile_h=8):
    n, cin, h, w = x_nchw.shape
    cout = params["w1"].shape[0]
    cinp = _round_up(cin, 8)       # layer-1 input channel pad (MXU K alignment)
    coutp = _round_up(cout, 128)   # lane-dense output channels / MXU columns
    th = _pick_tile_h(h, tile_h)

    w1p = _pack_conv_weight(params["w1"], cinp, coutp)      # (3, 3*cinp, coutp) bf16
    w2p = _pack_conv_weight(params["w2"], coutp, coutp)     # (3, 3*coutp, coutp) bf16
    b1p = _pad_channel_vec(params["b1"], coutp)             # (1, coutp) f32
    b2p = _pad_channel_vec(params["b2"], coutp)

    # single fused layout op for the (small, Cin-channel) input: NCHW -> NHWC,
    # channel pad, bf16 cast.  No spatial padding / halo materialization.
    x = jnp.transpose(x_nchw, (0, 2, 3, 1))
    x = jnp.pad(x, ((0, 0), (0, 0), (0, 0), (0, cinp - cin))).astype(jnp.bfloat16)

    # ---- layer 1: conv + bias (bf16 pre-activation) + per-step BN partials --
    outs = _conv1_pallas(x, w1p, b1p, tile_h=th, with_stats=batch_norm)
    y1 = outs[0]                                            # (N,H,W,coutp) bf16

    # ---- folded BatchNorm (training-mode batch stats) or identity -----------
    if batch_norm:
        s = jnp.sum(outs[1], axis=(0, 1))                   # (2, coutp) f32
        cnt = jnp.float32(n * h * w)
        mean = s[0, :cout] / cnt
        var = jnp.maximum(s[1, :cout] / cnt - mean * mean, 0.0)   # biased var
        sc = params["gamma"] / jnp.sqrt(var + eps)
        sh = params["beta"] - mean * sc
        scale = jnp.concatenate([sc, jnp.ones((coutp - cout,), jnp.float32)])
        shift = jnp.concatenate([sh, jnp.zeros((coutp - cout,), jnp.float32)])
    else:
        scale = jnp.ones((coutp,), jnp.float32)
        shift = jnp.zeros((coutp,), jnp.float32)

    # ---- layer 2: fused (affine + ReLU) -> conv -> bias -> ReLU -------------
    y2 = _conv2_pallas(y1, scale.reshape(1, coutp), shift.reshape(1, coutp),
                       w2p, b2p, tile_h=th)

    # spec output layout is NCHW; if the downstream consumer is NHWC this
    # slice+transpose round trip can be skipped entirely.
    return jnp.transpose(y2[:, :, :, :cout], (0, 3, 1, 2))


# ---------------------------------------------------------------------------
# pure-JAX reference (bf16 MXU operands, f32 accumulation, bf16 intermediate)
# ---------------------------------------------------------------------------
def conv_block_ref(params, x_nchw, *, batch_norm, eps=1e-5):
    def conv(x, wgt, b):
        y = lax.conv_general_dilated(
            x.astype(jnp.bfloat16), wgt.astype(jnp.bfloat16),
            window_strides=(1, 1), padding=((1, 1), (1, 1)),
            dimension_numbers=("NCHW", "OIHW", "NCHW"),
            preferred_element_type=jnp.float32)
        return y + b[None, :, None, None]

    y = conv(x_nchw, params["w1"], params["b1"])
    y_q = y.astype(jnp.bfloat16).astype(jnp.float32)   # mirrors bf16 y1 storage
    if batch_norm:
        mean = jnp.mean(y, axis=(0, 2, 3), keepdims=True)
        var = jnp.mean(y * y, axis=(0, 2, 3), keepdims=True) - mean * mean
        y_q = (y_q - mean) / jnp.sqrt(var + eps)
        y_q = (y_q * params["gamma"][None, :, None, None]
               + params["beta"][None, :, None, None])
    y_q = jnp.maximum(y_q, 0.0)
    y2 = conv(y_q, params["w2"], params["b2"])
    return jnp.maximum(y2, 0.0)


# ---------------------------------------------------------------------------
if __name__ == "__main__":
    key = jax.random.PRNGKey(0)
    kx, kp = jax.random.split(key)

    N, Cin, H, W = 2, 4, 16, 16
    Cout = 8

    x = jax.random.normal(kx, (N, Cin, H, W), jnp.float32)
    params = init_conv_block_params(kp, Cin, Cout)

    for batch_norm in (True, False):
        fwd = jax.jit(functools.partial(conv_block_forward, batch_norm=batch_norm))
        out = jax.block_until_ready(fwd(params, x))
        ref = conv_block_ref(params, x, batch_norm=batch_norm)
        assert out.shape == (N, Cout, H, W), out.shape
        max_err = float(jnp.max(jnp.abs(out - ref)))
        assert jnp.allclose(out, ref, rtol=1e-2, atol=1e-2), (batch_norm, max_err)

    print("KERNEL_OK")
</pallas_src>

<mosaic_0001>
module attributes {stable_mosaic.version = 11 : i64} {
  func.func @_conv_bias_kernel(%arg0: i32, %arg1: i32, %arg2: memref<1x1x16x8xbf16, #tpu.memory_space<vmem>>, %arg3: memref<1x8x16x8xbf16, #tpu.memory_space<vmem>>, %arg4: memref<1x1x16x8xbf16, #tpu.memory_space<vmem>>, %arg5: memref<3x24x128xbf16, #tpu.memory_space<vmem>>, %arg6: memref<1x128xf32, #tpu.memory_space<vmem>>, %arg7: memref<1x8x16x128xbf16, #tpu.memory_space<vmem>>, %arg8: memref<1x1x2x128xf32, #tpu.memory_space<vmem>>) attributes {dimension_semantics = [#tpu.dimension_semantics<parallel>, #tpu.dimension_semantics<parallel>], iteration_bounds = array<i64: 2, 2>, scalar_prefetch = 0 : i64, scratch_operands = 0 : i64, tpu.core_type = #tpu.core_type<tc>, window_params = [{transform_indices = @transform_0, window_bounds = array<i64: 1, 1, 16, 8>}, {transform_indices = @transform_1, window_bounds = array<i64: 1, 8, 16, 8>}, {transform_indices = @transform_2, window_bounds = array<i64: 1, 1, 16, 8>}, {pipeline_mode = #tpu.pipeline_mode<synchronous>, transform_indices = @transform_3, window_bounds = array<i64: 3, 24, 128>}, {pipeline_mode = #tpu.pipeline_mode<synchronous>, transform_indices = @transform_4, window_bounds = array<i64: 1, 128>}, {transform_indices = @transform_5, window_bounds = array<i64: 1, 8, 16, 128>}, {transform_indices = @transform_6, window_bounds = array<i64: 1, 1, 2, 128>}]} {
    %c0 = arith.constant 0 : index
    %c0_0 = arith.constant 0 : index
    %c0_1 = arith.constant 0 : index
    %c0_2 = arith.constant 0 : index
    %0 = vector.load %arg2[%c0, %c0_0, %c0_1, %c0_2] : memref<1x1x16x8xbf16, #tpu.memory_space<vmem>>, vector<1x1x16x8xbf16>
    %1 = vector.shape_cast %0 : vector<1x1x16x8xbf16> to vector<16x8xbf16>
    %c0_3 = arith.constant 0 : index
    %c0_4 = arith.constant 0 : index
    %c0_5 = arith.constant 0 : index
    %c0_6 = arith.constant 0 : index
    %2 = vector.load %arg4[%c0_3, %c0_4, %c0_5, %c0_6] : memref<1x1x16x8xbf16, #tpu.memory_space<vmem>>, vector<1x1x16x8xbf16>
    %3 = vector.shape_cast %2 : vector<1x1x16x8xbf16> to vector<16x8xbf16>
    %c0_i32 = arith.constant 0 : i32
    %4 = arith.cmpi eq, %arg1, %c0_i32 : i32
    %cst = arith.constant 0.000000e+00 : bf16
    %5 = vector.broadcast %cst : bf16 to vector<16x8xbf16>
    %6 = arith.select %4, %5, %1 : vector<16x8xbf16>
    %c1_i32 = arith.constant 1 : i32
    %7 = arith.cmpi eq, %arg1, %c1_i32 : i32
    %cst_7 = arith.constant 0.000000e+00 : bf16
    %8 = vector.broadcast %cst_7 : bf16 to vector<16x8xbf16>
    %9 = arith.select %7, %8, %3 : vector<16x8xbf16>
    %10 = vector.shape_cast %6 : vector<16x8xbf16> to vector<1x16x8xbf16>
    %c0_8 = arith.constant 0 : index
    %c0_9 = arith.constant 0 : index
    %c0_10 = arith.constant 0 : index
    %c0_11 = arith.constant 0 : index
    %11 = vector.load %arg3[%c0_8, %c0_9, %c0_10, %c0_11] : memref<1x8x16x8xbf16, #tpu.memory_space<vmem>>, vector<1x8x16x8xbf16>
    %12 = vector.shape_cast %11 : vector<1x8x16x8xbf16> to vector<8x16x8xbf16>
    %13 = vector.shape_cast %9 : vector<16x8xbf16> to vector<1x16x8xbf16>
    %14 = tpu.concatenate %10, %12, %13 in 0 : vector<1x16x8xbf16>, vector<8x16x8xbf16>, vector<1x16x8xbf16> -> vector<10x16x8xbf16>
    %cst_12 = arith.constant 0.000000e+00 : bf16
    %15 = vector.broadcast %cst_12 : bf16 to vector<10x1x8xbf16>
    %16 = vector.extract_strided_slice %14 {offsets = [0, 0, 0], sizes = [10, 15, 8], strides = [1, 1, 1]} : vector<10x16x8xbf16> to vector<10x15x8xbf16>
    %17 = tpu.concatenate %15, %16 in 1 : vector<10x1x8xbf16>, vector<10x15x8xbf16> -> vector<10x16x8xbf16>
    %18 = vector.extract_strided_slice %14 {offsets = [0, 1, 0], sizes = [10, 15, 8], strides = [1, 1, 1]} : vector<10x16x8xbf16> to vector<10x15x8xbf16>
    %19 = tpu.concatenate %18, %15 in 1 : vector<10x15x8xbf16>, vector<10x1x8xbf16> -> vector<10x16x8xbf16>
    %20 = tpu.concatenate %17, %14, %19 in 2 : vector<10x16x8xbf16>, vector<10x16x8xbf16>, vector<10x16x8xbf16> -> vector<10x16x24xbf16>
    %cst_13 = arith.constant 0.000000e+00 : f32
    %21 = vector.broadcast %cst_13 : f32 to vector<128x128xf32>
    %22 = vector.extract_strided_slice %20 {offsets = [0, 0, 0], sizes = [8, 16, 24], strides = [1, 1, 1]} : vector<10x16x24xbf16> to vector<8x16x24xbf16>
    %23 = vector.shape_cast %22 : vector<8x16x24xbf16> to vector<128x24xbf16>
    %c0_14 = arith.constant 0 : index
    %c0_15 = arith.constant 0 : index
    %c0_16 = arith.constant 0 : index
    %24 = vector.load %arg5[%c0_14, %c0_15, %c0_16] : memref<3x24x128xbf16, #tpu.memory_space<vmem>>, vector<1x24x128xbf16>
    %25 = vector.shape_cast %24 : vector<1x24x128xbf16> to vector<24x128xbf16>
    %cst_17 = arith.constant dense<0.000000e+00> : vector<128x128xf32>
    %26 = tpu.matmul %23, %25, %cst_17 {dimension_numbers = #tpu.dot_dimension_numbers<[1], [0], [0], [1], [0, 0, 1, 1], [], []>} : vector<128x24xbf16>, vector<24x128xbf16>, vector<128x128xf32> -> vector<128x128xf32>
    %27 = arith.addf %21, %26 : vector<128x128xf32>
    %28 = vector.extract_strided_slice %20 {offsets = [1, 0, 0], sizes = [8, 16, 24], strides = [1, 1, 1]} : vector<10x16x24xbf16> to vector<8x16x24xbf16>
    %29 = vector.shape_cast %28 : vector<8x16x24xbf16> to vector<128x24xbf16>
    %c1 = arith.constant 1 : index
    %c0_18 = arith.constant 0 : index
    %c0_19 = arith.constant 0 : index
    %30 = vector.load %arg5[%c1, %c0_18, %c0_19] : memref<3x24x128xbf16, #tpu.memory_space<vmem>>, vector<1x24x128xbf16>
    %31 = vector.shape_cast %30 : vector<1x24x128xbf16> to vector<24x128xbf16>
    %cst_20 = arith.constant dense<0.000000e+00> : vector<128x128xf32>
    %32 = tpu.matmul %29, %31, %cst_20 {dimension_numbers = #tpu.dot_dimension_numbers<[1], [0], [0], [1], [0, 0, 1, 1], [], []>} : vector<128x24xbf16>, vector<24x128xbf16>, vector<128x128xf32> -> vector<128x128xf32>
    %33 = arith.addf %27, %32 : vector<128x128xf32>
    %34 = vector.extract_strided_slice %20 {offsets = [2, 0, 0], sizes = [8, 16, 24], strides = [1, 1, 1]} : vector<10x16x24xbf16> to vector<8x16x24xbf16>
    %35 = vector.shape_cast %34 : vector<8x16x24xbf16> to vector<128x24xbf16>
    %c2 = arith.constant 2 : index
    %c0_21 = arith.constant 0 : index
    %c0_22 = arith.constant 0 : index
    %36 = vector.load %arg5[%c2, %c0_21, %c0_22] : memref<3x24x128xbf16, #tpu.memory_space<vmem>>, vector<1x24x128xbf16>
    %37 = vector.shape_cast %36 : vector<1x24x128xbf16> to vector<24x128xbf16>
    %cst_23 = arith.constant dense<0.000000e+00> : vector<128x128xf32>
    %38 = tpu.matmul %35, %37, %cst_23 {dimension_numbers = #tpu.dot_dimension_numbers<[1], [0], [0], [1], [0, 0, 1, 1], [], []>} : vector<128x24xbf16>, vector<24x128xbf16>, vector<128x128xf32> -> vector<128x128xf32>
    %39 = arith.addf %33, %38 : vector<128x128xf32>
    %c0_24 = arith.constant 0 : index
    %c0_25 = arith.constant 0 : index
    %40 = vector.load %arg6[%c0_24, %c0_25] : memref<1x128xf32, #tpu.memory_space<vmem>>, vector<1x128xf32>
    %41 = vector.broadcast %40 : vector<1x128xf32> to vector<128x128xf32>
    %42 = arith.addf %39, %41 : vector<128x128xf32>
    %43 = vector.shape_cast %42 : vector<128x128xf32> to vector<8x16x128xf32>
    %44 = arith.truncf %43 : vector<8x16x128xf32> to vector<8x16x128xbf16>
    %c0_26 = arith.constant 0 : index
    %c0_27 = arith.constant 0 : index
    %c0_28 = arith.constant 0 : index
    %c0_29 = arith.constant 0 : index
    %45 = vector.load %arg7[%c0_26, %c0_27, %c0_28, %c0_29] : memref<1x8x16x128xbf16, #tpu.memory_space<vmem>>, vector<1x8x16x128xbf16>
    %46 = vector.shape_cast %45 : vector<1x8x16x128xbf16> to vector<8x16x128xbf16>
    %47 = vector.shape_cast %44 : vector<8x16x128xbf16> to vector<1x8x16x128xbf16>
    tpu.vector_store %arg7[%c0_26, %c0_27, %c0_28, %c0_29], %47 {strides = array<i32>} : memref<1x8x16x128xbf16, #tpu.memory_space<vmem>>, vector<1x8x16x128xbf16>,
    %cst_30 = arith.constant dense<0.000000e+00> : vector<128xf32>
    %48 = vector.multi_reduction <add>, %42, %cst_30 [0] : vector<128x128xf32> to vector<128xf32>
    %49 = vector.shape_cast %48 : vector<128xf32> to vector<1x128xf32>
    %50 = arith.mulf %42, %42 : vector<128x128xf32>
    %cst_31 = arith.constant dense<0.000000e+00> : vector<128xf32>
    %51 = vector.multi_reduction <add>, %50, %cst_31 [0] : vector<128x128xf32> to vector<128xf32>
    %52 = vector.shape_cast %51 : vector<128xf32> to vector<1x128xf32>
    %53 = tpu.concatenate %49, %52 in 0 : vector<1x128xf32>, vector<1x128xf32> -> vector<2x128xf32>
    %c0_32 = arith.constant 0 : index
    %c0_33 = arith.constant 0 : index
    %c0_34 = arith.constant 0 : index
    %c0_35 = arith.constant 0 : index
    %54 = vector.load %arg8[%c0_32, %c0_33, %c0_34, %c0_35] : memref<1x1x2x128xf32, #tpu.memory_space<vmem>>, vector<1x1x2x128xf32>
    %55 = vector.shape_cast %54 : vector<1x1x2x128xf32> to vector<2x128xf32>
    %56 = vector.shape_cast %53 : vector<2x128xf32> to vector<1x1x2x128xf32>
    tpu.vector_store %arg8[%c0_32, %c0_33, %c0_34, %c0_35], %56 {strides = array<i32>} : memref<1x1x2x128xf32, #tpu.memory_space<vmem>>, vector<1x1x2x128xf32>,
    return
  }
  func.func @transform_0(%arg0: i32, %arg1: i32) -> (i32, i32, i32, i32) {
    %c8_i32 = arith.constant 8 : i32
    %0 = arith.muli %arg1, %c8_i32 : i32
    %c1_i32 = arith.constant 1 : i32
    %1 = arith.subi %0, %c1_i32 : i32
    %c0_i32 = arith.constant 0 : i32
    %2 = arith.maxsi %1, %c0_i32 : i32
    %c0_i32_0 = arith.constant 0 : i32
    %c0_i32_1 = arith.constant 0 : i32
    %c0_i32_2 = arith.constant 0 : i32
    return %arg0, %2, %c0_i32_0, %c0_i32_1 : i32, i32, i32, i32
  }
  func.func @transform_1(%arg0: i32, %arg1: i32) -> (i32, i32, i32, i32) {
    %c0_i32 = arith.constant 0 : i32
    %c0_i32_0 = arith.constant 0 : i32
    %c0_i32_1 = arith.constant 0 : i32
    return %arg0, %arg1, %c0_i32, %c0_i32_0 : i32, i32, i32, i32
  }
  func.func @transform_2(%arg0: i32, %arg1: i32) -> (i32, i32, i32, i32) {
    %c1_i32 = arith.constant 1 : i32
    %0 = arith.addi %arg1, %c1_i32 : i32
    %c8_i32 = arith.constant 8 : i32
    %1 = arith.muli %0, %c8_i32 : i32
    %c15_i32 = arith.constant 15 : i32
    %2 = arith.minsi %1, %c15_i32 : i32
    %c0_i32 = arith.constant 0 : i32
    %c0_i32_0 = arith.constant 0 : i32
    %c0_i32_1 = arith.constant 0 : i32
    return %arg0, %2, %c0_i32, %c0_i32_0 : i32, i32, i32, i32
  }
  func.func @transform_3(%arg0: i32, %arg1: i32) -> (i32, i32, i32) {
    %c0_i32 = arith.constant 0 : i32
    %c0_i32_0 = arith.constant 0 : i32
    %c0_i32_1 = arith.constant 0 : i32
    %c0_i32_2 = arith.constant 0 : i32
    return %c0_i32, %c0_i32_0, %c0_i32_1 : i32, i32, i32
  }
  func.func @transform_4(%arg0: i32, %arg1: i32) -> (i32, i32) {
    %c0_i32 = arith.constant 0 : i32
    %c0_i32_0 = arith.constant 0 : i32
    %c0_i32_1 = arith.constant 0 : i32
    return %c0_i32, %c0_i32_0 : i32, i32
  }
  func.func @transform_5(%arg0: i32, %arg1: i32) -> (i32, i32, i32, i32) {
    %c0_i32 = arith.constant 0 : i32
    %c0_i32_0 = arith.constant 0 : i32
    %c0_i32_1 = arith.constant 0 : i32
    return %arg0, %arg1, %c0_i32, %c0_i32_0 : i32, i32, i32, i32
  }
  func.func @transform_6(%arg0: i32, %arg1: i32) -> (i32, i32, i32, i32) {
    %c0_i32 = arith.constant 0 : i32
    %c0_i32_0 = arith.constant 0 : i32
    %c0_i32_1 = arith.constant 0 : i32
    return %arg0, %arg1, %c0_i32, %c0_i32_0 : i32, i32, i32, i32
  }
}

module attributes {stable_mosaic.version = 11 : i64} {
  func.func @_affine_relu_conv_relu_kernel(%arg0: i32, %arg1: i32, %arg2: memref<1x1x16x128xbf16, #tpu.memory_space<vmem>>, %arg3: memref<1x8x16x128xbf16, #tpu.memory_space<vmem>>, %arg4: memref<1x1x16x128xbf16, #tpu.memory_space<vmem>>, %arg5: memref<1x128xf32, #tpu.memory_space<vmem>>, %arg6: memref<1x128xf32, #tpu.memory_space<vmem>>, %arg7: memref<3x384x128xbf16, #tpu.memory_space<vmem>>, %arg8: memref<1x128xf32, #tpu.memory_space<vmem>>, %arg9: memref<1x8x16x128xf32, #tpu.memory_space<vmem>>) attributes {dimension_semantics = [#tpu.dimension_semantics<parallel>, #tpu.dimension_semantics<parallel>], iteration_bounds = array<i64: 2, 2>, scalar_prefetch = 0 : i64, scratch_operands = 0 : i64, tpu.core_type = #tpu.core_type<tc>, window_params = [{transform_indices = @transform_0, window_bounds = array<i64: 1, 1, 16, 128>}, {transform_indices = @transform_1, window_bounds = array<i64: 1, 8, 16, 128>}, {transform_indices = @transform_2, window_bounds = array<i64: 1, 1, 16, 128>}, {pipeline_mode = #tpu.pipeline_mode<synchronous>, transform_indices = @transform_3, window_bounds = array<i64: 1, 128>}, {pipeline_mode = #tpu.pipeline_mode<synchronous>, transform_indices = @transform_4, window_bounds = array<i64: 1, 128>}, {pipeline_mode = #tpu.pipeline_mode<synchronous>, transform_indices = @transform_5, window_bounds = array<i64: 3, 384, 128>}, {pipeline_mode = #tpu.pipeline_mode<synchronous>, transform_indices = @transform_6, window_bounds = array<i64: 1, 128>}, {transform_indices = @transform_7, window_bounds = array<i64: 1, 8, 16, 128>}]} {
    %c0 = arith.constant 0 : index
    %c0_0 = arith.constant 0 : index
    %0 = vector.load %arg5[%c0, %c0_0] : memref<1x128xf32, #tpu.memory_space<vmem>>, vector<1x128xf32>
    %c0_1 = arith.constant 0 : index
    %c0_2 = arith.constant 0 : index
    %1 = vector.load %arg6[%c0_1, %c0_2] : memref<1x128xf32, #tpu.memory_space<vmem>>, vector<1x128xf32>
    %c0_3 = arith.constant 0 : index
    %c0_4 = arith.constant 0 : index
    %c0_5 = arith.constant 0 : index
    %c0_6 = arith.constant 0 : index
    %2 = vector.load %arg2[%c0_3, %c0_4, %c0_5, %c0_6] : memref<1x1x16x128xbf16, #tpu.memory_space<vmem>>, vector<1x1x16x128xbf16>
    %3 = vector.shape_cast %2 : vector<1x1x16x128xbf16> to vector<16x128xbf16>
    %4 = arith.extf %3 : vector<16x128xbf16> to vector<16x128xf32>
    %5 = vector.broadcast %0 : vector<1x128xf32> to vector<16x128xf32>
    %6 = arith.mulf %4, %5 : vector<16x128xf32>
    %7 = vector.broadcast %1 : vector<1x128xf32> to vector<16x128xf32>
    %8 = arith.addf %6, %7 : vector<16x128xf32>
    %cst = arith.constant 0.000000e+00 : f32
    %9 = vector.broadcast %cst : f32 to vector<16x128xf32>
    %10 = arith.maximumf %8, %9 : vector<16x128xf32>
    %11 = arith.truncf %10 : vector<16x128xf32> to vector<16x128xbf16>
    %c0_7 = arith.constant 0 : index
    %c0_8 = arith.constant 0 : index
    %c0_9 = arith.constant 0 : index
    %c0_10 = arith.constant 0 : index
    %12 = vector.load %arg4[%c0_7, %c0_8, %c0_9, %c0_10] : memref<1x1x16x128xbf16, #tpu.memory_space<vmem>>, vector<1x1x16x128xbf16>
    %13 = vector.shape_cast %12 : vector<1x1x16x128xbf16> to vector<16x128xbf16>
    %14 = arith.extf %13 : vector<16x128xbf16> to vector<16x128xf32>
    %15 = vector.broadcast %0 : vector<1x128xf32> to vector<16x128xf32>
    %16 = arith.mulf %14, %15 : vector<16x128xf32>
    %17 = vector.broadcast %1 : vector<1x128xf32> to vector<16x128xf32>
    %18 = arith.addf %16, %17 : vector<16x128xf32>
    %cst_11 = arith.constant 0.000000e+00 : f32
    %19 = vector.broadcast %cst_11 : f32 to vector<16x128xf32>
    %20 = arith.maximumf %18, %19 : vector<16x128xf32>
    %21 = arith.truncf %20 : vector<16x128xf32> to vector<16x128xbf16>
    %c0_i32 = arith.constant 0 : i32
    %22 = arith.cmpi eq, %arg1, %c0_i32 : i32
    %cst_12 = arith.constant 0.000000e+00 : bf16
    %23 = vector.broadcast %cst_12 : bf16 to vector<16x128xbf16>
    %24 = arith.select %22, %23, %11 : vector<16x128xbf16>
    %c1_i32 = arith.constant 1 : i32
    %25 = arith.cmpi eq, %arg1, %c1_i32 : i32
    %cst_13 = arith.constant 0.000000e+00 : bf16
    %26 = vector.broadcast %cst_13 : bf16 to vector<16x128xbf16>
    %27 = arith.select %25, %26, %21 : vector<16x128xbf16>
    %28 = vector.shape_cast %24 : vector<16x128xbf16> to vector<1x16x128xbf16>
    %c0_14 = arith.constant 0 : index
    %c0_15 = arith.constant 0 : index
    %c0_16 = arith.constant 0 : index
    %c0_17 = arith.constant 0 : index
    %29 = vector.load %arg3[%c0_14, %c0_15, %c0_16, %c0_17] : memref<1x8x16x128xbf16, #tpu.memory_space<vmem>>, vector<1x8x16x128xbf16>
    %30 = vector.shape_cast %29 : vector<1x8x16x128xbf16> to vector<8x16x128xbf16>
    %31 = arith.extf %30 : vector<8x16x128xbf16> to vector<8x16x128xf32>
    %32 = vector.shape_cast %0 : vector<1x128xf32> to vector<1x1x128xf32>
    %33 = vector.broadcast %32 : vector<1x1x128xf32> to vector<8x16x128xf32>
    %34 = arith.mulf %31, %33 : vector<8x16x128xf32>
    %35 = vector.shape_cast %1 : vector<1x128xf32> to vector<1x1x128xf32>
    %36 = vector.broadcast %35 : vector<1x1x128xf32> to vector<8x16x128xf32>
    %37 = arith.addf %34, %36 : vector<8x16x128xf32>
    %cst_18 = arith.constant 0.000000e+00 : f32
    %38 = vector.broadcast %cst_18 : f32 to vector<8x16x128xf32>
    %39 = arith.maximumf %37, %38 : vector<8x16x128xf32>
    %40 = arith.truncf %39 : vector<8x16x128xf32> to vector<8x16x128xbf16>
    %41 = vector.shape_cast %27 : vector<16x128xbf16> to vector<1x16x128xbf16>
    %42 = tpu.concatenate %28, %40, %41 in 0 : vector<1x16x128xbf16>, vector<8x16x128xbf16>, vector<1x16x128xbf16> -> vector<10x16x128xbf16>
    %cst_19 = arith.constant 0.000000e+00 : bf16
    %43 = vector.broadcast %cst_19 : bf16 to vector<10x1x128xbf16>
    %44 = vector.extract_strided_slice %42 {offsets = [0, 0, 0], sizes = [10, 15, 128], strides = [1, 1, 1]} : vector<10x16x128xbf16> to vector<10x15x128xbf16>
    %45 = tpu.concatenate %43, %44 in 1 : vector<10x1x128xbf16>, vector<10x15x128xbf16> -> vector<10x16x128xbf16>
    %46 = vector.extract_strided_slice %42 {offsets = [0, 1, 0], sizes = [10, 15, 128], strides = [1, 1, 1]} : vector<10x16x128xbf16> to vector<10x15x128xbf16>
    %47 = tpu.concatenate %46, %43 in 1 : vector<10x15x128xbf16>, vector<10x1x128xbf16> -> vector<10x16x128xbf16>
    %48 = tpu.concatenate %45, %42, %47 in 2 : vector<10x16x128xbf16>, vector<10x16x128xbf16>, vector<10x16x128xbf16> -> vector<10x16x384xbf16>
    %cst_20 = arith.constant 0.000000e+00 : f32
    %49 = vector.broadcast %cst_20 : f32 to vector<128x128xf32>
    %50 = vector.extract_strided_slice %48 {offsets = [0, 0, 0], sizes = [8, 16, 384], strides = [1, 1, 1]} : vector<10x16x384xbf16> to vector<8x16x384xbf16>
    %51 = vector.shape_cast %50 : vector<8x16x384xbf16> to vector<128x384xbf16>
    %c0_21 = arith.constant 0 : index
    %c0_22 = arith.constant 0 : index
    %c0_23 = arith.constant 0 : index
    %52 = vector.load %arg7[%c0_21, %c0_22, %c0_23] : memref<3x384x128xbf16, #tpu.memory_space<vmem>>, vector<1x384x128xbf16>
    %53 = vector.shape_cast %52 : vector<1x384x128xbf16> to vector<384x128xbf16>
    %cst_24 = arith.constant dense<0.000000e+00> : vector<128x128xf32>
    %54 = tpu.matmul %51, %53, %cst_24 {dimension_numbers = #tpu.dot_dimension_numbers<[1], [0], [0], [1], [0, 0, 1, 1], [], []>} : vector<128x384xbf16>, vector<384x128xbf16>, vector<128x128xf32> -> vector<128x128xf32>
    %55 = arith.addf %49, %54 : vector<128x128xf32>
    %56 = vector.extract_strided_slice %48 {offsets = [1, 0, 0], sizes = [8, 16, 384], strides = [1, 1, 1]} : vector<10x16x384xbf16> to vector<8x16x384xbf16>
    %57 = vector.shape_cast %56 : vector<8x16x384xbf16> to vector<128x384xbf16>
    %c1 = arith.constant 1 : index
    %c0_25 = arith.constant 0 : index
    %c0_26 = arith.constant 0 : index
    %58 = vector.load %arg7[%c1, %c0_25, %c0_26] : memref<3x384x128xbf16, #tpu.memory_space<vmem>>, vector<1x384x128xbf16>
    %59 = vector.shape_cast %58 : vector<1x384x128xbf16> to vector<384x128xbf16>
    %cst_27 = arith.constant dense<0.000000e+00> : vector<128x128xf32>
    %60 = tpu.matmul %57, %59, %cst_27 {dimension_numbers = #tpu.dot_dimension_numbers<[1], [0], [0], [1], [0, 0, 1, 1], [], []>} : vector<128x384xbf16>, vector<384x128xbf16>, vector<128x128xf32> -> vector<128x128xf32>
    %61 = arith.addf %55, %60 : vector<128x128xf32>
    %62 = vector.extract_strided_slice %48 {offsets = [2, 0, 0], sizes = [8, 16, 384], strides = [1, 1, 1]} : vector<10x16x384xbf16> to vector<8x16x384xbf16>
    %63 = vector.shape_cast %62 : vector<8x16x384xbf16> to vector<128x384xbf16>
    %c2 = arith.constant 2 : index
    %c0_28 = arith.constant 0 : index
    %c0_29 = arith.constant 0 : index
    %64 = vector.load %arg7[%c2, %c0_28, %c0_29] : memref<3x384x128xbf16, #tpu.memory_space<vmem>>, vector<1x384x128xbf16>
    %65 = vector.shape_cast %64 : vector<1x384x128xbf16> to vector<384x128xbf16>
    %cst_30 = arith.constant dense<0.000000e+00> : vector<128x128xf32>
    %66 = tpu.matmul %63, %65, %cst_30 {dimension_numbers = #tpu.dot_dimension_numbers<[1], [0], [0], [1], [0, 0, 1, 1], [], []>} : vector<128x384xbf16>, vector<384x128xbf16>, vector<128x128xf32> -> vector<128x128xf32>
    %67 = arith.addf %61, %66 : vector<128x128xf32>
    %c0_31 = arith.constant 0 : index
    %c0_32 = arith.constant 0 : index
    %68 = vector.load %arg8[%c0_31, %c0_32] : memref<1x128xf32, #tpu.memory_space<vmem>>, vector<1x128xf32>
    %69 = vector.broadcast %68 : vector<1x128xf32> to vector<128x128xf32>
    %70 = arith.addf %67, %69 : vector<128x128xf32>
    %cst_33 = arith.constant 0.000000e+00 : f32
    %71 = vector.broadcast %cst_33 : f32 to vector<128x128xf32>
    %72 = arith.maximumf %70, %71 : vector<128x128xf32>
    %73 = vector.shape_cast %72 : vector<128x128xf32> to vector<8x16x128xf32>
    %c0_34 = arith.constant 0 : index
    %c0_35 = arith.constant 0 : index
    %c0_36 = arith.constant 0 : index
    %c0_37 = arith.constant 0 : index
    %74 = vector.load %arg9[%c0_34, %c0_35, %c0_36, %c0_37] : memref<1x8x16x128xf32, #tpu.memory_space<vmem>>, vector<1x8x16x128xf32>
    %75 = vector.shape_cast %74 : vector<1x8x16x128xf32> to vector<8x16x128xf32>
    %76 = vector.shape_cast %73 : vector<8x16x128xf32> to vector<1x8x16x128xf32>
    tpu.vector_store %arg9[%c0_34, %c0_35, %c0_36, %c0_37], %76 {strides = array<i32>} : memref<1x8x16x128xf32, #tpu.memory_space<vmem>>, vector<1x8x16x128xf32>,
    return
  }
  func.func @transform_0(%arg0: i32, %arg1: i32) -> (i32, i32, i32, i32) {
    %c8_i32 = arith.constant 8 : i32
    %0 = arith.muli %arg1, %c8_i32 : i32
    %c1_i32 = arith.constant 1 : i32
    %1 = arith.subi %0, %c1_i32 : i32
    %c0_i32 = arith.constant 0 : i32
    %2 = arith.maxsi %1, %c0_i32 : i32
    %c0_i32_0 = arith.constant 0 : i32
    %c0_i32_1 = arith.constant 0 : i32
    %c0_i32_2 = arith.constant 0 : i32
    return %arg0, %2, %c0_i32_0, %c0_i32_1 : i32, i32, i32, i32
  }
  func.func @transform_1(%arg0: i32, %arg1: i32) -> (i32, i32, i32, i32) {
    %c0_i32 = arith.constant 0 : i32
    %c0_i32_0 = arith.constant 0 : i32
    %c0_i32_1 = arith.constant 0 : i32
    return %arg0, %arg1, %c0_i32, %c0_i32_0 : i32, i32, i32, i32
  }
  func.func @transform_2(%arg0: i32, %arg1: i32) -> (i32, i32, i32, i32) {
    %c1_i32 = arith.constant 1 : i32
    %0 = arith.addi %arg1, %c1_i32 : i32
    %c8_i32 = arith.constant 8 : i32
    %1 = arith.muli %0, %c8_i32 : i32
    %c15_i32 = arith.constant 15 : i32
    %2 = arith.minsi %1, %c15_i32 : i32
    %c0_i32 = arith.constant 0 : i32
    %c0_i32_0 = arith.constant 0 : i32
    %c0_i32_1 = arith.constant 0 : i32
    return %arg0, %2, %c0_i32, %c0_i32_0 : i32, i32, i32, i32
  }
  func.func @transform_3(%arg0: i32, %arg1: i32) -> (i32, i32) {
    %c0_i32 = arith.constant 0 : i32
    %c0_i32_0 = arith.constant 0 : i32
    %c0_i32_1 = arith.constant 0 : i32
    return %c0_i32, %c0_i32_0 : i32, i32
  }
  func.func @transform_4(%arg0: i32, %arg1: i32) -> (i32, i32) {
    %c0_i32 = arith.constant 0 : i32
    %c0_i32_0 = arith.constant 0 : i32
    %c0_i32_1 = arith.constant 0 : i32
    return %c0_i32, %c0_i32_0 : i32, i32
  }
  func.func @transform_5(%arg0: i32, %arg1: i32) -> (i32, i32, i32) {
    %c0_i32 = arith.constant 0 : i32
    %c0_i32_0 = arith.constant 0 : i32
    %c0_i32_1 = arith.constant 0 : i32
    %c0_i32_2 = arith.constant 0 : i32
    return %c0_i32, %c0_i32_0, %c0_i32_1 : i32, i32, i32
  }
  func.func @transform_6(%arg0: i32, %arg1: i32) -> (i32, i32) {
    %c0_i32 = arith.constant 0 : i32
    %c0_i32_0 = arith.constant 0 : i32
    %c0_i32_1 = arith.constant 0 : i32
    return %c0_i32, %c0_i32_0 : i32, i32
  }
  func.func @transform_7(%arg0: i32, %arg1: i32) -> (i32, i32, i32, i32) {
    %c0_i32 = arith.constant 0 : i32
    %c0_i32_0 = arith.constant 0 : i32
    %c0_i32_1 = arith.constant 0 : i32
    return %arg0, %arg1, %c0_i32, %c0_i32_0 : i32, i32, i32, i32
  }
}

</mosaic_0001>

<llo_original>
// kernel: conv_block_forward.2
$region0: #{conv_block_forward.2}
  #allocation0 [shape = 'u32[]', space=smem, size = 0x4, offset = 0x4, fixed_abs, tag = 'smem constant byte address 0x4 - core index']
  #allocation1 [shape = 'u32[144,128]{1,0:T(1,128)}', space=vmem, size = 0x12000, scoped, tag = 'internal scratch']
  %s0 = inlined_call_operand.vmem [shape: bf16[2,16,16,8], index: 0, kind: input, shape index: {}, may-alias: {0,1,2}]
  %s1 = inlined_call_operand.vmem [shape: bf16[2,16,16,8], index: 1, kind: input, shape index: {}, may-alias: {0,1,2}]
  %s2 = inlined_call_operand.vmem [shape: bf16[2,16,16,8], index: 2, kind: input, shape index: {}, may-alias: {0,1,2}]
  %s3 = inlined_call_operand.vmem [shape: bf16[3,24,128], index: 3, kind: input, shape index: {}]
  %s4 = inlined_call_operand.vmem [shape: f32[1,128], index: 4, kind: input, shape index: {}]
  %s5 = inlined_call_operand.vmem [shape: bf16[2,16,16,128], index: 5, kind: output, shape index: {0}]
  %s6 = inlined_call_operand.vmem [shape: f32[2,2,2,128], index: 6, kind: output, shape index: {1}]
  %7 = xla_tuple %s5, %s6
  %s8 = sld [smem:[#allocation0]]
  $region61: #{conv_block_forward.2} parent=0
    _
  %s10 = ssub.s32 1, %s8
  %s11 = scalar_select 0, %s10, %s8
  loop: start=0, step=1, limit=6
  $region2: #{conv_block_forward.2} parent=0 // loop_pre_header
    _
  $region3: #{conv_block_forward.2} parent=0 // loop_header
    %s13 = sphi 0, %s17
    %p14 = scmp.ge.s32.totalorder %s13, 6
    %s20 = sphi 0, %s32
    %s21 = sphi 0, %s28
    %s22 = sphi 0, %s20
    %s23 = sphi 0, %s21
    %s24 = sphi 0, %s22
    %s25 = sphi 0, %s23
    %s45 = sphi 0, %s47
    %s48 = sphi 0, %s45
    %s49 = sphi 0, %s48
    %s65 = sphi 0, %s49
    %s73 = sphi 0, %s75
    %s76 = sphi 0, %s73
    %s77 = sphi 0, %s76
    %s93 = sphi 0, %s77
    %s109 = sphi 0, %s111
    %s112 = sphi 0, %s109
    %s113 = sphi 0, %s112
    %s129 = sphi 0, %s113
    %s133 = sphi 0, %s133
    %s135 = sphi 0, %s133
    %s136 = sphi 0, %s135
    %s150 = sphi 0, %s136
    %s154 = sphi 0, %s154
    %s156 = sphi 0, %s154
    %s157 = sphi 0, %s156
    %s171 = sphi 0, %s157
    %s179 = sphi 0, %s181
    %s182 = sphi 0, %s179
    %s183 = sphi 0, %s182
    %s199 = sphi 0, %s183
    %s207 = sphi 0, %s209
    %s210 = sphi 0, %s207
    %s211 = sphi 0, %s210
    %s227 = sphi 0, %s211
  $region4: #{conv_block_forward.2} parent=0 // loop_header_branch
    %16 = sbr.rel (%p14) target = $region8
  $region5: #{conv_block_forward.2} parent=0 // loop_body
    %s18 = ssub.s32 %s13, 1
    %s19 = ssub.s32 %s13, 2
    %s26 = sadd.s32 1, %s21
    %p27 = scmp.ge.s32.totalorder %s26, 2
    %s28 = scalar_select %p27, 0, %s26
    %s29 = sadd.s32 1, %s20
    %s30 = scalar_select %p27, %s29, %s20
    %p31 = scmp.ge.s32.totalorder %s30, 2
    %s32 = scalar_select %p31, 0, %s30
    %s33 = smul.u32 %s21, 8
    %s34 = ssub.s32 %s33, 1
    %p35 = scmp.gt.s32.totalorder %s34, 0
    %s36 = scalar_select %p35, %s34, 0
    %s37 = smul.u32 %s28, 8
    %s38 = ssub.s32 %s37, 1
    %p39 = scmp.gt.s32.totalorder %s38, 0
    %s40 = scalar_select %p39, %s38, 0
    %s41 = ssub.s32 %s20, %s32
    %s42 = ssub.s32 %s36, %s40
    %s43 = sor.u32 %s41, %s42
    %p44 = scmp.eq.s32.totalorder %s43, 0
    %s46 = sadd.s32 %s45, 1
    %s47 = scalar_select %p44, %s45, %s46
    %p50 = pneg %p44
    %p51 = scmp.eq.s32.totalorder %s13, 3
    %p52 = por %p50, %p51
    %p53 = scmp.ne.s32.totalorder %s45, %s48
    %p54 = scmp.eq.s32.totalorder %s13, 0
    %p55 = por %p53, %p54
    %p56 = scmp.ne.s32.totalorder %s45, %s48
    %p57 = scmp.eq.s32.totalorder %s18, 3
    %p58 = por %p56, %p57
    %p59 = scmp.ne.s32.totalorder %s48, %s49
    %p60 = scmp.eq.s32.totalorder %s18, 0
    %p61 = por %p59, %p60
    %p62 = scmp.ne.s32.totalorder %s48, %s49
    %p63 = scmp.eq.s32.totalorder %s19, 3
    %p64 = por %p62, %p63
    %p66 = scmp.ne.s32.totalorder %s49, %s65
    %p67 = scmp.eq.s32.totalorder %s19, 0
    %p68 = por %p66, %p67
    %s69 = ssub.s32 %s20, %s32
    %s70 = ssub.s32 %s21, %s28
    %s71 = sor.u32 %s69, %s70
    %p72 = scmp.eq.s32.totalorder %s71, 0
    %s74 = sadd.s32 %s73, 1
    %s75 = scalar_select %p72, %s73, %s74
    %p78 = pneg %p72
    %p79 = scmp.eq.s32.totalorder %s13, 3
    %p80 = por %p78, %p79
    %p81 = scmp.ne.s32.totalorder %s73, %s76
    %p82 = scmp.eq.s32.totalorder %s13, 0
    %p83 = por %p81, %p82
    %p84 = scmp.ne.s32.totalorder %s73, %s76
    %p85 = scmp.eq.s32.totalorder %s18, 3
    %p86 = por %p84, %p85
    %p87 = scmp.ne.s32.totalorder %s76, %s77
    %p88 = scmp.eq.s32.totalorder %s18, 0
    %p89 = por %p87, %p88
    %p90 = scmp.ne.s32.totalorder %s76, %s77
    %p91 = scmp.eq.s32.totalorder %s19, 3
    %p92 = por %p90, %p91
    %p94 = scmp.ne.s32.totalorder %s77, %s93
    %p95 = scmp.eq.s32.totalorder %s19, 0
    %p96 = por %p94, %p95
    %s97 = sadd.s32 %s21, 1
    %s98 = smul.u32 %s97, 8
    %p99 = scmp.lt.s32.totalorder %s98, 15
    %s100 = scalar_select %p99, %s98, 15
    %s101 = sadd.s32 %s28, 1
    %s102 = smul.u32 %s101, 8
    %p103 = scmp.lt.s32.totalorder %s102, 15
    %s104 = scalar_select %p103, %s102, 15
    %s105 = ssub.s32 %s20, %s32
    %s106 = ssub.s32 %s100, %s104
    %s107 = sor.u32 %s105, %s106
    %p108 = scmp.eq.s32.totalorder %s107, 0
    %s110 = sadd.s32 %s109, 1
    %s111 = scalar_select %p108, %s109, %s110
    %p114 = pneg %p108
    %p115 = scmp.eq.s32.totalorder %s13, 3
    %p116 = por %p114, %p115
    %p117 = scmp.ne.s32.totalorder %s109, %s112
    %p118 = scmp.eq.s32.totalorder %s13, 0
    %p119 = por %p117, %p118
    %p120 = scmp.ne.s32.totalorder %s109, %s112
    %p121 = scmp.eq.s32.totalorder %s18, 3
    %p122 = por %p120, %p121
    %p123 = scmp.ne.s32.totalorder %s112, %s113
    %p124 = scmp.eq.s32.totalorder %s18, 0
    %p125 = por %p123, %p124
    %p126 = scmp.ne.s32.totalorder %s112, %s113
    %p127 = scmp.eq.s32.totalorder %s19, 3
    %p128 = por %p126, %p127
    %p130 = scmp.ne.s32.totalorder %s113, %s129
    %p131 = scmp.eq.s32.totalorder %s19, 0
    %p132 = por %p130, %p131
    %s134 = sadd.s32 %s133, 1
    %p137 = scmp.eq.s32.totalorder %s13, 3
    %p138 = scmp.ne.s32.totalorder %s133, %s135
    %p139 = scmp.eq.s32.totalorder %s13, 0
    %p140 = por %p138, %p139
    %p141 = scmp.ne.s32.totalorder %s133, %s135
    %p142 = scmp.eq.s32.totalorder %s18, 3
    %p143 = por %p141, %p142
    %p144 = scmp.ne.s32.totalorder %s135, %s136
    %p145 = scmp.eq.s32.totalorder %s18, 0
    %p146 = por %p144, %p145
    %p147 = scmp.ne.s32.totalorder %s135, %s136
    %p148 = scmp.eq.s32.totalorder %s19, 3
    %p149 = por %p147, %p148
    %p151 = scmp.ne.s32.totalorder %s136, %s150
    %p152 = scmp.eq.s32.totalorder %s19, 0
    %p153 = por %p151, %p152
    %s155 = sadd.s32 %s154, 1
    %p158 = scmp.eq.s32.totalorder %s13, 3
    %p159 = scmp.ne.s32.totalorder %s154, %s156
    %p160 = scmp.eq.s32.totalorder %s13, 0
    %p161 = por %p159, %p160
    %p162 = scmp.ne.s32.totalorder %s154, %s156
    %p163 = scmp.eq.s32.totalorder %s18, 3
    %p164 = por %p162, %p163
    %p165 = scmp.ne.s32.totalorder %s156, %s157
    %p166 = scmp.eq.s32.totalorder %s18, 0
    %p167 = por %p165, %p166
    %p168 = scmp.ne.s32.totalorder %s156, %s157
    %p169 = scmp.eq.s32.totalorder %s19, 3
    %p170 = por %p168, %p169
    %p172 = scmp.ne.s32.totalorder %s157, %s171
    %p173 = scmp.eq.s32.totalorder %s19, 0
    %p174 = por %p172, %p173
    %s175 = ssub.s32 %s20, %s32
    %s176 = ssub.s32 %s21, %s28
    %s177 = sor.u32 %s175, %s176
    %p178 = scmp.eq.s32.totalorder %s177, 0
    %s180 = sadd.s32 %s179, 1
    %s181 = scalar_select %p178, %s179, %s180
    %p184 = pneg %p178
    %p185 = scmp.eq.s32.totalorder %s13, 3
    %p186 = por %p184, %p185
    %p187 = scmp.ne.s32.totalorder %s179, %s182
    %p188 = scmp.eq.s32.totalorder %s13, 0
    %p189 = por %p187, %p188
    %p190 = scmp.ne.s32.totalorder %s179, %s182
    %p191 = scmp.eq.s32.totalorder %s18, 3
    %p192 = por %p190, %p191
    %p193 = scmp.ne.s32.totalorder %s182, %s183
    %p194 = scmp.eq.s32.totalorder %s18, 0
    %p195 = por %p193, %p194
    %p196 = scmp.ne.s32.totalorder %s182, %s183
    %p197 = scmp.eq.s32.totalorder %s19, 3
    %p198 = por %p196, %p197
    %p200 = scmp.ne.s32.totalorder %s183, %s199
    %p201 = scmp.eq.s32.totalorder %s19, 0
    %p202 = por %p200, %p201
    %s203 = ssub.s32 %s20, %s32
    %s204 = ssub.s32 %s21, %s28
    %s205 = sor.u32 %s203, %s204
    %p206 = scmp.eq.s32.totalorder %s205, 0
    %s208 = sadd.s32 %s207, 1
    %s209 = scalar_select %p206, %s207, %s208
    %p212 = pneg %p206
    %p213 = scmp.eq.s32.totalorder %s13, 3
    %p214 = por %p212, %p213
    %p215 = scmp.ne.s32.totalorder %s207, %s210
    %p216 = scmp.eq.s32.totalorder %s13, 0
    %p217 = por %p215, %p216
    %p218 = scmp.ne.s32.totalorder %s207, %s210
    %p219 = scmp.eq.s32.totalorder %s18, 3
    %p220 = por %p218, %p219
    %p221 = scmp.ne.s32.totalorder %s210, %s211
    %p222 = scmp.eq.s32.totalorder %s18, 0
    %p223 = por %p221, %p222
    %p224 = scmp.ne.s32.totalorder %s210, %s211
    %p225 = scmp.eq.s32.totalorder %s19, 3
    %p226 = por %p224, %p225
    %p228 = scmp.ne.s32.totalorder %s211, %s227
    %p229 = scmp.eq.s32.totalorder %s19, 0
    %p230 = por %p228, %p229
    %p231 = scmp.le.s32.totalorder 1, %s13
    %p232 = scmp.lt.s32.totalorder %s13, 5
    %p233 = pnand %p231, %p232
    %p234 = pneg %p233
    // Predicated region
    $region9: #{conv_block_forward.2} parent=5 // pred_check
      _
    $region10: #{conv_block_forward.2} parent=5 // pred_check_branch
      %236 = sbr.rel (%p233) target = $region12
    $region11: #{conv_block_forward.2} parent=5 // pred_region
      %s237 = ssub.s32 %s13, 1
      // Predicated region
      $region13: #{conv_block_forward.2} parent=11 // pred_check
        %p238 = pneg %p146
      $region14: #{conv_block_forward.2} parent=11 // pred_check_branch
        %240 = sbr.rel (%p238) target = $region16
      $region15: #{conv_block_forward.2} parent=11 // pred_region
        _
      $region16: #{conv_block_forward.2} parent=11 // pred_fallthru
        _
      // Predicated region
      $region17: #{conv_block_forward.2} parent=11 // pred_check
        %p241 = pneg %p167
      $region18: #{conv_block_forward.2} parent=11 // pred_check_branch
        %243 = sbr.rel (%p241) target = $region20
      $region19: #{conv_block_forward.2} parent=11 // pred_region
        _
      $region20: #{conv_block_forward.2} parent=11 // pred_fallthru
        _
    $region12: #{conv_block_forward.2} parent=5 // pred_fallthru
      _
    %p244 = scmp.lt.s32.totalorder %s13, 4
    // Predicated region
    $region21: #{conv_block_forward.2} parent=5 // pred_check
      %p245 = pneg %p244
    $region22: #{conv_block_forward.2} parent=5 // pred_check_branch
      %247 = sbr.rel (%p245) target = $region24
    $region23: #{conv_block_forward.2} parent=5 // pred_region
      // Predicated region
      $region25: #{conv_block_forward.2} parent=23 // pred_check
        %p248 = pneg %p55
      $region26: #{conv_block_forward.2} parent=23 // pred_check_branch
        %250 = sbr.rel (%p248) target = $region28
      $region27: #{conv_block_forward.2} parent=23 // pred_region
        %s251 = smul.u32 %s21, 8
        %s252 = ssub.s32 %s251, 1
        %p253 = scmp.gt.s32.totalorder %s252, 0
        %s254 = scalar_select %p253, %s252, 0
        %p255 = scmp.lt.s32.totalorder %s20, 1
        %s256 = scalar_select %p255, %s20, 1
        %p257 = scmp.lt.s32.totalorder %s254, 15
        %s258 = scalar_select %p257, %s254, 15
        %s259 = smul.addr %s258, 2
        %s260 = smul.addr %s256, 32
        %s261 = sadd.s32 %s259, %s260
        %s262 = smul.addr %s261, 4
        %s263 = scalar_lea.vmem %s0, %s262
        %s264 = smul.u32 %s21, 8
        %s265 = ssub.s32 %s264, 1
        %p266 = scmp.gt.s32.totalorder %s265, 0
        %s267 = scalar_select %p266, %s265, 0
      $region28: #{conv_block_forward.2} parent=23 // pred_fallthru
        _
      // Predicated region
      $region29: #{conv_block_forward.2} parent=23 // pred_check
        %p268 = pneg %p83
      $region30: #{conv_block_forward.2} parent=23 // pred_check_branch
        %270 = sbr.rel (%p268) target = $region32
      $region31: #{conv_block_forward.2} parent=23 // pred_region
        %s271 = smul.u32 8, %s21
        %p272 = scmp.lt.s32.totalorder %s20, 1
        %s273 = scalar_select %p272, %s20, 1
        %p274 = scmp.lt.s32.totalorder %s271, 15
        %s275 = scalar_select %p274, %s271, 15
        %s276 = smul.addr %s275, 2
        %s277 = smul.addr %s273, 32
        %s278 = sadd.s32 %s276, %s277
        %s279 = smul.addr %s278, 4
        %s280 = scalar_lea.vmem %s1, %s279
        %s281 = smul.u32 8, %s21
      $region32: #{conv_block_forward.2} parent=23 // pred_fallthru
        _
      // Predicated region
      $region33: #{conv_block_forward.2} parent=23 // pred_check
        %p282 = pneg %p119
      $region34: #{conv_block_forward.2} parent=23 // pred_check_branch
        %284 = sbr.rel (%p282) target = $region36
      $region35: #{conv_block_forward.2} parent=23 // pred_region
        %s285 = sadd.s32 %s21, 1
        %s286 = smul.u32 %s285, 8
        %p287 = scmp.lt.s32.totalorder %s286, 15
        %s288 = scalar_select %p287, %s286, 15
        %p289 = scmp.lt.s32.totalorder %s20, 1
        %s290 = scalar_select %p289, %s20, 1
        %p291 = scmp.lt.s32.totalorder %s288, 15
        %s292 = scalar_select %p291, %s288, 15
        %s293 = smul.addr %s292, 2
        %s294 = smul.addr %s290, 32
        %s295 = sadd.s32 %s293, %s294
        %s296 = smul.addr %s295, 4
        %s297 = scalar_lea.vmem %s2, %s296
        %s298 = sadd.s32 %s21, 1
        %s299 = smul.u32 %s298, 8
        %p300 = scmp.lt.s32.totalorder %s299, 15
        %s301 = scalar_select %p300, %s299, 15
      $region36: #{conv_block_forward.2} parent=23 // pred_fallthru
        _
    $region24: #{conv_block_forward.2} parent=5 // pred_fallthru
      _
    %p302 = scmp.le.s32.totalorder 1, %s13
    %p303 = scmp.lt.s32.totalorder %s13, 5
    %p304 = pnand %p302, %p303
    %p305 = pneg %p304
    // Predicated region
    $region37: #{conv_block_forward.2} parent=5 // pred_check
      _
    $region38: #{conv_block_forward.2} parent=5 // pred_check_branch
      %307 = sbr.rel (%p304) target = $region40
    $region39: #{conv_block_forward.2} parent=5 // pred_region
      %s308 = ssub.s32 %s13, 1
      %s309 = smul.u32 %s23, 8
      %s310 = ssub.s32 %s309, 1
      %p311 = scmp.gt.s32.totalorder %s310, 0
      %s312 = scalar_select %p311, %s310, 0
      %p313 = scmp.lt.s32.totalorder %s22, 1
      %s314 = scalar_select %p313, %s22, 1
      %p315 = scmp.lt.s32.totalorder %s312, 15
      %s316 = scalar_select %p315, %s312, 15
      %s317 = smul.addr %s316, 2
      %s318 = smul.addr %s314, 32
      %s319 = sadd.s32 %s317, %s318
      %s320 = smul.addr %s319, 4
      %s321 = scalar_lea.vmem %s0, %s320
      %p322 = pneg %p61
      %p323 = pneg %p58
      %s324 = smul.u32 8, %s23
      %p325 = scmp.lt.s32.totalorder %s22, 1
      %s326 = scalar_select %p325, %s22, 1
      %p327 = scmp.lt.s32.totalorder %s324, 15
      %s328 = scalar_select %p327, %s324, 15
      %s329 = smul.addr %s328, 2
      %s330 = smul.addr %s326, 32
      %s331 = sadd.s32 %s329, %s330
      %s332 = smul.addr %s331, 4
      %s333 = scalar_lea.vmem %s1, %s332
      %p334 = pneg %p89
      %p335 = pneg %p86
      %s336 = sadd.s32 %s23, 1
      %s337 = smul.u32 %s336, 8
      %p338 = scmp.lt.s32.totalorder %s337, 15
      %s339 = scalar_select %p338, %s337, 15
      %p340 = scmp.lt.s32.totalorder %s22, 1
      %s341 = scalar_select %p340, %s22, 1
      %p342 = scmp.lt.s32.totalorder %s339, 15
      %s343 = scalar_select %p342, %s339, 15
      %s344 = smul.addr %s343, 2
      %s345 = smul.addr %s341, 32
      %s346 = sadd.s32 %s344, %s345
      %s347 = smul.addr %s346, 4
      %s348 = scalar_lea.vmem %s2, %s347
      %p349 = pneg %p125
      %p350 = pneg %p122
      %p351 = pneg %p146
      %p352 = pneg %p143
      %p353 = pneg %p167
      %p354 = pneg %p164
      %p355 = pneg %p195
      %p356 = pneg %p192
      %s357 = smul.u32 8, %s23
      %p358 = scmp.lt.s32.totalorder %s22, 1
      %s359 = scalar_select %p358, %s22, 1
      %p360 = scmp.lt.s32.totalorder %s357, 15
      %s361 = scalar_select %p360, %s357, 15
      %s362 = smul.addr %s361, 2
      %s363 = smul.addr %s359, 32
      %s364 = sadd.s32 %s362, %s363
      %s365 = smul.addr %s364, 4
      %s366 = scalar_lea.vmem %s5, %s365
      %p367 = pneg %p223
      %p368 = pneg %p220
      %p369 = scmp.lt.s32.totalorder %s22, 1
      %s370 = scalar_select %p369, %s22, 1
      %p371 = scmp.lt.s32.totalorder %s23, 1
      %s372 = scalar_select %p371, %s23, 1
      %s373 = smul.addr %s370, 2
      %s374 = sadd.s32 %s372, %s373
      %s375 = smul.addr %s374, 2
      %s376 = scalar_lea.vmem %s6, %s375
      %s377 = smul.u32 %s23, 8
      %s378 = ssub.s32 %s377, 1
      %p379 = scmp.gt.s32.totalorder %s378, 0
      %s380 = scalar_select %p379, %s378, 0
      %p381 = scmp.lt.s32.totalorder %s22, 1
      %s382 = scalar_select %p381, %s22, 1
      %p383 = scmp.lt.s32.totalorder %s380, 15
      %s384 = scalar_select %p383, %s380, 15
      %s385 = smul.addr %s384, 2
      %s386 = smul.addr %s382, 32
      %s387 = sadd.s32 %s385, %s386
      %s388 = smul.addr %s387, 4
      %s389 = scalar_lea.vmem %s0, %s388
      %s390 = smul.u32 %s23, 8
      %s391 = ssub.s32 %s390, 1
      %p392 = scmp.gt.s32.totalorder %s391, 0
      %s393 = scalar_select %p392, %s391, 0
      %s394 = smul.u32 8, %s23
      %p395 = scmp.lt.s32.totalorder %s22, 1
      %s396 = scalar_select %p395, %s22, 1
      %p397 = scmp.lt.s32.totalorder %s394, 15
      %s398 = scalar_select %p397, %s394, 15
      %s399 = smul.addr %s398, 2
      %s400 = smul.addr %s396, 32
      %s401 = sadd.s32 %s399, %s400
      %s402 = smul.addr %s401, 4
      %s403 = scalar_lea.vmem %s1, %s402
      %s404 = smul.u32 8, %s23
      %s405 = sadd.s32 %s23, 1
      %s406 = smul.u32 %s405, 8
      %p407 = scmp.lt.s32.totalorder %s406, 15
      %s408 = scalar_select %p407, %s406, 15
      %p409 = scmp.lt.s32.totalorder %s22, 1
      %s410 = scalar_select %p409, %s22, 1
      %p411 = scmp.lt.s32.totalorder %s408, 15
      %s412 = scalar_select %p411, %s408, 15
      %s413 = smul.addr %s412, 2
      %s414 = smul.addr %s410, 32
      %s415 = sadd.s32 %s413, %s414
      %s416 = smul.addr %s415, 4
      %s417 = scalar_lea.vmem %s2, %s416
      %s418 = sadd.s32 %s23, 1
      %s419 = smul.u32 %s418, 8
      %p420 = scmp.lt.s32.totalorder %s419, 15
      %s421 = scalar_select %p420, %s419, 15
      %s422 = smul.u32 8, %s23
      %p423 = scmp.lt.s32.totalorder %s22, 1
      %s424 = scalar_select %p423, %s22, 1
      %p425 = scmp.lt.s32.totalorder %s422, 15
      %s426 = scalar_select %p425, %s422, 15
      %s427 = smul.addr %s426, 2
      %s428 = smul.addr %s424, 32
      %s429 = sadd.s32 %s427, %s428
      %s430 = smul.addr %s429, 4
      %s431 = scalar_lea.vmem %s5, %s430
      %s432 = smul.u32 8, %s23
      %p433 = scmp.lt.s32.totalorder %s22, 1
      %s434 = scalar_select %p433, %s22, 1
      %p435 = scmp.lt.s32.totalorder %s23, 1
      %s436 = scalar_select %p435, %s23, 1
      %s437 = smul.addr %s434, 2
      %s438 = sadd.s32 %s436, %s437
      %s439 = smul.addr %s438, 2
      %s440 = scalar_lea.vmem %s6, %s439
      %v442 = vld [vmem:[%s389] sm:$0xf]
      %v443 = vld [vmem:[%s389 + $0x4] sm:$0xf]
      %v444 = vld [vmem:[%s417] sm:$0xf]
      %v445 = vld [vmem:[%s417 + $0x4] sm:$0xf]
      %p446 = scmp.eq.s32.totalorder %s23, 0
      %s447 = scalar_select %p446, 1, 0
      %v448 = vstv %s447
      %vm449 = vcmp.eq.s32.totalorder %v448, 1
      %v450 = vsel %vm449, 0, %v442
      %v451 = vsel %vm449, 0, %v443
      %p452 = scmp.eq.s32.totalorder %s23, 1
      %s453 = scalar_select %p452, 1, 0
      %v454 = vstv %s453
      %vm455 = vcmp.eq.s32.totalorder %v454, 1
      %v456 = vsel %vm455, 0, %v444
      %v457 = vsel %vm455, 0, %v445
      %v458 = vld [vmem:[%s403] sm:$0xf]
      %v459 = vld [vmem:[%s403 + $0x4] sm:$0xf]
      %v460 = vld [vmem:[%s403 + $0x8] sm:$0xf]
      %v461 = vld [vmem:[%s403 + $0xc] sm:$0xf]
      %v462 = vld [vmem:[%s403 + $0x10] sm:$0xf]
      %v463 = vld [vmem:[%s403 + $0x14] sm:$0xf]
      %v464 = vld [vmem:[%s403 + $0x18] sm:$0xf]
      %v465 = vld [vmem:[%s403 + $0x1c] sm:$0xf]
      %v466 = vld [vmem:[%s403 + $0x20] sm:$0xf]
      %v467 = vld [vmem:[%s403 + $0x24] sm:$0xf]
      %v468 = vld [vmem:[%s403 + $0x28] sm:$0xf]
      %v469 = vld [vmem:[%s403 + $0x2c] sm:$0xf]
      %v470 = vld [vmem:[%s403 + $0x30] sm:$0xf]
      %v471 = vld [vmem:[%s403 + $0x34] sm:$0xf]
      %v472 = vld [vmem:[%s403 + $0x38] sm:$0xf]
      %v473 = vld [vmem:[%s403 + $0x3c] sm:$0xf]
      %v494 = vunpack.c.l.b16 %v450
      %v495 = vunpack.c.l.b16 %v451
      %v496 = vunpack.c.l.b16 %v458
      %v497 = vunpack.c.l.b16 %v459
      %v498 = vunpack.c.l.b16 %v460
      %v499 = vunpack.c.l.b16 %v461
      %v500 = vunpack.c.l.b16 %v462
      %v501 = vunpack.c.l.b16 %v463
      %v502 = vunpack.c.l.b16 %v464
      %v503 = vunpack.c.l.b16 %v465
      %v504 = vunpack.c.l.b16 %v466
      %v505 = vunpack.c.l.b16 %v467
      %v506 = vunpack.c.l.b16 %v468
      %v507 = vunpack.c.l.b16 %v469
      %v508 = vunpack.c.l.b16 %v470
      %v509 = vunpack.c.l.b16 %v471
      %v510 = vunpack.c.l.b16 %v472
      %v511 = vunpack.c.l.b16 %v473
      %v512 = vunpack.c.l.b16 %v456
      %v513 = vunpack.c.l.b16 %v457
      %v514 = vpack.c.b16 %v495, %v494
      %v515 = vpack.c.b16 %v497, %v496
      %v516 = vpack.c.b16 %v499, %v498
      %v517 = vpack.c.b16 %v501, %v500
      %v518 = vpack.c.b16 %v503, %v502
      %v519 = vpack.c.b16 %v505, %v504
      %v520 = vpack.c.b16 %v507, %v506
      %v521 = vpack.c.b16 %v509, %v508
      %v522 = vpack.c.b16 %v511, %v510
      %v523 = vpack.c.b16 %v513, %v512
      %v525 = vshrl.u32 %v514, 16
      %v527 = vrot.slane %v525, 7
      %v528 = vshll.u32 %v514, 16
      %v530 = vor.u32 %v527, %v528
      %v532 = vshrl.u32 %v515, 16
      %v534 = vrot.slane %v532, 7
      %v535 = vshll.u32 %v515, 16
      %v537 = vor.u32 %v534, %v535
      %v539 = vshrl.u32 %v516, 16
      %v541 = vrot.slane %v539, 7
      %v542 = vshll.u32 %v516, 16
      %v544 = vor.u32 %v541, %v542
      %v546 = vshrl.u32 %v517, 16
      %v548 = vrot.slane %v546, 7
      %v549 = vshll.u32 %v517, 16
      %v551 = vor.u32 %v548, %v549
      %v553 = vshrl.u32 %v518, 16
      %v555 = vrot.slane %v553, 7
      %v556 = vshll.u32 %v518, 16
      %v558 = vor.u32 %v555, %v556
      %v560 = vshrl.u32 %v519, 16
      %v562 = vrot.slane %v560, 7
      %v563 = vshll.u32 %v519, 16
      %v565 = vor.u32 %v562, %v563
      %v567 = vshrl.u32 %v520, 16
      %v569 = vrot.slane %v567, 7
      %v570 = vshll.u32 %v520, 16
      %v572 = vor.u32 %v569, %v570
      %v574 = vshrl.u32 %v521, 16
      %v576 = vrot.slane %v574, 7
      %v577 = vshll.u32 %v521, 16
      %v579 = vor.u32 %v576, %v577
      %v581 = vshrl.u32 %v522, 16
      %v583 = vrot.slane %v581, 7
      %v584 = vshll.u32 %v522, 16
      %v586 = vor.u32 %v583, %v584
      %v588 = vshrl.u32 %v523, 16
      %v590 = vrot.slane %v588, 7
      %v591 = vshll.u32 %v523, 16
      %v593 = vor.u32 %v590, %v591
      %vm604 = vcmask 1040384
      %vm605 = vsmask.f32 256
      %vm606 = vmand %vm604, %vm605
      %v607 = vsel %vm606, 0, %v530
      %v608 = vsel %vm606, 0, %v537
      %v609 = vsel %vm606, 0, %v544
      %v610 = vsel %vm606, 0, %v551
      %v611 = vsel %vm606, 0, %v558
      %v612 = vsel %vm606, 0, %v565
      %v613 = vsel %vm606, 0, %v572
      %v614 = vsel %vm606, 0, %v579
      %v615 = vsel %vm606, 0, %v586
      %v616 = vsel %vm606, 0, %v593
      %v617 = vrot.slane %v528, 1
      %v618 = vor.u32 %v525, %v617
      %v619 = vrot.slane %v535, 1
      %v620 = vor.u32 %v532, %v619
      %v621 = vrot.slane %v542, 1
      %v622 = vor.u32 %v539, %v621
      %v623 = vrot.slane %v549, 1
      %v624 = vor.u32 %v546, %v623
      %v625 = vrot.slane %v556, 1
      %v626 = vor.u32 %v553, %v625
      %v627 = vrot.slane %v563, 1
      %v628 = vor.u32 %v560, %v627
      %v629 = vrot.slane %v570, 1
      %v630 = vor.u32 %v567, %v629
      %v631 = vrot.slane %v577, 1
      %v632 = vor.u32 %v574, %v631
      %v633 = vrot.slane %v584, 1
      %v634 = vor.u32 %v581, %v633
      %v635 = vrot.slane %v591, 1
      %v636 = vor.u32 %v588, %v635
      %vm647 = vcmask 1047552
      %vm648 = vsmask.f32 7424
      %vm649 = vmand %vm647, %vm648
      %v650 = vsel %vm649, %v618, 0
      %v651 = vsel %vm649, %v620, 0
      %v652 = vsel %vm649, %v622, 0
      %v653 = vsel %vm649, %v624, 0
      %v654 = vsel %vm649, %v626, 0
      %v655 = vsel %vm649, %v628, 0
      %v656 = vsel %vm649, %v630, 0
      %v657 = vsel %vm649, %v632, 0
      %v658 = vsel %vm649, %v634, 0
      %v659 = vsel %vm649, %v636, 0
      %660 = vrot.lane.b32.xlu0 %v514, 8
      %v661 = vpop.permute.xlu0 %660
      %662 = vrot.lane.b32.xlu0 %v515, 8
      %v663 = vpop.permute.xlu0 %662
      %664 = vrot.lane.b32.xlu0 %v516, 8
      %v665 = vpop.permute.xlu0 %664
      %666 = vrot.lane.b32.xlu0 %v517, 8
      %v667 = vpop.permute.xlu0 %666
      %668 = vrot.lane.b32.xlu0 %v518, 8
      %v669 = vpop.permute.xlu0 %668
      %670 = vrot.lane.b32.xlu0 %v519, 8
      %v671 = vpop.permute.xlu0 %670
      %672 = vrot.lane.b32.xlu0 %v520, 8
      %v673 = vpop.permute.xlu0 %672
      %674 = vrot.lane.b32.xlu0 %v521, 8
      %v675 = vpop.permute.xlu0 %674
      %676 = vrot.lane.b32.xlu0 %v522, 8
      %v677 = vpop.permute.xlu0 %676
      %678 = vrot.lane.b32.xlu0 %v523, 8
      %v679 = vpop.permute.xlu0 %678
      %690 = vrot.lane.b32.xlu0 %v650, 16
      %v691 = vpop.permute.xlu0 %690
      %692 = vrot.lane.b32.xlu0 %v651, 16
      %v693 = vpop.permute.xlu0 %692
      %694 = vrot.lane.b32.xlu0 %v652, 16
      %v695 = vpop.permute.xlu0 %694
      %696 = vrot.lane.b32.xlu0 %v653, 16
      %v697 = vpop.permute.xlu0 %696
      %698 = vrot.lane.b32.xlu0 %v654, 16
      %v699 = vpop.permute.xlu0 %698
      %700 = vrot.lane.b32.xlu0 %v655, 16
      %v701 = vpop.permute.xlu0 %700
      %702 = vrot.lane.b32.xlu0 %v656, 16
      %v703 = vpop.permute.xlu0 %702
      %704 = vrot.lane.b32.xlu0 %v657, 16
      %v705 = vpop.permute.xlu0 %704
      %706 = vrot.lane.b32.xlu0 %v658, 16
      %v707 = vpop.permute.xlu0 %706
      %708 = vrot.lane.b32.xlu0 %v659, 16
      %v709 = vpop.permute.xlu0 %708
      %vm710 = vcmask 64512
      %v713 = vsel %vm710, %v607, %v661
      %v716 = vsel %vm710, %v608, %v663
      %v719 = vsel %vm710, %v609, %v665
      %v722 = vsel %vm710, %v610, %v667
      %v725 = vsel %vm710, %v611, %v669
      %v728 = vsel %vm710, %v612, %v671
      %v731 = vsel %vm710, %v613, %v673
      %v734 = vsel %vm710, %v614, %v675
      %v737 = vsel %vm710, %v615, %v677
      %v740 = vsel %vm710, %v616, %v679
      %vm741 = vcmask 130048
      %v743 = vsel %vm741, %v713, %v691
      %v745 = vsel %vm741, %v716, %v693
      %v747 = vsel %vm741, %v719, %v695
      %v749 = vsel %vm741, %v722, %v697
      %v751 = vsel %vm741, %v725, %v699
      %v753 = vsel %vm741, %v728, %v701
      %v755 = vsel %vm741, %v731, %v703
      %v757 = vsel %vm741, %v734, %v705
      %v759 = vsel %vm741, %v737, %v707
      %v761 = vsel %vm741, %v740, %v709
      %v762 = vld [vmem:[%s3] sm:$0xf]
      %v763 = vld [vmem:[%s3 + $0x4] sm:$0xf]
      %v764 = vld [vmem:[%s3 + $0x8] sm:$0xf]
      %s765 = scalar_lea.vmem %s3, 12
      %v766 = vld [vmem:[%s765] sm:$0xf]
      %v767 = vld [vmem:[%s765 + $0x4] sm:$0xf]
      %v768 = vld [vmem:[%s765 + $0x8] sm:$0xf]
      %v772 = vunpack.c.l.b16 %v766
      %v773 = vunpack.c.l.b16 %v767
      %v774 = vunpack.c.l.b16 %v768
      %v775 = vpack.c.b16 %v773, %v772
      %v776 = vpack.c.b16 %v774, %v774
      %vm778 = vcmask 195584
      %v779 = vsel %vm778, %v745, 0
      %v781 = vsel %vm778, %v747, 0
      %v783 = vsel %vm778, %v749, 0
      %v785 = vsel %vm778, %v751, 0
      %v787 = vsel %vm778, %v753, 0
      %v789 = vsel %vm778, %v755, 0
      %v791 = vsel %vm778, %v757, 0
      %v793 = vsel %vm778, %v759, 0
      %vm795 = vcmask 1043456
      %v797 = vsel %vm795, %v776, 0
      %799 = vmatprep.subr.bf16.mxu0 0
      %800 = vmatpush1.bf16.msra.mxu0 %v775
      %801 = vmatprep.subr.bf16.mxu0 0
      %802 = vmatpush1.bf16.msra.mxu0 %v797
      %803 = vmatprep.subr.bf16.mxu0 0
      %804 = vmatpush1.bf16.msra.mxu0 0
      %805 = vmatprep.subr.bf16.mxu0 0
      %806 = vmatpush1.bf16.msra.mxu0 0
      %807 = vmatprep.subr.bf16.mxu0 0
      %808 = vmatpush1.bf16.msra.mxu0 0
      %809 = vmatprep.subr.bf16.mxu0 0
      %810 = vmatpush1.bf16.msra.mxu0 0
      %811 = vmatprep.subr.bf16.mxu0 0
      %812 = vmatpush1.bf16.msra.mxu0 0
      %813 = vmatprep.subr.bf16.mxu0 0
      %814 = vmatpush1.bf16.msra.mxu0 0
      %815 = vmatprep.subr.bf16.mxu0 0
      %816 = vmatpush1.bf16.msra.mxu0 0
      %817 = vmatprep.subr.bf16.mxu0 0
      %818 = vmatpush1.bf16.msra.mxu0 0
      %819 = vmatprep.subr.bf16.mxu0 0
      %820 = vmatpush1.bf16.msra.mxu0 0
      %821 = vmatprep.subr.bf16.mxu0 0
      %822 = vmatpush1.bf16.msra.mxu0 0
      %823 = vmatprep.subr.bf16.mxu0 0
      %824 = vmatpush1.bf16.msra.mxu0 0
      %825 = vmatprep.subr.bf16.mxu0 0
      %826 = vmatpush1.bf16.msra.mxu0 0
      %827 = vmatprep.subr.bf16.mxu0 0
      %828 = vmatpush1.bf16.msra.mxu0 0
      %829 = vmatprep.subr.bf16.mxu0 0
      %830 = vmatpush1.bf16.msra.mxu0 0
      %831 = vmatprep.mubr.bf16.mxu0 0
      %832 = vmatmul.mubr.bf16.gmra.mrb[0].mxu0 %v779
      %v833 = vpop.f32.mrb[0].mxu0
      %v834 = vadd.f32 0.0, %v833
      %v835 = vpop.f32.mrb[0].mxu0
      %v836 = vpop.f32.mrb[0].mxu0
      %v837 = vadd.f32 0.0, %v836
      %v838 = vpop.f32.mrb[0].mxu0
      %839 = vmatprep.mubr.bf16.mxu0 0
      %840 = vmatmul.mubr.bf16.gmra.mrb[0].mxu0 %v781
      %v841 = vpop.f32.mrb[0].mxu0
      %v842 = vadd.f32 0.0, %v841
      %v843 = vpop.f32.mrb[0].mxu0
      %v844 = vpop.f32.mrb[0].mxu0
      %v845 = vadd.f32 0.0, %v844
      %v846 = vpop.f32.mrb[0].mxu0
      %847 = vmatprep.mubr.bf16.mxu0 0
      %848 = vmatmul.mubr.bf16.gmra.mrb[0].mxu0 %v783
      %v849 = vpop.f32.mrb[0].mxu0
      %v850 = vadd.f32 0.0, %v849
      %v851 = vpop.f32.mrb[0].mxu0
      %v852 = vpop.f32.mrb[0].mxu0
      %v853 = vadd.f32 0.0, %v852
      %v854 = vpop.f32.mrb[0].mxu0
      %855 = vmatprep.mubr.bf16.mxu0 0
      %856 = vmatmul.mubr.bf16.gmra.mrb[0].mxu0 %v785
      %v857 = vpop.f32.mrb[0].mxu0
      %v858 = vadd.f32 0.0, %v857
      %v859 = vpop.f32.mrb[0].mxu0
      %v860 = vpop.f32.mrb[0].mxu0
      %v861 = vadd.f32 0.0, %v860
      %v862 = vpop.f32.mrb[0].mxu0
      %863 = vmatprep.mubr.bf16.mxu0 0
      %864 = vmatmul.mubr.bf16.gmra.mrb[0].mxu0 %v787
      %v865 = vpop.f32.mrb[0].mxu0
      %v866 = vadd.f32 0.0, %v865
      %v867 = vpop.f32.mrb[0].mxu0
      %v868 = vpop.f32.mrb[0].mxu0
      %v869 = vadd.f32 0.0, %v868
      %v870 = vpop.f32.mrb[0].mxu0
      %871 = vmatprep.mubr.bf16.mxu0 0
      %872 = vmatmul.mubr.bf16.gmra.mrb[0].mxu0 %v789
      %v873 = vpop.f32.mrb[0].mxu0
      %v874 = vadd.f32 0.0, %v873
      %v875 = vpop.f32.mrb[0].mxu0
      %v876 = vpop.f32.mrb[0].mxu0
      %v877 = vadd.f32 0.0, %v876
      %v878 = vpop.f32.mrb[0].mxu0
      %879 = vmatprep.mubr.bf16.mxu0 0
      %880 = vmatmul.mubr.bf16.gmra.mrb[0].mxu0 %v791
      %v881 = vpop.f32.mrb[0].mxu0
      %v882 = vadd.f32 0.0, %v881
      %v883 = vpop.f32.mrb[0].mxu0
      %v884 = vpop.f32.mrb[0].mxu0
      %v885 = vadd.f32 0.0, %v884
      %v886 = vpop.f32.mrb[0].mxu0
      %887 = vmatprep.mubr.bf16.mxu0 0
      %888 = vmatmul.mubr.bf16.gmra.mrb[0].mxu0 %v793
      %v889 = vpop.f32.mrb[0].mxu0
      %v890 = vadd.f32 0.0, %v889
      %v891 = vpop.f32.mrb[0].mxu0
      %v892 = vpop.f32.mrb[0].mxu0
      %v893 = vadd.f32 0.0, %v892
      %v894 = vpop.f32.mrb[0].mxu0
      %895 = vdwg.mxu0
      %v899 = vunpack.c.l.b16 %v762
      %v900 = vunpack.c.l.b16 %v763
      %v901 = vunpack.c.l.b16 %v764
      %v902 = vpack.c.b16 %v900, %v899
      %v903 = vpack.c.b16 %v901, %v901
      %v905 = vsel %vm778, %v743, 0
      %v908 = vsel %vm795, %v903, 0
      %910 = vmatprep.subr.bf16.mxu0 0
      %911 = vmatpush1.bf16.msra.mxu0 %v902
      %912 = vmatprep.subr.bf16.mxu0 0
      %913 = vmatpush1.bf16.msra.mxu0 %v908
      %914 = vmatprep.subr.bf16.mxu0 0
      %915 = vmatpush1.bf16.msra.mxu0 0
      %916 = vmatprep.subr.bf16.mxu0 0
      %917 = vmatpush1.bf16.msra.mxu0 0
      %918 = vmatprep.subr.bf16.mxu0 0
      %919 = vmatpush1.bf16.msra.mxu0 0
      %920 = vmatprep.subr.bf16.mxu0 0
      %921 = vmatpush1.bf16.msra.mxu0 0
      %922 = vmatprep.subr.bf16.mxu0 0
      %923 = vmatpush1.bf16.msra.mxu0 0
      %924 = vmatprep.subr.bf16.mxu0 0
      %925 = vmatpush1.bf16.msra.mxu0 0
      %926 = vmatprep.subr.bf16.mxu0 0
      %927 = vmatpush1.bf16.msra.mxu0 0
      %928 = vmatprep.subr.bf16.mxu0 0
      %929 = vmatpush1.bf16.msra.mxu0 0
      %930 = vmatprep.subr.bf16.mxu0 0
      %931 = vmatpush1.bf16.msra.mxu0 0
      %932 = vmatprep.subr.bf16.mxu0 0
      %933 = vmatpush1.bf16.msra.mxu0 0
      %934 = vmatprep.subr.bf16.mxu0 0
      %935 = vmatpush1.bf16.msra.mxu0 0
      %936 = vmatprep.subr.bf16.mxu0 0
      %937 = vmatpush1.bf16.msra.mxu0 0
      %938 = vmatprep.subr.bf16.mxu0 0
      %939 = vmatpush1.bf16.msra.mxu0 0
      %940 = vmatprep.subr.bf16.mxu0 0
      %941 = vmatpush1.bf16.msra.mxu0 0
      %942 = vmatprep.mubr.bf16.mxu0 0
      %943 = vmatmul.mubr.bf16.gmra.mrb[0].mxu0 %v905
      %v944 = vpop.f32.mrb[0].mxu0
      %v945 = vadd.f32 %v834, %v944
      %v946 = vpop.f32.mrb[0].mxu0
      %v947 = vpop.f32.mrb[0].mxu0
      %v948 = vadd.f32 %v837, %v947
      %v949 = vpop.f32.mrb[0].mxu0
      %950 = vmatprep.mubr.bf16.mxu0 0
      %951 = vmatmul.mubr.bf16.gmra.mrb[0].mxu0 %v779
      %v952 = vpop.f32.mrb[0].mxu0
      %v953 = vadd.f32 %v842, %v952
      %v954 = vpop.f32.mrb[0].mxu0
      %v955 = vpop.f32.mrb[0].mxu0
      %v956 = vadd.f32 %v845, %v955
      %v957 = vpop.f32.mrb[0].mxu0
      %958 = vmatprep.mubr.bf16.mxu0 0
      %959 = vmatmul.mubr.bf16.gmra.mrb[0].mxu0 %v781
      %v960 = vpop.f32.mrb[0].mxu0
      %v961 = vadd.f32 %v850, %v960
      %v962 = vpop.f32.mrb[0].mxu0
      %v963 = vpop.f32.mrb[0].mxu0
      %v964 = vadd.f32 %v853, %v963
      %v965 = vpop.f32.mrb[0].mxu0
      %966 = vmatprep.mubr.bf16.mxu0 0
      %967 = vmatmul.mubr.bf16.gmra.mrb[0].mxu0 %v783
      %v968 = vpop.f32.mrb[0].mxu0
      %v969 = vadd.f32 %v858, %v968
      %v970 = vpop.f32.mrb[0].mxu0
      %v971 = vpop.f32.mrb[0].mxu0
      %v972 = vadd.f32 %v861, %v971
      %v973 = vpop.f32.mrb[0].mxu0
      %974 = vmatprep.mubr.bf16.mxu0 0
      %975 = vmatmul.mubr.bf16.gmra.mrb[0].mxu0 %v785
      %v976 = vpop.f32.mrb[0].mxu0
      %v977 = vadd.f32 %v866, %v976
      %v978 = vpop.f32.mrb[0].mxu0
      %v979 = vpop.f32.mrb[0].mxu0
      %v980 = vadd.f32 %v869, %v979
      %v981 = vpop.f32.mrb[0].mxu0
      %982 = vmatprep.mubr.bf16.mxu0 0
      %983 = vmatmul.mubr.bf16.gmra.mrb[0].mxu0 %v787
      %v984 = vpop.f32.mrb[0].mxu0
      %v985 = vadd.f32 %v874, %v984
      %v986 = vpop.f32.mrb[0].mxu0
      %v987 = vpop.f32.mrb[0].mxu0
      %v988 = vadd.f32 %v877, %v987
      %v989 = vpop.f32.mrb[0].mxu0
      %990 = vmatprep.mubr.bf16.mxu0 0
      %991 = vmatmul.mubr.bf16.gmra.mrb[0].mxu0 %v789
      %v992 = vpop.f32.mrb[0].mxu0
      %v993 = vadd.f32 %v882, %v992
      %v994 = vpop.f32.mrb[0].mxu0
      %v995 = vpop.f32.mrb[0].mxu0
      %v996 = vadd.f32 %v885, %v995
      %v997 = vpop.f32.mrb[0].mxu0
      %998 = vmatprep.mubr.bf16.mxu0 0
      %999 = vmatmul.mubr.bf16.gmra.mrb[0].mxu0 %v791
      %v1000 = vpop.f32.mrb[0].mxu0
      %v1001 = vadd.f32 %v890, %v1000
      %v1002 = vpop.f32.mrb[0].mxu0
      %v1003 = vpop.f32.mrb[0].mxu0
      %v1004 = vadd.f32 %v893, %v1003
      %v1005 = vpop.f32.mrb[0].mxu0
      %1006 = vdwg.mxu0
      %s1007 = scalar_lea.vmem %s3, 24
      %v1008 = vld [vmem:[%s1007] sm:$0xf]
      %v1009 = vld [vmem:[%s1007 + $0x4] sm:$0xf]
      %v1010 = vld [vmem:[%s1007 + $0x8] sm:$0xf]
      %v1014 = vunpack.c.l.b16 %v1008
      %v1015 = vunpack.c.l.b16 %v1009
      %v1016 = vunpack.c.l.b16 %v1010
      %v1017 = vpack.c.b16 %v1015, %v1014
      %v1018 = vpack.c.b16 %v1016, %v1016
      %v1020 = vsel %vm778, %v761, 0
      %v1023 = vsel %vm795, %v1018, 0
      %1025 = vmatprep.subr.bf16.mxu0 0
      %1026 = vmatpush1.bf16.msra.mxu0 %v1017
      %1027 = vmatprep.subr.bf16.mxu0 0
      %1028 = vmatpush1.bf16.msra.mxu0 %v1023
      %1029 = vmatprep.subr.bf16.mxu0 0
      %1030 = vmatpush1.bf16.msra.mxu0 0
      %1031 = vmatprep.subr.bf16.mxu0 0
      %1032 = vmatpush1.bf16.msra.mxu0 0
      %1033 = vmatprep.subr.bf16.mxu0 0
      %1034 = vmatpush1.bf16.msra.mxu0 0
      %1035 = vmatprep.subr.bf16.mxu0 0
      %1036 = vmatpush1.bf16.msra.mxu0 0
      %1037 = vmatprep.subr.bf16.mxu0 0
      %1038 = vmatpush1.bf16.msra.mxu0 0
      %1039 = vmatprep.subr.bf16.mxu0 0
      %1040 = vmatpush1.bf16.msra.mxu0 0
      %1041 = vmatprep.subr.bf16.mxu0 0
      %1042 = vmatpush1.bf16.msra.mxu0 0
      %1043 = vmatprep.subr.bf16.mxu0 0
      %1044 = vmatpush1.bf16.msra.mxu0 0
      %1045 = vmatprep.subr.bf16.mxu0 0
      %1046 = vmatpush1.bf16.msra.mxu0 0
      %1047 = vmatprep.subr.bf16.mxu0 0
      %1048 = vmatpush1.bf16.msra.mxu0 0
      %1049 = vmatprep.subr.bf16.mxu0 0
      %1050 = vmatpush1.bf16.msra.mxu0 0
      %1051 = vmatprep.subr.bf16.mxu0 0
      %1052 = vmatpush1.bf16.msra.mxu0 0
      %1053 = vmatprep.subr.bf16.mxu0 0
      %1054 = vmatpush1.bf16.msra.mxu0 0
      %1055 = vmatprep.subr.bf16.mxu0 0
      %1056 = vmatpush1.bf16.msra.mxu0 0
      %1057 = vmatprep.mubr.bf16.mxu0 0
      %1058 = vmatmul.mubr.bf16.gmra.mrb[0].mxu0 %v781
      %v1059 = vpop.f32.mrb[0].mxu0
      %v1060 = vadd.f32 0.0, %v1059
      %v1061 = vpop.f32.mrb[0].mxu0
      %v1062 = vpop.f32.mrb[0].mxu0
      %v1063 = vadd.f32 0.0, %v1062
      %v1064 = vpop.f32.mrb[0].mxu0
      %1065 = vmatprep.mubr.bf16.mxu0 0
      %1066 = vmatmul.mubr.bf16.gmra.mrb[0].mxu0 %v783
      %v1067 = vpop.f32.mrb[0].mxu0
      %v1068 = vadd.f32 0.0, %v1067
      %v1069 = vpop.f32.mrb[0].mxu0
      %v1070 = vpop.f32.mrb[0].mxu0
      %v1071 = vadd.f32 0.0, %v1070
      %v1072 = vpop.f32.mrb[0].mxu0
      %1073 = vmatprep.mubr.bf16.mxu0 0
      %1074 = vmatmul.mubr.bf16.gmra.mrb[0].mxu0 %v785
      %v1075 = vpop.f32.mrb[0].mxu0
      %v1076 = vadd.f32 0.0, %v1075
      %v1077 = vpop.f32.mrb[0].mxu0
      %v1078 = vpop.f32.mrb[0].mxu0
      %v1079 = vadd.f32 0.0, %v1078
      %v1080 = vpop.f32.mrb[0].mxu0
      %1081 = vmatprep.mubr.bf16.mxu0 0
      %1082 = vmatmul.mubr.bf16.gmra.mrb[0].mxu0 %v787
      %v1083 = vpop.f32.mrb[0].mxu0
      %v1084 = vadd.f32 0.0, %v1083
      %v1085 = vpop.f32.mrb[0].mxu0
      %v1086 = vpop.f32.mrb[0].mxu0
      %v1087 = vadd.f32 0.0, %v1086
      %v1088 = vpop.f32.mrb[0].mxu0
      %1089 = vmatprep.mubr.bf16.mxu0 0
      %1090 = vmatmul.mubr.bf16.gmra.mrb[0].mxu0 %v789
      %v1091 = vpop.f32.mrb[0].mxu0
      %v1092 = vadd.f32 0.0, %v1091
      %v1093 = vpop.f32.mrb[0].mxu0
      %v1094 = vpop.f32.mrb[0].mxu0
      %v1095 = vadd.f32 0.0, %v1094
      %v1096 = vpop.f32.mrb[0].mxu0
      %1097 = vmatprep.mubr.bf16.mxu0 0
      %1098 = vmatmul.mubr.bf16.gmra.mrb[0].mxu0 %v791
      %v1099 = vpop.f32.mrb[0].mxu0
      %v1100 = vadd.f32 0.0, %v1099
      %v1101 = vpop.f32.mrb[0].mxu0
      %v1102 = vpop.f32.mrb[0].mxu0
      %v1103 = vadd.f32 0.0, %v1102
      %v1104 = vpop.f32.mrb[0].mxu0
      %1105 = vmatprep.mubr.bf16.mxu0 0
      %1106 = vmatmul.mubr.bf16.gmra.mrb[0].mxu0 %v793
      %v1107 = vpop.f32.mrb[0].mxu0
      %v1108 = vadd.f32 0.0, %v1107
      %v1109 = vpop.f32.mrb[0].mxu0
      %v1110 = vpop.f32.mrb[0].mxu0
      %v1111 = vadd.f32 0.0, %v1110
      %v1112 = vpop.f32.mrb[0].mxu0
      %1113 = vmatprep.mubr.bf16.mxu0 0
      %1114 = vmatmul.mubr.bf16.gmra.mrb[0].mxu0 %v1020
      %v1115 = vpop.f32.mrb[0].mxu0
      %v1116 = vadd.f32 0.0, %v1115
      %v1117 = vpop.f32.mrb[0].mxu0
      %v1118 = vpop.f32.mrb[0].mxu0
      %v1119 = vadd.f32 0.0, %v1118
      %v1120 = vpop.f32.mrb[0].mxu0
      %1121 = vdwg.mxu0
      %v1122 = vadd.f32 %v945, %v1060
      %v1123 = vadd.f32 %v948, %v1063
      %v1124 = vadd.f32 %v953, %v1068
      %v1125 = vadd.f32 %v956, %v1071
      %v1126 = vadd.f32 %v961, %v1076
      %v1127 = vadd.f32 %v964, %v1079
      %v1128 = vadd.f32 %v969, %v1084
      %v1129 = vadd.f32 %v972, %v1087
      %v1130 = vadd.f32 %v977, %v1092
      %v1131 = vadd.f32 %v980, %v1095
      %v1132 = vadd.f32 %v985, %v1100
      %v1133 = vadd.f32 %v988, %v1103
      %v1134 = vadd.f32 %v993, %v1108
      %v1135 = vadd.f32 %v996, %v1111
      %v1136 = vadd.f32 %v1001, %v1116
      %v1137 = vadd.f32 %v1004, %v1119
      %v1138 = vld [vmem:[%s4] sm:$0x1]
      %v1140 = vlaneseq
      %v1141 = vshrl.u32 %v1140, 7
      %v1142 = vsub.s32 0, %v1141
      %v1143 = vrot.slane %v1138, %v1142
      %v1145 = vadd.f32 %v1122, %v1143
      %v1146 = vadd.f32 %v1123, %v1143
      %v1147 = vadd.f32 %v1124, %v1143
      %v1148 = vadd.f32 %v1125, %v1143
      %v1149 = vadd.f32 %v1126, %v1143
      %v1150 = vadd.f32 %v1127, %v1143
      %v1151 = vadd.f32 %v1128, %v1143
      %v1152 = vadd.f32 %v1129, %v1143
      %v1153 = vadd.f32 %v1130, %v1143
      %v1154 = vadd.f32 %v1131, %v1143
      %v1155 = vadd.f32 %v1132, %v1143
      %v1156 = vadd.f32 %v1133, %v1143
      %v1157 = vadd.f32 %v1134, %v1143
      %v1158 = vadd.f32 %v1135, %v1143
      %v1159 = vadd.f32 %v1136, %v1143
      %v1160 = vadd.f32 %v1137, %v1143
      %v1161 = vpack.c.bf16 %v1146, %v1145
      %v1162 = vpack.c.bf16 %v1148, %v1147
      %v1163 = vpack.c.bf16 %v1150, %v1149
      %v1164 = vpack.c.bf16 %v1152, %v1151
      %v1165 = vpack.c.bf16 %v1154, %v1153
      %v1166 = vpack.c.bf16 %v1156, %v1155
      %v1167 = vpack.c.bf16 %v1158, %v1157
      %v1168 = vpack.c.bf16 %v1160, %v1159
      %v1177 = vunpack.c.l.b16 %v1161
      %v1178 = vunpack.c.h.b16 %v1161
      %v1179 = vunpack.c.l.b16 %v1162
      %v1180 = vunpack.c.h.b16 %v1162
      %v1181 = vunpack.c.l.b16 %v1163
      %v1182 = vunpack.c.h.b16 %v1163
      %v1183 = vunpack.c.l.b16 %v1164
      %v1184 = vunpack.c.h.b16 %v1164
      %v1185 = vunpack.c.l.b16 %v1165
      %v1186 = vunpack.c.h.b16 %v1165
      %v1187 = vunpack.c.l.b16 %v1166
      %v1188 = vunpack.c.h.b16 %v1166
      %v1189 = vunpack.c.l.b16 %v1167
      %v1190 = vunpack.c.h.b16 %v1167
      %v1191 = vunpack.c.l.b16 %v1168
      %v1192 = vunpack.c.h.b16 %v1168
      %v1193 = vpack.c.b16 %v1177, %v1177
      %v1194 = vpack.c.b16 %v1178, %v1178
      %v1195 = vpack.c.b16 %v1179, %v1179
      %v1196 = vpack.c.b16 %v1180, %v1180
      %v1197 = vpack.c.b16 %v1181, %v1181
      %v1198 = vpack.c.b16 %v1182, %v1182
      %v1199 = vpack.c.b16 %v1183, %v1183
      %v1200 = vpack.c.b16 %v1184, %v1184
      %v1201 = vpack.c.b16 %v1185, %v1185
      %v1202 = vpack.c.b16 %v1186, %v1186
      %v1203 = vpack.c.b16 %v1187, %v1187
      %v1204 = vpack.c.b16 %v1188, %v1188
      %v1205 = vpack.c.b16 %v1189, %v1189
      %v1206 = vpack.c.b16 %v1190, %v1190
      %v1207 = vpack.c.b16 %v1191, %v1191
      %v1208 = vpack.c.b16 %v1192, %v1192
      %1225 = vst [vmem:[%s431] sm:$0xf] %v1193
      %1226 = vst [vmem:[%s431 + $0x4] sm:$0xf] %v1194
      %1227 = vst [vmem:[%s431 + $0x8] sm:$0xf] %v1195
      %1228 = vst [vmem:[%s431 + $0xc] sm:$0xf] %v1196
      %1229 = vst [vmem:[%s431 + $0x10] sm:$0xf] %v1197
      %1230 = vst [vmem:[%s431 + $0x14] sm:$0xf] %v1198
      %1231 = vst [vmem:[%s431 + $0x18] sm:$0xf] %v1199
      %1232 = vst [vmem:[%s431 + $0x1c] sm:$0xf] %v1200
      %1233 = vst [vmem:[%s431 + $0x20] sm:$0xf] %v1201
      %1234 = vst [vmem:[%s431 + $0x24] sm:$0xf] %v1202
      %1235 = vst [vmem:[%s431 + $0x28] sm:$0xf] %v1203
      %1236 = vst [vmem:[%s431 + $0x2c] sm:$0xf] %v1204
      %1237 = vst [vmem:[%s431 + $0x30] sm:$0xf] %v1205
      %1238 = vst [vmem:[%s431 + $0x34] sm:$0xf] %v1206
      %1239 = vst [vmem:[%s431 + $0x38] sm:$0xf] %v1207
      %1240 = vst [vmem:[%s431 + $0x3c] sm:$0xf] %v1208
      %v1241 = vadd.f32 %v1145, %v1146
      %v1242 = vadd.f32 %v1241, %v1147
      %v1243 = vadd.f32 %v1242, %v1148
      %v1244 = vadd.f32 %v1243, %v1149
      %v1245 = vadd.f32 %v1244, %v1150
      %v1246 = vadd.f32 %v1245, %v1151
      %v1247 = vadd.f32 %v1246, %v1152
      %v1248 = vadd.f32 %v1247, %v1153
      %v1249 = vadd.f32 %v1248, %v1154
      %v1250 = vadd.f32 %v1249, %v1155
      %v1251 = vadd.f32 %v1250, %v1156
      %v1252 = vadd.f32 %v1251, %v1157
      %v1253 = vadd.f32 %v1252, %v1158
      %v1254 = vadd.f32 %v1253, %v1159
      %v1255 = vadd.f32 %v1254, %v1160
      %v1256 = vrot.slane %v1255, 4
      %v1257 = vadd.f32 %v1255, %v1256
      %v1258 = vrot.slane %v1257, 2
      %v1259 = vadd.f32 %v1257, %v1258
      %v1260 = vrot.slane %v1259, 1
      %v1261 = vadd.f32 %v1259, %v1260
      %v1262 = vmul.f32 %v1145, %v1145
      %v1263 = vmul.f32 %v1146, %v1146
      %v1264 = vmul.f32 %v1147, %v1147
      %v1265 = vmul.f32 %v1148, %v1148
      %v1266 = vmul.f32 %v1149, %v1149
      %v1267 = vmul.f32 %v1150, %v1150
      %v1268 = vmul.f32 %v1151, %v1151
      %v1269 = vmul.f32 %v1152, %v1152
      %v1270 = vmul.f32 %v1153, %v1153
      %v1271 = vmul.f32 %v1154, %v1154
      %v1272 = vmul.f32 %v1155, %v1155
      %v1273 = vmul.f32 %v1156, %v1156
      %v1274 = vmul.f32 %v1157, %v1157
      %v1275 = vmul.f32 %v1158, %v1158
      %v1276 = vmul.f32 %v1159, %v1159
      %v1277 = vmul.f32 %v1160, %v1160
      %v1278 = vadd.f32 %v1262, %v1263
      %v1279 = vadd.f32 %v1278, %v1264
      %v1280 = vadd.f32 %v1279, %v1265
      %v1281 = vadd.f32 %v1280, %v1266
      %v1282 = vadd.f32 %v1281, %v1267
      %v1283 = vadd.f32 %v1282, %v1268
      %v1284 = vadd.f32 %v1283, %v1269
      %v1285 = vadd.f32 %v1284, %v1270
      %v1286 = vadd.f32 %v1285, %v1271
      %v1287 = vadd.f32 %v1286, %v1272
      %v1288 = vadd.f32 %v1287, %v1273
      %v1289 = vadd.f32 %v1288, %v1274
      %v1290 = vadd.f32 %v1289, %v1275
      %v1291 = vadd.f32 %v1290, %v1276
      %v1292 = vadd.f32 %v1291, %v1277
      %v1293 = vrot.slane %v1292, 4
      %v1294 = vadd.f32 %v1292, %v1293
      %v1295 = vrot.slane %v1294, 2
      %v1296 = vadd.f32 %v1294, %v1295
      %v1297 = vrot.slane %v1296, 1
      %v1298 = vadd.f32 %v1296, %v1297
      %vm1299 = vcmask 1040384
      %v1300 = vsel %vm1299, %v1261, %v1298
      %1301 = vst [vmem:[%s440] sm:$0x3] %v1300
      %s1302 = smul.u32 8, %s23
      %p1303 = scmp.lt.s32.totalorder %s22, 1
      %s1304 = scalar_select %p1303, %s22, 1
      %p1305 = scmp.lt.s32.totalorder %s1302, 15
      %s1306 = scalar_select %p1305, %s1302, 15
      %s1307 = smul.addr %s1306, 2
      %s1308 = smul.addr %s1304, 32
      %s1309 = sadd.s32 %s1307, %s1308
      %s1310 = smul.addr %s1309, 4
      %s1311 = scalar_lea.vmem %s5, %s1310
      %p1312 = scmp.lt.s32.totalorder %s22, 1
      %s1313 = scalar_select %p1312, %s22, 1
      %p1314 = scmp.lt.s32.totalorder %s23, 1
      %s1315 = scalar_select %p1314, %s23, 1
      %s1316 = smul.addr %s1313, 2
      %s1317 = sadd.s32 %s1315, %s1316
      %s1318 = smul.addr %s1317, 2
      %s1319 = scalar_lea.vmem %s6, %s1318
      // Predicated region
      $region41: #{conv_block_forward.2} parent=39 // pred_check
        %p1320 = pneg %p192
      $region42: #{conv_block_forward.2} parent=39 // pred_check_branch
        %1322 = sbr.rel (%p1320) target = $region44
      $region43: #{conv_block_forward.2} parent=39 // pred_region
        %s1323 = smul.u32 8, %s23
      $region44: #{conv_block_forward.2} parent=39 // pred_fallthru
        _
      // Predicated region
      $region45: #{conv_block_forward.2} parent=39 // pred_check
        %p1324 = pneg %p220
      $region46: #{conv_block_forward.2} parent=39 // pred_check_branch
        %1326 = sbr.rel (%p1324) target = $region48
      $region47: #{conv_block_forward.2} parent=39 // pred_region
        _
      $region48: #{conv_block_forward.2} parent=39 // pred_fallthru
        _
    $region40: #{conv_block_forward.2} parent=5 // pred_fallthru
      _
    %p1327 = scmp.le.s32.totalorder 2, %s13
    // Predicated region
    $region49: #{conv_block_forward.2} parent=5 // pred_check
      %p1328 = pneg %p1327
    $region50: #{conv_block_forward.2} parent=5 // pred_check_branch
      %1330 = sbr.rel (%p1328) target = $region52
    $region51: #{conv_block_forward.2} parent=5 // pred_region
      %s1331 = ssub.s32 %s13, 2
      // Predicated region
      $region53: #{conv_block_forward.2} parent=51 // pred_check
        %p1332 = pneg %p198
      $region54: #{conv_block_forward.2} parent=51 // pred_check_branch
        %1334 = sbr.rel (%p1332) target = $region56
      $region55: #{conv_block_forward.2} parent=51 // pred_region
        %s1335 = smul.u32 8, %s25
        %p1336 = scmp.lt.s32.totalorder %s24, 1
        %s1337 = scalar_select %p1336, %s24, 1
        %p1338 = scmp.lt.s32.totalorder %s1335, 15
        %s1339 = scalar_select %p1338, %s1335, 15
        %s1340 = smul.addr %s1339, 2
        %s1341 = smul.addr %s1337, 32
        %s1342 = sadd.s32 %s1340, %s1341
        %s1343 = smul.addr %s1342, 4
        %s1344 = scalar_lea.vmem %s5, %s1343
      $region56: #{conv_block_forward.2} parent=51 // pred_fallthru
        _
      // Predicated region
      $region57: #{conv_block_forward.2} parent=51 // pred_check
        %p1345 = pneg %p226
      $region58: #{conv_block_forward.2} parent=51 // pred_check_branch
        %1347 = sbr.rel (%p1345) target = $region60
      $region59: #{conv_block_forward.2} parent=51 // pred_region
        %p1348 = scmp.lt.s32.totalorder %s24, 1
        %s1349 = scalar_select %p1348, %s24, 1
        %p1350 = scmp.lt.s32.totalorder %s25, 1
        %s1351 = scalar_select %p1350, %s25, 1
        %s1352 = smul.addr %s1349, 2
        %s1353 = sadd.s32 %s1351, %s1352
        %s1354 = smul.addr %s1353, 2
        %s1355 = scalar_lea.vmem %s6, %s1354
      $region60: #{conv_block_forward.2} parent=51 // pred_fallthru
        _
    $region52: #{conv_block_forward.2} parent=5 // pred_fallthru
      _
  $region6: #{conv_block_forward.2} parent=0 // loop_footer
    %s17 = sadd.s32 1, %s13
  $region7: #{conv_block_forward.2} parent=0 // loop_footer_branch
    %12 = sbr.rel target = $region3
  $region8: #{conv_block_forward.2} parent=0 // loop_exit
    _

// kernel: conv_block_forward.3
$region0: #{conv_block_forward.3}
  #allocation0 [shape = 'u32[]', space=smem, size = 0x4, offset = 0x4, fixed_abs, tag = 'smem constant byte address 0x4 - core index']
  #allocation1 [shape = 'u32[144,128]{1,0:T(1,128)}', space=vmem, size = 0x12000, scoped, tag = 'internal scratch']
  %s0 = inlined_call_operand.vmem [shape: bf16[2,16,16,128], index: 0, kind: input, shape index: {}, may-alias: {0,1,2}]
  %s1 = inlined_call_operand.vmem [shape: bf16[2,16,16,128], index: 1, kind: input, shape index: {}, may-alias: {0,1,2}]
  %s2 = inlined_call_operand.vmem [shape: bf16[2,16,16,128], index: 2, kind: input, shape index: {}, may-alias: {0,1,2}]
  %s3 = inlined_call_operand.vmem [shape: f32[1,128], index: 3, kind: input, shape index: {}]
  %s4 = inlined_call_operand.vmem [shape: f32[1,128], index: 4, kind: input, shape index: {}]
  %s5 = inlined_call_operand.vmem [shape: bf16[3,384,128], index: 5, kind: input, shape index: {}]
  %s6 = inlined_call_operand.vmem [shape: f32[1,128], index: 6, kind: input, shape index: {}]
  %s7 = inlined_call_operand.vmem [shape: f32[2,16,16,128], index: 7, kind: output, shape index: {}]
  %s8 = sld [smem:[#allocation0]]
  $region61: #{conv_block_forward.3} parent=0
    _
  %s10 = ssub.s32 1, %s8
  %s11 = scalar_select 0, %s10, %s8
  loop: start=0, step=1, limit=6
  $region2: #{conv_block_forward.3} parent=0 // loop_pre_header
    _
  $region3: #{conv_block_forward.3} parent=0 // loop_header
    %s13 = sphi 0, %s17
    %p14 = scmp.ge.s32.totalorder %s13, 6
    %s20 = sphi 0, %s32
    %s21 = sphi 0, %s28
    %s22 = sphi 0, %s20
    %s23 = sphi 0, %s21
    %s24 = sphi 0, %s22
    %s25 = sphi 0, %s23
    %s45 = sphi 0, %s47
    %s48 = sphi 0, %s45
    %s49 = sphi 0, %s48
    %s65 = sphi 0, %s49
    %s73 = sphi 0, %s75
    %s76 = sphi 0, %s73
    %s77 = sphi 0, %s76
    %s93 = sphi 0, %s77
    %s109 = sphi 0, %s111
    %s112 = sphi 0, %s109
    %s113 = sphi 0, %s112
    %s129 = sphi 0, %s113
    %s133 = sphi 0, %s133
    %s135 = sphi 0, %s133
    %s136 = sphi 0, %s135
    %s150 = sphi 0, %s136
    %s154 = sphi 0, %s154
    %s156 = sphi 0, %s154
    %s157 = sphi 0, %s156
    %s171 = sphi 0, %s157
    %s175 = sphi 0, %s175
    %s177 = sphi 0, %s175
    %s178 = sphi 0, %s177
    %s192 = sphi 0, %s178
    %s196 = sphi 0, %s196
    %s198 = sphi 0, %s196
    %s199 = sphi 0, %s198
    %s213 = sphi 0, %s199
    %s221 = sphi 0, %s223
    %s224 = sphi 0, %s221
    %s225 = sphi 0, %s224
    %s241 = sphi 0, %s225
  $region4: #{conv_block_forward.3} parent=0 // loop_header_branch
    %16 = sbr.rel (%p14) target = $region8
  $region5: #{conv_block_forward.3} parent=0 // loop_body
    %s18 = ssub.s32 %s13, 1
    %s19 = ssub.s32 %s13, 2
    %s26 = sadd.s32 1, %s21
    %p27 = scmp.ge.s32.totalorder %s26, 2
    %s28 = scalar_select %p27, 0, %s26
    %s29 = sadd.s32 1, %s20
    %s30 = scalar_select %p27, %s29, %s20
    %p31 = scmp.ge.s32.totalorder %s30, 2
    %s32 = scalar_select %p31, 0, %s30
    %s33 = smul.u32 %s21, 8
    %s34 = ssub.s32 %s33, 1
    %p35 = scmp.gt.s32.totalorder %s34, 0
    %s36 = scalar_select %p35, %s34, 0
    %s37 = smul.u32 %s28, 8
    %s38 = ssub.s32 %s37, 1
    %p39 = scmp.gt.s32.totalorder %s38, 0
    %s40 = scalar_select %p39, %s38, 0
    %s41 = ssub.s32 %s20, %s32
    %s42 = ssub.s32 %s36, %s40
    %s43 = sor.u32 %s41, %s42
    %p44 = scmp.eq.s32.totalorder %s43, 0
    %s46 = sadd.s32 %s45, 1
    %s47 = scalar_select %p44, %s45, %s46
    %p50 = pneg %p44
    %p51 = scmp.eq.s32.totalorder %s13, 3
    %p52 = por %p50, %p51
    %p53 = scmp.ne.s32.totalorder %s45, %s48
    %p54 = scmp.eq.s32.totalorder %s13, 0
    %p55 = por %p53, %p54
    %p56 = scmp.ne.s32.totalorder %s45, %s48
    %p57 = scmp.eq.s32.totalorder %s18, 3
    %p58 = por %p56, %p57
    %p59 = scmp.ne.s32.totalorder %s48, %s49
    %p60 = scmp.eq.s32.totalorder %s18, 0
    %p61 = por %p59, %p60
    %p62 = scmp.ne.s32.totalorder %s48, %s49
    %p63 = scmp.eq.s32.totalorder %s19, 3
    %p64 = por %p62, %p63
    %p66 = scmp.ne.s32.totalorder %s49, %s65
    %p67 = scmp.eq.s32.totalorder %s19, 0
    %p68 = por %p66, %p67
    %s69 = ssub.s32 %s20, %s32
    %s70 = ssub.s32 %s21, %s28
    %s71 = sor.u32 %s69, %s70
    %p72 = scmp.eq.s32.totalorder %s71, 0
    %s74 = sadd.s32 %s73, 1
    %s75 = scalar_select %p72, %s73, %s74
    %p78 = pneg %p72
    %p79 = scmp.eq.s32.totalorder %s13, 3
    %p80 = por %p78, %p79
    %p81 = scmp.ne.s32.totalorder %s73, %s76
    %p82 = scmp.eq.s32.totalorder %s13, 0
    %p83 = por %p81, %p82
    %p84 = scmp.ne.s32.totalorder %s73, %s76
    %p85 = scmp.eq.s32.totalorder %s18, 3
    %p86 = por %p84, %p85
    %p87 = scmp.ne.s32.totalorder %s76, %s77
    %p88 = scmp.eq.s32.totalorder %s18, 0
    %p89 = por %p87, %p88
    %p90 = scmp.ne.s32.totalorder %s76, %s77
    %p91 = scmp.eq.s32.totalorder %s19, 3
    %p92 = por %p90, %p91
    %p94 = scmp.ne.s32.totalorder %s77, %s93
    %p95 = scmp.eq.s32.totalorder %s19, 0
    %p96 = por %p94, %p95
    %s97 = sadd.s32 %s21, 1
    %s98 = smul.u32 %s97, 8
    %p99 = scmp.lt.s32.totalorder %s98, 15
    %s100 = scalar_select %p99, %s98, 15
    %s101 = sadd.s32 %s28, 1
    %s102 = smul.u32 %s101, 8
    %p103 = scmp.lt.s32.totalorder %s102, 15
    %s104 = scalar_select %p103, %s102, 15
    %s105 = ssub.s32 %s20, %s32
    %s106 = ssub.s32 %s100, %s104
    %s107 = sor.u32 %s105, %s106
    %p108 = scmp.eq.s32.totalorder %s107, 0
    %s110 = sadd.s32 %s109, 1
    %s111 = scalar_select %p108, %s109, %s110
    %p114 = pneg %p108
    %p115 = scmp.eq.s32.totalorder %s13, 3
    %p116 = por %p114, %p115
    %p117 = scmp.ne.s32.totalorder %s109, %s112
    %p118 = scmp.eq.s32.totalorder %s13, 0
    %p119 = por %p117, %p118
    %p120 = scmp.ne.s32.totalorder %s109, %s112
    %p121 = scmp.eq.s32.totalorder %s18, 3
    %p122 = por %p120, %p121
    %p123 = scmp.ne.s32.totalorder %s112, %s113
    %p124 = scmp.eq.s32.totalorder %s18, 0
    %p125 = por %p123, %p124
    %p126 = scmp.ne.s32.totalorder %s112, %s113
    %p127 = scmp.eq.s32.totalorder %s19, 3
    %p128 = por %p126, %p127
    %p130 = scmp.ne.s32.totalorder %s113, %s129
    %p131 = scmp.eq.s32.totalorder %s19, 0
    %p132 = por %p130, %p131
    %s134 = sadd.s32 %s133, 1
    %p137 = scmp.eq.s32.totalorder %s13, 3
    %p138 = scmp.ne.s32.totalorder %s133, %s135
    %p139 = scmp.eq.s32.totalorder %s13, 0
    %p140 = por %p138, %p139
    %p141 = scmp.ne.s32.totalorder %s133, %s135
    %p142 = scmp.eq.s32.totalorder %s18, 3
    %p143 = por %p141, %p142
    %p144 = scmp.ne.s32.totalorder %s135, %s136
    %p145 = scmp.eq.s32.totalorder %s18, 0
    %p146 = por %p144, %p145
    %p147 = scmp.ne.s32.totalorder %s135, %s136
    %p148 = scmp.eq.s32.totalorder %s19, 3
    %p149 = por %p147, %p148
    %p151 = scmp.ne.s32.totalorder %s136, %s150
    %p152 = scmp.eq.s32.totalorder %s19, 0
    %p153 = por %p151, %p152
    %s155 = sadd.s32 %s154, 1
    %p158 = scmp.eq.s32.totalorder %s13, 3
    %p159 = scmp.ne.s32.totalorder %s154, %s156
    %p160 = scmp.eq.s32.totalorder %s13, 0
    %p161 = por %p159, %p160
    %p162 = scmp.ne.s32.totalorder %s154, %s156
    %p163 = scmp.eq.s32.totalorder %s18, 3
    %p164 = por %p162, %p163
    %p165 = scmp.ne.s32.totalorder %s156, %s157
    %p166 = scmp.eq.s32.totalorder %s18, 0
    %p167 = por %p165, %p166
    %p168 = scmp.ne.s32.totalorder %s156, %s157
    %p169 = scmp.eq.s32.totalorder %s19, 3
    %p170 = por %p168, %p169
    %p172 = scmp.ne.s32.totalorder %s157, %s171
    %p173 = scmp.eq.s32.totalorder %s19, 0
    %p174 = por %p172, %p173
    %s176 = sadd.s32 %s175, 1
    %p179 = scmp.eq.s32.totalorder %s13, 3
    %p180 = scmp.ne.s32.totalorder %s175, %s177
    %p181 = scmp.eq.s32.totalorder %s13, 0
    %p182 = por %p180, %p181
    %p183 = scmp.ne.s32.totalorder %s175, %s177
    %p184 = scmp.eq.s32.totalorder %s18, 3
    %p185 = por %p183, %p184
    %p186 = scmp.ne.s32.totalorder %s177, %s178
    %p187 = scmp.eq.s32.totalorder %s18, 0
    %p188 = por %p186, %p187
    %p189 = scmp.ne.s32.totalorder %s177, %s178
    %p190 = scmp.eq.s32.totalorder %s19, 3
    %p191 = por %p189, %p190
    %p193 = scmp.ne.s32.totalorder %s178, %s192
    %p194 = scmp.eq.s32.totalorder %s19, 0
    %p195 = por %p193, %p194
    %s197 = sadd.s32 %s196, 1
    %p200 = scmp.eq.s32.totalorder %s13, 3
    %p201 = scmp.ne.s32.totalorder %s196, %s198
    %p202 = scmp.eq.s32.totalorder %s13, 0
    %p203 = por %p201, %p202
    %p204 = scmp.ne.s32.totalorder %s196, %s198
    %p205 = scmp.eq.s32.totalorder %s18, 3
    %p206 = por %p204, %p205
    %p207 = scmp.ne.s32.totalorder %s198, %s199
    %p208 = scmp.eq.s32.totalorder %s18, 0
    %p209 = por %p207, %p208
    %p210 = scmp.ne.s32.totalorder %s198, %s199
    %p211 = scmp.eq.s32.totalorder %s19, 3
    %p212 = por %p210, %p211
    %p214 = scmp.ne.s32.totalorder %s199, %s213
    %p215 = scmp.eq.s32.totalorder %s19, 0
    %p216 = por %p214, %p215
    %s217 = ssub.s32 %s20, %s32
    %s218 = ssub.s32 %s21, %s28
    %s219 = sor.u32 %s217, %s218
    %p220 = scmp.eq.s32.totalorder %s219, 0
    %s222 = sadd.s32 %s221, 1
    %s223 = scalar_select %p220, %s221, %s222
    %p226 = pneg %p220
    %p227 = scmp.eq.s32.totalorder %s13, 3
    %p228 = por %p226, %p227
    %p229 = scmp.ne.s32.totalorder %s221, %s224
    %p230 = scmp.eq.s32.totalorder %s13, 0
    %p231 = por %p229, %p230
    %p232 = scmp.ne.s32.totalorder %s221, %s224
    %p233 = scmp.eq.s32.totalorder %s18, 3
    %p234 = por %p232, %p233
    %p235 = scmp.ne.s32.totalorder %s224, %s225
    %p236 = scmp.eq.s32.totalorder %s18, 0
    %p237 = por %p235, %p236
    %p238 = scmp.ne.s32.totalorder %s224, %s225
    %p239 = scmp.eq.s32.totalorder %s19, 3
    %p240 = por %p238, %p239
    %p242 = scmp.ne.s32.totalorder %s225, %s241
    %p243 = scmp.eq.s32.totalorder %s19, 0
    %p244 = por %p242, %p243
    %p245 = scmp.le.s32.totalorder 1, %s13
    %p246 = scmp.lt.s32.totalorder %s13, 5
    %p247 = pnand %p245, %p246
    %p248 = pneg %p247
    // Predicated region
    $region9: #{conv_block_forward.3} parent=5 // pred_check
      _
    $region10: #{conv_block_forward.3} parent=5 // pred_check_branch
      %250 = sbr.rel (%p247) target = $region12
    $region11: #{conv_block_forward.3} parent=5 // pred_region
      %s251 = ssub.s32 %s13, 1
      // Predicated region
      $region13: #{conv_block_forward.3} parent=11 // pred_check
        %p252 = pneg %p146
      $region14: #{conv_block_forward.3} parent=11 // pred_check_branch
        %254 = sbr.rel (%p252) target = $region16
      $region15: #{conv_block_forward.3} parent=11 // pred_region
        _
      $region16: #{conv_block_forward.3} parent=11 // pred_fallthru
        _
      // Predicated region
      $region17: #{conv_block_forward.3} parent=11 // pred_check
        %p255 = pneg %p167
      $region18: #{conv_block_forward.3} parent=11 // pred_check_branch
        %257 = sbr.rel (%p255) target = $region20
      $region19: #{conv_block_forward.3} parent=11 // pred_region
        _
      $region20: #{conv_block_forward.3} parent=11 // pred_fallthru
        _
      // Predicated region
      $region21: #{conv_block_forward.3} parent=11 // pred_check
        %p258 = pneg %p188
      $region22: #{conv_block_forward.3} parent=11 // pred_check_branch
        %260 = sbr.rel (%p258) target = $region24
      $region23: #{conv_block_forward.3} parent=11 // pred_region
        _
      $region24: #{conv_block_forward.3} parent=11 // pred_fallthru
        _
      // Predicated region
      $region25: #{conv_block_forward.3} parent=11 // pred_check
        %p261 = pneg %p209
      $region26: #{conv_block_forward.3} parent=11 // pred_check_branch
        %263 = sbr.rel (%p261) target = $region28
      $region27: #{conv_block_forward.3} parent=11 // pred_region
        _
      $region28: #{conv_block_forward.3} parent=11 // pred_fallthru
        _
    $region12: #{conv_block_forward.3} parent=5 // pred_fallthru
      _
    %p264 = scmp.lt.s32.totalorder %s13, 4
    // Predicated region
    $region29: #{conv_block_forward.3} parent=5 // pred_check
      %p265 = pneg %p264
    $region30: #{conv_block_forward.3} parent=5 // pred_check_branch
      %267 = sbr.rel (%p265) target = $region32
    $region31: #{conv_block_forward.3} parent=5 // pred_region
      // Predicated region
      $region33: #{conv_block_forward.3} parent=31 // pred_check
        %p268 = pneg %p55
      $region34: #{conv_block_forward.3} parent=31 // pred_check_branch
        %270 = sbr.rel (%p268) target = $region36
      $region35: #{conv_block_forward.3} parent=31 // pred_region
        %s271 = smul.u32 %s21, 8
        %s272 = ssub.s32 %s271, 1
        %p273 = scmp.gt.s32.totalorder %s272, 0
        %s274 = scalar_select %p273, %s272, 0
        %p275 = scmp.lt.s32.totalorder %s20, 1
        %s276 = scalar_select %p275, %s20, 1
        %p277 = scmp.lt.s32.totalorder %s274, 15
        %s278 = scalar_select %p277, %s274, 15
        %s279 = smul.addr %s278, 2
        %s280 = smul.addr %s276, 32
        %s281 = sadd.s32 %s279, %s280
        %s282 = smul.addr %s281, 4
        %s283 = scalar_lea.vmem %s0, %s282
        %s284 = smul.u32 %s21, 8
        %s285 = ssub.s32 %s284, 1
        %p286 = scmp.gt.s32.totalorder %s285, 0
        %s287 = scalar_select %p286, %s285, 0
      $region36: #{conv_block_forward.3} parent=31 // pred_fallthru
        _
      // Predicated region
      $region37: #{conv_block_forward.3} parent=31 // pred_check
        %p288 = pneg %p83
      $region38: #{conv_block_forward.3} parent=31 // pred_check_branch
        %290 = sbr.rel (%p288) target = $region40
      $region39: #{conv_block_forward.3} parent=31 // pred_region
        %s291 = smul.u32 8, %s21
        %p292 = scmp.lt.s32.totalorder %s20, 1
        %s293 = scalar_select %p292, %s20, 1
        %p294 = scmp.lt.s32.totalorder %s291, 15
        %s295 = scalar_select %p294, %s291, 15
        %s296 = smul.addr %s295, 2
        %s297 = smul.addr %s293, 32
        %s298 = sadd.s32 %s296, %s297
        %s299 = smul.addr %s298, 4
        %s300 = scalar_lea.vmem %s1, %s299
        %s301 = smul.u32 8, %s21
      $region40: #{conv_block_forward.3} parent=31 // pred_fallthru
        _
      // Predicated region
      $region41: #{conv_block_forward.3} parent=31 // pred_check
        %p302 = pneg %p119
      $region42: #{conv_block_forward.3} parent=31 // pred_check_branch
        %304 = sbr.rel (%p302) target = $region44
      $region43: #{conv_block_forward.3} parent=31 // pred_region
        %s305 = sadd.s32 %s21, 1
        %s306 = smul.u32 %s305, 8
        %p307 = scmp.lt.s32.totalorder %s306, 15
        %s308 = scalar_select %p307, %s306, 15
        %p309 = scmp.lt.s32.totalorder %s20, 1
        %s310 = scalar_select %p309, %s20, 1
        %p311 = scmp.lt.s32.totalorder %s308, 15
        %s312 = scalar_select %p311, %s308, 15
        %s313 = smul.addr %s312, 2
        %s314 = smul.addr %s310, 32
        %s315 = sadd.s32 %s313, %s314
        %s316 = smul.addr %s315, 4
        %s317 = scalar_lea.vmem %s2, %s316
        %s318 = sadd.s32 %s21, 1
        %s319 = smul.u32 %s318, 8
        %p320 = scmp.lt.s32.totalorder %s319, 15
        %s321 = scalar_select %p320, %s319, 15
      $region44: #{conv_block_forward.3} parent=31 // pred_fallthru
        _
    $region32: #{conv_block_forward.3} parent=5 // pred_fallthru
      _
    %p322 = scmp.le.s32.totalorder 1, %s13
    %p323 = scmp.lt.s32.totalorder %s13, 5
    %p324 = pnand %p322, %p323
    %p325 = pneg %p324
    // Predicated region
    $region45: #{conv_block_forward.3} parent=5 // pred_check
      _
    $region46: #{conv_block_forward.3} parent=5 // pred_check_branch
      %327 = sbr.rel (%p324) target = $region48
    $region47: #{conv_block_forward.3} parent=5 // pred_region
      %s328 = ssub.s32 %s13, 1
      %s329 = smul.u32 %s23, 8
      %s330 = ssub.s32 %s329, 1
      %p331 = scmp.gt.s32.totalorder %s330, 0
      %s332 = scalar_select %p331, %s330, 0
      %p333 = scmp.lt.s32.totalorder %s22, 1
      %s334 = scalar_select %p333, %s22, 1
      %p335 = scmp.lt.s32.totalorder %s332, 15
      %s336 = scalar_select %p335, %s332, 15
      %s337 = smul.addr %s336, 2
      %s338 = smul.addr %s334, 32
      %s339 = sadd.s32 %s337, %s338
      %s340 = smul.addr %s339, 4
      %s341 = scalar_lea.vmem %s0, %s340
      %p342 = pneg %p61
      %p343 = pneg %p58
      %s344 = smul.u32 8, %s23
      %p345 = scmp.lt.s32.totalorder %s22, 1
      %s346 = scalar_select %p345, %s22, 1
      %p347 = scmp.lt.s32.totalorder %s344, 15
      %s348 = scalar_select %p347, %s344, 15
      %s349 = smul.addr %s348, 2
      %s350 = smul.addr %s346, 32
      %s351 = sadd.s32 %s349, %s350
      %s352 = smul.addr %s351, 4
      %s353 = scalar_lea.vmem %s1, %s352
      %p354 = pneg %p89
      %p355 = pneg %p86
      %s356 = sadd.s32 %s23, 1
      %s357 = smul.u32 %s356, 8
      %p358 = scmp.lt.s32.totalorder %s357, 15
      %s359 = scalar_select %p358, %s357, 15
      %p360 = scmp.lt.s32.totalorder %s22, 1
      %s361 = scalar_select %p360, %s22, 1
      %p362 = scmp.lt.s32.totalorder %s359, 15
      %s363 = scalar_select %p362, %s359, 15
      %s364 = smul.addr %s363, 2
      %s365 = smul.addr %s361, 32
      %s366 = sadd.s32 %s364, %s365
      %s367 = smul.addr %s366, 4
      %s368 = scalar_lea.vmem %s2, %s367
      %p369 = pneg %p125
      %p370 = pneg %p122
      %p371 = pneg %p146
      %p372 = pneg %p143
      %p373 = pneg %p167
      %p374 = pneg %p164
      %p375 = pneg %p188
      %p376 = pneg %p185
      %p377 = pneg %p209
      %p378 = pneg %p206
      %p379 = pneg %p237
      %p380 = pneg %p234
      %s381 = smul.u32 8, %s23
      %p382 = scmp.lt.s32.totalorder %s22, 1
      %s383 = scalar_select %p382, %s22, 1
      %p384 = scmp.lt.s32.totalorder %s381, 15
      %s385 = scalar_select %p384, %s381, 15
      %s386 = smul.addr %s385, 2
      %s387 = smul.addr %s383, 32
      %s388 = sadd.s32 %s386, %s387
      %s389 = smul.addr %s388, 8
      %s390 = scalar_lea.vmem %s7, %s389
      %s391 = smul.u32 %s23, 8
      %s392 = ssub.s32 %s391, 1
      %p393 = scmp.gt.s32.totalorder %s392, 0
      %s394 = scalar_select %p393, %s392, 0
      %p395 = scmp.lt.s32.totalorder %s22, 1
      %s396 = scalar_select %p395, %s22, 1
      %p397 = scmp.lt.s32.totalorder %s394, 15
      %s398 = scalar_select %p397, %s394, 15
      %s399 = smul.addr %s398, 2
      %s400 = smul.addr %s396, 32
      %s401 = sadd.s32 %s399, %s400
      %s402 = smul.addr %s401, 4
      %s403 = scalar_lea.vmem %s0, %s402
      %s404 = smul.u32 %s23, 8
      %s405 = ssub.s32 %s404, 1
      %p406 = scmp.gt.s32.totalorder %s405, 0
      %s407 = scalar_select %p406, %s405, 0
      %s408 = smul.u32 8, %s23
      %p409 = scmp.lt.s32.totalorder %s22, 1
      %s410 = scalar_select %p409, %s22, 1
      %p411 = scmp.lt.s32.totalorder %s408, 15
      %s412 = scalar_select %p411, %s408, 15
      %s413 = smul.addr %s412, 2
      %s414 = smul.addr %s410, 32
      %s415 = sadd.s32 %s413, %s414
      %s416 = smul.addr %s415, 4
      %s417 = scalar_lea.vmem %s1, %s416
      %s418 = smul.u32 8, %s23
      %s419 = sadd.s32 %s23, 1
      %s420 = smul.u32 %s419, 8
      %p421 = scmp.lt.s32.totalorder %s420, 15
      %s422 = scalar_select %p421, %s420, 15
      %p423 = scmp.lt.s32.totalorder %s22, 1
      %s424 = scalar_select %p423, %s22, 1
      %p425 = scmp.lt.s32.totalorder %s422, 15
      %s426 = scalar_select %p425, %s422, 15
      %s427 = smul.addr %s426, 2
      %s428 = smul.addr %s424, 32
      %s429 = sadd.s32 %s427, %s428
      %s430 = smul.addr %s429, 4
      %s431 = scalar_lea.vmem %s2, %s430
      %s432 = sadd.s32 %s23, 1
      %s433 = smul.u32 %s432, 8
      %p434 = scmp.lt.s32.totalorder %s433, 15
      %s435 = scalar_select %p434, %s433, 15
      %s436 = smul.u32 8, %s23
      %p437 = scmp.lt.s32.totalorder %s22, 1
      %s438 = scalar_select %p437, %s22, 1
      %p439 = scmp.lt.s32.totalorder %s436, 15
      %s440 = scalar_select %p439, %s436, 15
      %s441 = smul.addr %s440, 2
      %s442 = smul.addr %s438, 32
      %s443 = sadd.s32 %s441, %s442
      %s444 = smul.addr %s443, 8
      %s445 = scalar_lea.vmem %s7, %s444
      %s446 = smul.u32 8, %s23
      %v448 = vld [vmem:[%s3] sm:$0x1]
      %v449 = vld [vmem:[%s4] sm:$0x1]
      %v450 = vld [vmem:[%s403] sm:$0xf]
      %v451 = vld [vmem:[%s403 + $0x4] sm:$0xf]
      %v452 = vunpack.c.l.bf16 %v450
      %v453 = vunpack.c.l.bf16 %v451
      %v455 = vlaneseq
      %v456 = vshrl.u32 %v455, 7
      %v457 = vsub.s32 0, %v456
      %v458 = vrot.slane %v448, %v457
      %v460 = vmul.f32 %v452, %v458
      %v461 = vmul.f32 %v453, %v458
      %v463 = vlaneseq
      %v464 = vshrl.u32 %v463, 7
      %v465 = vsub.s32 0, %v464
      %v466 = vrot.slane %v449, %v465
      %v468 = vadd.f32 %v460, %v466
      %v469 = vadd.f32 %v461, %v466
      %v470 = vmax.f32 %v468, 0.0
      %v471 = vmax.f32 %v469, 0.0
      %v472 = vpack.c.bf16 %v471, %v470
      %v473 = vld [vmem:[%s431] sm:$0xf]
      %v474 = vld [vmem:[%s431 + $0x4] sm:$0xf]
      %v475 = vunpack.c.l.bf16 %v473
      %v476 = vunpack.c.l.bf16 %v474
      %v477 = vmul.f32 %v475, %v458
      %v478 = vmul.f32 %v476, %v458
      %v479 = vadd.f32 %v477, %v466
      %v480 = vadd.f32 %v478, %v466
      %v481 = vmax.f32 %v479, 0.0
      %v482 = vmax.f32 %v480, 0.0
      %v483 = vpack.c.bf16 %v482, %v481
      %p484 = scmp.eq.s32.totalorder %s23, 0
      %s485 = scalar_select %p484, 1, 0
      %v486 = vstv %s485
      %vm487 = vcmp.eq.s32.totalorder %v486, 1
      %v488 = vsel %vm487, 0, %v472
      %p489 = scmp.eq.s32.totalorder %s23, 1
      %s490 = scalar_select %p489, 1, 0
      %v491 = vstv %s490
      %vm492 = vcmp.eq.s32.totalorder %v491, 1
      %v493 = vsel %vm492, 0, %v483
      %v494 = vld [vmem:[%s417] sm:$0xf]
      %v495 = vld [vmem:[%s417 + $0x4] sm:$0xf]
      %v496 = vld [vmem:[%s417 + $0x8] sm:$0xf]
      %v497 = vld [vmem:[%s417 + $0xc] sm:$0xf]
      %v498 = vld [vmem:[%s417 + $0x10] sm:$0xf]
      %v499 = vld [vmem:[%s417 + $0x14] sm:$0xf]
      %v500 = vld [vmem:[%s417 + $0x18] sm:$0xf]
      %v501 = vld [vmem:[%s417 + $0x1c] sm:$0xf]
      %v502 = vld [vmem:[%s417 + $0x20] sm:$0xf]
      %v503 = vld [vmem:[%s417 + $0x24] sm:$0xf]
      %v504 = vld [vmem:[%s417 + $0x28] sm:$0xf]
      %v505 = vld [vmem:[%s417 + $0x2c] sm:$0xf]
      %v506 = vld [vmem:[%s417 + $0x30] sm:$0xf]
      %v507 = vld [vmem:[%s417 + $0x34] sm:$0xf]
      %v508 = vld [vmem:[%s417 + $0x38] sm:$0xf]
      %v509 = vld [vmem:[%s417 + $0x3c] sm:$0xf]
      %v510 = vunpack.c.l.bf16 %v494
      %v511 = vunpack.c.l.bf16 %v495
      %v512 = vunpack.c.l.bf16 %v496
      %v513 = vunpack.c.l.bf16 %v497
      %v514 = vunpack.c.l.bf16 %v498
      %v515 = vunpack.c.l.bf16 %v499
      %v516 = vunpack.c.l.bf16 %v500
      %v517 = vunpack.c.l.bf16 %v501
      %v518 = vunpack.c.l.bf16 %v502
      %v519 = vunpack.c.l.bf16 %v503
      %v520 = vunpack.c.l.bf16 %v504
      %v521 = vunpack.c.l.bf16 %v505
      %v522 = vunpack.c.l.bf16 %v506
      %v523 = vunpack.c.l.bf16 %v507
      %v524 = vunpack.c.l.bf16 %v508
      %v525 = vunpack.c.l.bf16 %v509
      %v526 = vmul.f32 %v510, %v458
      %v527 = vmul.f32 %v511, %v458
      %v528 = vmul.f32 %v512, %v458
      %v529 = vmul.f32 %v513, %v458
      %v530 = vmul.f32 %v514, %v458
      %v531 = vmul.f32 %v515, %v458
      %v532 = vmul.f32 %v516, %v458
      %v533 = vmul.f32 %v517, %v458
      %v534 = vmul.f32 %v518, %v458
      %v535 = vmul.f32 %v519, %v458
      %v536 = vmul.f32 %v520, %v458
      %v537 = vmul.f32 %v521, %v458
      %v538 = vmul.f32 %v522, %v458
      %v539 = vmul.f32 %v523, %v458
      %v540 = vmul.f32 %v524, %v458
      %v541 = vmul.f32 %v525, %v458
      %v542 = vadd.f32 %v526, %v466
      %v543 = vadd.f32 %v527, %v466
      %v544 = vadd.f32 %v528, %v466
      %v545 = vadd.f32 %v529, %v466
      %v546 = vadd.f32 %v530, %v466
      %v547 = vadd.f32 %v531, %v466
      %v548 = vadd.f32 %v532, %v466
      %v549 = vadd.f32 %v533, %v466
      %v550 = vadd.f32 %v534, %v466
      %v551 = vadd.f32 %v535, %v466
      %v552 = vadd.f32 %v536, %v466
      %v553 = vadd.f32 %v537, %v466
      %v554 = vadd.f32 %v538, %v466
      %v555 = vadd.f32 %v539, %v466
      %v556 = vadd.f32 %v540, %v466
      %v557 = vadd.f32 %v541, %v466
      %v558 = vmax.f32 %v542, 0.0
      %v559 = vmax.f32 %v543, 0.0
      %v560 = vmax.f32 %v544, 0.0
      %v561 = vmax.f32 %v545, 0.0
      %v562 = vmax.f32 %v546, 0.0
      %v563 = vmax.f32 %v547, 0.0
      %v564 = vmax.f32 %v548, 0.0
      %v565 = vmax.f32 %v549, 0.0
      %v566 = vmax.f32 %v550, 0.0
      %v567 = vmax.f32 %v551, 0.0
      %v568 = vmax.f32 %v552, 0.0
      %v569 = vmax.f32 %v553, 0.0
      %v570 = vmax.f32 %v554, 0.0
      %v571 = vmax.f32 %v555, 0.0
      %v572 = vmax.f32 %v556, 0.0
      %v573 = vmax.f32 %v557, 0.0
      %v574 = vpack.c.bf16 %v559, %v558
      %v575 = vpack.c.bf16 %v561, %v560
      %v576 = vpack.c.bf16 %v563, %v562
      %v577 = vpack.c.bf16 %v565, %v564
      %v578 = vpack.c.bf16 %v567, %v566
      %v579 = vpack.c.bf16 %v569, %v568
      %v580 = vpack.c.bf16 %v571, %v570
      %v581 = vpack.c.bf16 %v573, %v572
      %v583 = vshrl.u32 %v488, 16
      %v585 = vrot.slane %v583, 7
      %v586 = vshll.u32 %v488, 16
      %v588 = vor.u32 %v585, %v586
      %v590 = vshrl.u32 %v574, 16
      %v592 = vrot.slane %v590, 7
      %v593 = vshll.u32 %v574, 16
      %v595 = vor.u32 %v592, %v593
      %v597 = vshrl.u32 %v575, 16
      %v599 = vrot.slane %v597, 7
      %v600 = vshll.u32 %v575, 16
      %v602 = vor.u32 %v599, %v600
      %v604 = vshrl.u32 %v576, 16
      %v606 = vrot.slane %v604, 7
      %v607 = vshll.u32 %v576, 16
      %v609 = vor.u32 %v606, %v607
      %v611 = vshrl.u32 %v577, 16
      %v613 = vrot.slane %v611, 7
      %v614 = vshll.u32 %v577, 16
      %v616 = vor.u32 %v613, %v614
      %v618 = vshrl.u32 %v578, 16
      %v620 = vrot.slane %v618, 7
      %v621 = vshll.u32 %v578, 16
      %v623 = vor.u32 %v620, %v621
      %v625 = vshrl.u32 %v579, 16
      %v627 = vrot.slane %v625, 7
      %v628 = vshll.u32 %v579, 16
      %v630 = vor.u32 %v627, %v628
      %v632 = vshrl.u32 %v580, 16
      %v634 = vrot.slane %v632, 7
      %v635 = vshll.u32 %v580, 16
      %v637 = vor.u32 %v634, %v635
      %v639 = vshrl.u32 %v581, 16
      %v641 = vrot.slane %v639, 7
      %v642 = vshll.u32 %v581, 16
      %v644 = vor.u32 %v641, %v642
      %v646 = vshrl.u32 %v493, 16
      %v648 = vrot.slane %v646, 7
      %v649 = vshll.u32 %v493, 16
      %v651 = vor.u32 %v648, %v649
      %vm662 = vcmask 1040384
      %vm663 = vsmask.f32 256
      %vm664 = vmand %vm662, %vm663
      %v665 = vsel %vm664, 0, %v588
      %v666 = vsel %vm664, 0, %v595
      %v667 = vsel %vm664, 0, %v602
      %v668 = vsel %vm664, 0, %v609
      %v669 = vsel %vm664, 0, %v616
      %v670 = vsel %vm664, 0, %v623
      %v671 = vsel %vm664, 0, %v630
      %v672 = vsel %vm664, 0, %v637
      %v673 = vsel %vm664, 0, %v644
      %v674 = vsel %vm664, 0, %v651
      %v675 = vrot.slane %v586, 1
      %v676 = vor.u32 %v583, %v675
      %v677 = vrot.slane %v593, 1
      %v678 = vor.u32 %v590, %v677
      %v679 = vrot.slane %v600, 1
      %v680 = vor.u32 %v597, %v679
      %v681 = vrot.slane %v607, 1
      %v682 = vor.u32 %v604, %v681
      %v683 = vrot.slane %v614, 1
      %v684 = vor.u32 %v611, %v683
      %v685 = vrot.slane %v621, 1
      %v686 = vor.u32 %v618, %v685
      %v687 = vrot.slane %v628, 1
      %v688 = vor.u32 %v625, %v687
      %v689 = vrot.slane %v635, 1
      %v690 = vor.u32 %v632, %v689
      %v691 = vrot.slane %v642, 1
      %v692 = vor.u32 %v639, %v691
      %v693 = vrot.slane %v649, 1
      %v694 = vor.u32 %v646, %v693
      %vm705 = vcmask 1047552
      %vm706 = vsmask.f32 7424
      %vm707 = vmand %vm705, %vm706
      %v708 = vsel %vm707, %v676, 0
      %v709 = vsel %vm707, %v678, 0
      %v710 = vsel %vm707, %v680, 0
      %v711 = vsel %vm707, %v682, 0
      %v712 = vsel %vm707, %v684, 0
      %v713 = vsel %vm707, %v686, 0
      %v714 = vsel %vm707, %v688, 0
      %v715 = vsel %vm707, %v690, 0
      %v716 = vsel %vm707, %v692, 0
      %v717 = vsel %vm707, %v694, 0
      %v718 = vld [vmem:[%s5] sm:$0xf]
      %v719 = vld [vmem:[%s5 + $0x4] sm:$0xf]
      %v720 = vld [vmem:[%s5 + $0x8] sm:$0xf]
      %v721 = vld [vmem:[%s5 + $0xc] sm:$0xf]
      %v722 = vld [vmem:[%s5 + $0x10] sm:$0xf]
      %v723 = vld [vmem:[%s5 + $0x14] sm:$0xf]
      %v724 = vld [vmem:[%s5 + $0x18] sm:$0xf]
      %v725 = vld [vmem:[%s5 + $0x1c] sm:$0xf]
      %v726 = vld [vmem:[%s5 + $0x20] sm:$0xf]
      %v727 = vld [vmem:[%s5 + $0x24] sm:$0xf]
      %v728 = vld [vmem:[%s5 + $0x28] sm:$0xf]
      %v729 = vld [vmem:[%s5 + $0x2c] sm:$0xf]
      %v730 = vld [vmem:[%s5 + $0x30] sm:$0xf]
      %v731 = vld [vmem:[%s5 + $0x34] sm:$0xf]
      %v732 = vld [vmem:[%s5 + $0x38] sm:$0xf]
      %v733 = vld [vmem:[%s5 + $0x3c] sm:$0xf]
      %v734 = vld [vmem:[%s5 + $0x40] sm:$0xf]
      %v735 = vld [vmem:[%s5 + $0x44] sm:$0xf]
      %v736 = vld [vmem:[%s5 + $0x48] sm:$0xf]
      %v737 = vld [vmem:[%s5 + $0x4c] sm:$0xf]
      %v738 = vld [vmem:[%s5 + $0x50] sm:$0xf]
      %v739 = vld [vmem:[%s5 + $0x54] sm:$0xf]
      %v740 = vld [vmem:[%s5 + $0x58] sm:$0xf]
      %v741 = vld [vmem:[%s5 + $0x5c] sm:$0xf]
      %v742 = vld [vmem:[%s5 + $0x60] sm:$0xf]
      %v743 = vld [vmem:[%s5 + $0x64] sm:$0xf]
      %v744 = vld [vmem:[%s5 + $0x68] sm:$0xf]
      %v745 = vld [vmem:[%s5 + $0x6c] sm:$0xf]
      %v746 = vld [vmem:[%s5 + $0x70] sm:$0xf]
      %v747 = vld [vmem:[%s5 + $0x74] sm:$0xf]
      %v748 = vld [vmem:[%s5 + $0x78] sm:$0xf]
      %v749 = vld [vmem:[%s5 + $0x7c] sm:$0xf]
      %v750 = vld [vmem:[%s5 + $0x80] sm:$0xf]
      %v751 = vld [vmem:[%s5 + $0x84] sm:$0xf]
      %v752 = vld [vmem:[%s5 + $0x88] sm:$0xf]
      %v753 = vld [vmem:[%s5 + $0x8c] sm:$0xf]
      %v754 = vld [vmem:[%s5 + $0x90] sm:$0xf]
      %v755 = vld [vmem:[%s5 + $0x94] sm:$0xf]
      %v756 = vld [vmem:[%s5 + $0x98] sm:$0xf]
      %v757 = vld [vmem:[%s5 + $0x9c] sm:$0xf]
      %v758 = vld [vmem:[%s5 + $0xa0] sm:$0xf]
      %v759 = vld [vmem:[%s5 + $0xa4] sm:$0xf]
      %v760 = vld [vmem:[%s5 + $0xa8] sm:$0xf]
      %v761 = vld [vmem:[%s5 + $0xac] sm:$0xf]
      %v762 = vld [vmem:[%s5 + $0xb0] sm:$0xf]
      %v763 = vld [vmem:[%s5 + $0xb4] sm:$0xf]
      %v764 = vld [vmem:[%s5 + $0xb8] sm:$0xf]
      %v765 = vld [vmem:[%s5 + $0xbc] sm:$0xf]
      %s766 = scalar_lea.vmem %s5, 192
      %v767 = vld [vmem:[%s766] sm:$0xf]
      %v768 = vld [vmem:[%s766 + $0x4] sm:$0xf]
      %v769 = vld [vmem:[%s766 + $0x8] sm:$0xf]
      %v770 = vld [vmem:[%s766 + $0xc] sm:$0xf]
      %v771 = vld [vmem:[%s766 + $0x10] sm:$0xf]
      %v772 = vld [vmem:[%s766 + $0x14] sm:$0xf]
      %v773 = vld [vmem:[%s766 + $0x18] sm:$0xf]
      %v774 = vld [vmem:[%s766 + $0x1c] sm:$0xf]
      %v775 = vld [vmem:[%s766 + $0x20] sm:$0xf]
      %v776 = vld [vmem:[%s766 + $0x24] sm:$0xf]
      %v777 = vld [vmem:[%s766 + $0x28] sm:$0xf]
      %v778 = vld [vmem:[%s766 + $0x2c] sm:$0xf]
      %v779 = vld [vmem:[%s766 + $0x30] sm:$0xf]
      %v780 = vld [vmem:[%s766 + $0x34] sm:$0xf]
      %v781 = vld [vmem:[%s766 + $0x38] sm:$0xf]
      %v782 = vld [vmem:[%s766 + $0x3c] sm:$0xf]
      %v783 = vld [vmem:[%s766 + $0x40] sm:$0xf]
      %v784 = vld [vmem:[%s766 + $0x44] sm:$0xf]
      %v785 = vld [vmem:[%s766 + $0x48] sm:$0xf]
      %v786 = vld [vmem:[%s766 + $0x4c] sm:$0xf]
      %v787 = vld [vmem:[%s766 + $0x50] sm:$0xf]
      %v788 = vld [vmem:[%s766 + $0x54] sm:$0xf]
      %v789 = vld [vmem:[%s766 + $0x58] sm:$0xf]
      %v790 = vld [vmem:[%s766 + $0x5c] sm:$0xf]
      %v791 = vld [vmem:[%s766 + $0x60] sm:$0xf]
      %v792 = vld [vmem:[%s766 + $0x64] sm:$0xf]
      %v793 = vld [vmem:[%s766 + $0x68] sm:$0xf]
      %v794 = vld [vmem:[%s766 + $0x6c] sm:$0xf]
      %v795 = vld [vmem:[%s766 + $0x70] sm:$0xf]
      %v796 = vld [vmem:[%s766 + $0x74] sm:$0xf]
      %v797 = vld [vmem:[%s766 + $0x78] sm:$0xf]
      %v798 = vld [vmem:[%s766 + $0x7c] sm:$0xf]
      %v799 = vld [vmem:[%s766 + $0x80] sm:$0xf]
      %v800 = vld [vmem:[%s766 + $0x84] sm:$0xf]
      %v801 = vld [vmem:[%s766 + $0x88] sm:$0xf]
      %v802 = vld [vmem:[%s766 + $0x8c] sm:$0xf]
      %v803 = vld [vmem:[%s766 + $0x90] sm:$0xf]
      %v804 = vld [vmem:[%s766 + $0x94] sm:$0xf]
      %v805 = vld [vmem:[%s766 + $0x98] sm:$0xf]
      %v806 = vld [vmem:[%s766 + $0x9c] sm:$0xf]
      %v807 = vld [vmem:[%s766 + $0xa0] sm:$0xf]
      %v808 = vld [vmem:[%s766 + $0xa4] sm:$0xf]
      %v809 = vld [vmem:[%s766 + $0xa8] sm:$0xf]
      %v810 = vld [vmem:[%s766 + $0xac] sm:$0xf]
      %v811 = vld [vmem:[%s766 + $0xb0] sm:$0xf]
      %v812 = vld [vmem:[%s766 + $0xb4] sm:$0xf]
      %v813 = vld [vmem:[%s766 + $0xb8] sm:$0xf]
      %v814 = vld [vmem:[%s766 + $0xbc] sm:$0xf]
      %v863 = vunpack.c.l.b16 %v767
      %v864 = vunpack.c.l.b16 %v768
      %v865 = vunpack.c.l.b16 %v769
      %v866 = vunpack.c.l.b16 %v770
      %v867 = vunpack.c.l.b16 %v771
      %v868 = vunpack.c.l.b16 %v772
      %v869 = vunpack.c.l.b16 %v773
      %v870 = vunpack.c.l.b16 %v774
      %v871 = vunpack.c.l.b16 %v775
      %v872 = vunpack.c.l.b16 %v776
      %v873 = vunpack.c.l.b16 %v777
      %v874 = vunpack.c.l.b16 %v778
      %v875 = vunpack.c.l.b16 %v779
      %v876 = vunpack.c.l.b16 %v780
      %v877 = vunpack.c.l.b16 %v781
      %v878 = vunpack.c.l.b16 %v782
      %v879 = vunpack.c.l.b16 %v783
      %v880 = vunpack.c.l.b16 %v784
      %v881 = vunpack.c.l.b16 %v785
      %v882 = vunpack.c.l.b16 %v786
      %v883 = vunpack.c.l.b16 %v787
      %v884 = vunpack.c.l.b16 %v788
      %v885 = vunpack.c.l.b16 %v789
      %v886 = vunpack.c.l.b16 %v790
      %v887 = vunpack.c.l.b16 %v791
      %v888 = vunpack.c.l.b16 %v792
      %v889 = vunpack.c.l.b16 %v793
      %v890 = vunpack.c.l.b16 %v794
      %v891 = vunpack.c.l.b16 %v795
      %v892 = vunpack.c.l.b16 %v796
      %v893 = vunpack.c.l.b16 %v797
      %v894 = vunpack.c.l.b16 %v798
      %v895 = vunpack.c.l.b16 %v799
      %v896 = vunpack.c.l.b16 %v800
      %v897 = vunpack.c.l.b16 %v801
      %v898 = vunpack.c.l.b16 %v802
      %v899 = vunpack.c.l.b16 %v803
      %v900 = vunpack.c.l.b16 %v804
      %v901 = vunpack.c.l.b16 %v805
      %v902 = vunpack.c.l.b16 %v806
      %v903 = vunpack.c.l.b16 %v807
      %v904 = vunpack.c.l.b16 %v808
      %v905 = vunpack.c.l.b16 %v809
      %v906 = vunpack.c.l.b16 %v810
      %v907 = vunpack.c.l.b16 %v811
      %v908 = vunpack.c.l.b16 %v812
      %v909 = vunpack.c.l.b16 %v813
      %v910 = vunpack.c.l.b16 %v814
      %v911 = vpack.c.b16 %v864, %v863
      %v912 = vpack.c.b16 %v866, %v865
      %v913 = vpack.c.b16 %v868, %v867
      %v914 = vpack.c.b16 %v870, %v869
      %v915 = vpack.c.b16 %v872, %v871
      %v916 = vpack.c.b16 %v874, %v873
      %v917 = vpack.c.b16 %v876, %v875
      %v918 = vpack.c.b16 %v878, %v877
      %v919 = vpack.c.b16 %v880, %v879
      %v920 = vpack.c.b16 %v882, %v881
      %v921 = vpack.c.b16 %v884, %v883
      %v922 = vpack.c.b16 %v886, %v885
      %v923 = vpack.c.b16 %v888, %v887
      %v924 = vpack.c.b16 %v890, %v889
      %v925 = vpack.c.b16 %v892, %v891
      %v926 = vpack.c.b16 %v894, %v893
      %v927 = vpack.c.b16 %v896, %v895
      %v928 = vpack.c.b16 %v898, %v897
      %v929 = vpack.c.b16 %v900, %v899
      %v930 = vpack.c.b16 %v902, %v901
      %v931 = vpack.c.b16 %v904, %v903
      %v932 = vpack.c.b16 %v906, %v905
      %v933 = vpack.c.b16 %v908, %v907
      %v934 = vpack.c.b16 %v910, %v909
      %959 = vmatprep.subr.bf16.mxu0 0
      %960 = vmatpush1.bf16.msra.mxu0 %v911
      %961 = vmatprep.subr.bf16.mxu0 0
      %962 = vmatpush1.bf16.msra.mxu0 %v912
      %963 = vmatprep.subr.bf16.mxu0 0
      %964 = vmatpush1.bf16.msra.mxu0 %v913
      %965 = vmatprep.subr.bf16.mxu0 0
      %966 = vmatpush1.bf16.msra.mxu0 %v914
      %967 = vmatprep.subr.bf16.mxu0 0
      %968 = vmatpush1.bf16.msra.mxu0 %v915
      %969 = vmatprep.subr.bf16.mxu0 0
      %970 = vmatpush1.bf16.msra.mxu0 %v916
      %971 = vmatprep.subr.bf16.mxu0 0
      %972 = vmatpush1.bf16.msra.mxu0 %v917
      %973 = vmatprep.subr.bf16.mxu0 0
      %974 = vmatpush1.bf16.msra.mxu0 %v918
      %975 = vmatprep.subr.bf16.mxu0 0
      %976 = vmatpush1.bf16.msra.mxu0 %v919
      %977 = vmatprep.subr.bf16.mxu0 0
      %978 = vmatpush1.bf16.msra.mxu0 %v920
      %979 = vmatprep.subr.bf16.mxu0 0
      %980 = vmatpush1.bf16.msra.mxu0 %v921
      %981 = vmatprep.subr.bf16.mxu0 0
      %982 = vmatpush1.bf16.msra.mxu0 %v922
      %983 = vmatprep.subr.bf16.mxu0 0
      %984 = vmatpush1.bf16.msra.mxu0 %v923
      %985 = vmatprep.subr.bf16.mxu0 0
      %986 = vmatpush1.bf16.msra.mxu0 %v924
      %987 = vmatprep.subr.bf16.mxu0 0
      %988 = vmatpush1.bf16.msra.mxu0 %v925
      %989 = vmatprep.subr.bf16.mxu0 0
      %990 = vmatpush1.bf16.msra.mxu0 %v926
      %991 = vmatprep.mubr.bf16.mxu0 %v574
      %992 = vmatmul.mubr.bf16.gmra.mrb[0].mxu0 %v666
      %v993 = vpop.f32.mrb[0].mxu0
      %v994 = vadd.f32 0.0, %v993
      %v995 = vpop.f32.mrb[0].mxu0
      %v996 = vpop.f32.mrb[0].mxu0
      %v997 = vadd.f32 0.0, %v996
      %v998 = vpop.f32.mrb[0].mxu0
      %999 = vmatprep.mubr.bf16.mxu0 %v575
      %1000 = vmatmul.mubr.bf16.gmra.mrb[0].mxu0 %v667
      %v1001 = vpop.f32.mrb[0].mxu0
      %v1002 = vadd.f32 0.0, %v1001
      %v1003 = vpop.f32.mrb[0].mxu0
      %v1004 = vpop.f32.mrb[0].mxu0
      %v1005 = vadd.f32 0.0, %v1004
      %v1006 = vpop.f32.mrb[0].mxu0
      %1007 = vmatprep.mubr.bf16.mxu0 %v576
      %1008 = vmatmul.mubr.bf16.gmra.mrb[0].mxu0 %v668
      %v1009 = vpop.f32.mrb[0].mxu0
      %v1010 = vadd.f32 0.0, %v1009
      %v1011 = vpop.f32.mrb[0].mxu0
      %v1012 = vpop.f32.mrb[0].mxu0
      %v1013 = vadd.f32 0.0, %v1012
      %v1014 = vpop.f32.mrb[0].mxu0
      %1015 = vmatprep.mubr.bf16.mxu0 %v577
      %1016 = vmatmul.mubr.bf16.gmra.mrb[0].mxu0 %v669
      %v1017 = vpop.f32.mrb[0].mxu0
      %v1018 = vadd.f32 0.0, %v1017
      %v1019 = vpop.f32.mrb[0].mxu0
      %v1020 = vpop.f32.mrb[0].mxu0
      %v1021 = vadd.f32 0.0, %v1020
      %v1022 = vpop.f32.mrb[0].mxu0
      %1023 = vmatprep.mubr.bf16.mxu0 %v578
      %1024 = vmatmul.mubr.bf16.gmra.mrb[0].mxu0 %v670
      %v1025 = vpop.f32.mrb[0].mxu0
      %v1026 = vadd.f32 0.0, %v1025
      %v1027 = vpop.f32.mrb[0].mxu0
      %v1028 = vpop.f32.mrb[0].mxu0
      %v1029 = vadd.f32 0.0, %v1028
      %v1030 = vpop.f32.mrb[0].mxu0
      %1031 = vmatprep.mubr.bf16.mxu0 %v579
      %1032 = vmatmul.mubr.bf16.gmra.mrb[0].mxu0 %v671
      %v1033 = vpop.f32.mrb[0].mxu0
      %v1034 = vadd.f32 0.0, %v1033
      %v1035 = vpop.f32.mrb[0].mxu0
      %v1036 = vpop.f32.mrb[0].mxu0
      %v1037 = vadd.f32 0.0, %v1036
      %v1038 = vpop.f32.mrb[0].mxu0
      %1039 = vmatprep.mubr.bf16.mxu0 %v580
      %1040 = vmatmul.mubr.bf16.gmra.mrb[0].mxu0 %v672
      %v1041 = vpop.f32.mrb[0].mxu0
      %v1042 = vadd.f32 0.0, %v1041
      %v1043 = vpop.f32.mrb[0].mxu0
      %v1044 = vpop.f32.mrb[0].mxu0
      %v1045 = vadd.f32 0.0, %v1044
      %v1046 = vpop.f32.mrb[0].mxu0
      %1047 = vmatprep.mubr.bf16.mxu0 %v581
      %1048 = vmatmul.mubr.bf16.gmra.mrb[0].mxu0 %v673
      %v1049 = vpop.f32.mrb[0].mxu0
      %v1050 = vadd.f32 0.0, %v1049
      %v1051 = vpop.f32.mrb[0].mxu0
      %v1052 = vpop.f32.mrb[0].mxu0
      %v1053 = vadd.f32 0.0, %v1052
      %v1054 = vpop.f32.mrb[0].mxu0
      %1055 = vdwg.mxu0
      %1056 = vmatprep.subr.bf16.mxu0 0
      %1057 = vmatpush1.bf16.msra.mxu0 %v927
      %1058 = vmatprep.subr.bf16.mxu0 0
      %1059 = vmatpush1.bf16.msra.mxu0 %v928
      %1060 = vmatprep.subr.bf16.mxu0 0
      %1061 = vmatpush1.bf16.msra.mxu0 %v929
      %1062 = vmatprep.subr.bf16.mxu0 0
      %1063 = vmatpush1.bf16.msra.mxu0 %v930
      %1064 = vmatprep.subr.bf16.mxu0 0
      %1065 = vmatpush1.bf16.msra.mxu0 %v931
      %1066 = vmatprep.subr.bf16.mxu0 0
      %1067 = vmatpush1.bf16.msra.mxu0 %v932
      %1068 = vmatprep.subr.bf16.mxu0 0
      %1069 = vmatpush1.bf16.msra.mxu0 %v933
      %1070 = vmatprep.subr.bf16.mxu0 0
      %1071 = vmatpush1.bf16.msra.mxu0 %v934
      %1072 = vmatprep.subr.bf16.mxu0 0
      %1073 = vmatpush1.bf16.msra.mxu0 0
      %1074 = vmatprep.subr.bf16.mxu0 0
      %1075 = vmatpush1.bf16.msra.mxu0 0
      %1076 = vmatprep.subr.bf16.mxu0 0
      %1077 = vmatpush1.bf16.msra.mxu0 0
      %1078 = vmatprep.subr.bf16.mxu0 0
      %1079 = vmatpush1.bf16.msra.mxu0 0
      %1080 = vmatprep.subr.bf16.mxu0 0
      %1081 = vmatpush1.bf16.msra.mxu0 0
      %1082 = vmatprep.subr.bf16.mxu0 0
      %1083 = vmatpush1.bf16.msra.mxu0 0
      %1084 = vmatprep.subr.bf16.mxu0 0
      %1085 = vmatpush1.bf16.msra.mxu0 0
      %1086 = vmatprep.subr.bf16.mxu0 0
      %1087 = vmatpush1.bf16.msra.mxu0 0
      %1088 = vmatprep.mubr.bf16.mxu0 0
      %1089 = vmatmul.mubr.bf16.gmra.mrb[0].mxu0 %v709
      %v1090 = vpop.f32.mrb[0].mxu0
      %v1091 = vadd.f32 %v994, %v1090
      %v1092 = vpop.f32.mrb[0].mxu0
      %v1093 = vpop.f32.mrb[0].mxu0
      %v1094 = vadd.f32 %v997, %v1093
      %v1095 = vpop.f32.mrb[0].mxu0
      %1096 = vmatprep.mubr.bf16.mxu0 0
      %1097 = vmatmul.mubr.bf16.gmra.mrb[0].mxu0 %v710
      %v1098 = vpop.f32.mrb[0].mxu0
      %v1099 = vadd.f32 %v1002, %v1098
      %v1100 = vpop.f32.mrb[0].mxu0
      %v1101 = vpop.f32.mrb[0].mxu0
      %v1102 = vadd.f32 %v1005, %v1101
      %v1103 = vpop.f32.mrb[0].mxu0
      %1104 = vmatprep.mubr.bf16.mxu0 0
      %1105 = vmatmul.mubr.bf16.gmra.mrb[0].mxu0 %v711
      %v1106 = vpop.f32.mrb[0].mxu0
      %v1107 = vadd.f32 %v1010, %v1106
      %v1108 = vpop.f32.mrb[0].mxu0
      %v1109 = vpop.f32.mrb[0].mxu0
      %v1110 = vadd.f32 %v1013, %v1109
      %v1111 = vpop.f32.mrb[0].mxu0
      %1112 = vmatprep.mubr.bf16.mxu0 0
      %1113 = vmatmul.mubr.bf16.gmra.mrb[0].mxu0 %v712
      %v1114 = vpop.f32.mrb[0].mxu0
      %v1115 = vadd.f32 %v1018, %v1114
      %v1116 = vpop.f32.mrb[0].mxu0
      %v1117 = vpop.f32.mrb[0].mxu0
      %v1118 = vadd.f32 %v1021, %v1117
      %v1119 = vpop.f32.mrb[0].mxu0
      %1120 = vmatprep.mubr.bf16.mxu0 0
      %1121 = vmatmul.mubr.bf16.gmra.mrb[0].mxu0 %v713
      %v1122 = vpop.f32.mrb[0].mxu0
      %v1123 = vadd.f32 %v1026, %v1122
      %v1124 = vpop.f32.mrb[0].mxu0
      %v1125 = vpop.f32.mrb[0].mxu0
      %v1126 = vadd.f32 %v1029, %v1125
      %v1127 = vpop.f32.mrb[0].mxu0
      %1128 = vmatprep.mubr.bf16.mxu0 0
      %1129 = vmatmul.mubr.bf16.gmra.mrb[0].mxu0 %v714
      %v1130 = vpop.f32.mrb[0].mxu0
      %v1131 = vadd.f32 %v1034, %v1130
      %v1132 = vpop.f32.mrb[0].mxu0
      %v1133 = vpop.f32.mrb[0].mxu0
      %v1134 = vadd.f32 %v1037, %v1133
      %v1135 = vpop.f32.mrb[0].mxu0
      %1136 = vmatprep.mubr.bf16.mxu0 0
      %1137 = vmatmul.mubr.bf16.gmra.mrb[0].mxu0 %v715
      %v1138 = vpop.f32.mrb[0].mxu0
      %v1139 = vadd.f32 %v1042, %v1138
      %v1140 = vpop.f32.mrb[0].mxu0
      %v1141 = vpop.f32.mrb[0].mxu0
      %v1142 = vadd.f32 %v1045, %v1141
      %v1143 = vpop.f32.mrb[0].mxu0
      %1144 = vmatprep.mubr.bf16.mxu0 0
      %1145 = vmatmul.mubr.bf16.gmra.mrb[0].mxu0 %v716
      %v1146 = vpop.f32.mrb[0].mxu0
      %v1147 = vadd.f32 %v1050, %v1146
      %v1148 = vpop.f32.mrb[0].mxu0
      %v1149 = vpop.f32.mrb[0].mxu0
      %v1150 = vadd.f32 %v1053, %v1149
      %v1151 = vpop.f32.mrb[0].mxu0
      %1152 = vdwg.mxu0
      %v1201 = vunpack.c.l.b16 %v718
      %v1202 = vunpack.c.l.b16 %v719
      %v1203 = vunpack.c.l.b16 %v720
      %v1204 = vunpack.c.l.b16 %v721
      %v1205 = vunpack.c.l.b16 %v722
      %v1206 = vunpack.c.l.b16 %v723
      %v1207 = vunpack.c.l.b16 %v724
      %v1208 = vunpack.c.l.b16 %v725
      %v1209 = vunpack.c.l.b16 %v726
      %v1210 = vunpack.c.l.b16 %v727
      %v1211 = vunpack.c.l.b16 %v728
      %v1212 = vunpack.c.l.b16 %v729
      %v1213 = vunpack.c.l.b16 %v730
      %v1214 = vunpack.c.l.b16 %v731
      %v1215 = vunpack.c.l.b16 %v732
      %v1216 = vunpack.c.l.b16 %v733
      %v1217 = vunpack.c.l.b16 %v734
      %v1218 = vunpack.c.l.b16 %v735
      %v1219 = vunpack.c.l.b16 %v736
      %v1220 = vunpack.c.l.b16 %v737
      %v1221 = vunpack.c.l.b16 %v738
      %v1222 = vunpack.c.l.b16 %v739
      %v1223 = vunpack.c.l.b16 %v740
      %v1224 = vunpack.c.l.b16 %v741
      %v1225 = vunpack.c.l.b16 %v742
      %v1226 = vunpack.c.l.b16 %v743
      %v1227 = vunpack.c.l.b16 %v744
      %v1228 = vunpack.c.l.b16 %v745
      %v1229 = vunpack.c.l.b16 %v746
      %v1230 = vunpack.c.l.b16 %v747
      %v1231 = vunpack.c.l.b16 %v748
      %v1232 = vunpack.c.l.b16 %v749
      %v1233 = vunpack.c.l.b16 %v750
      %v1234 = vunpack.c.l.b16 %v751
      %v1235 = vunpack.c.l.b16 %v752
      %v1236 = vunpack.c.l.b16 %v753
      %v1237 = vunpack.c.l.b16 %v754
      %v1238 = vunpack.c.l.b16 %v755
      %v1239 = vunpack.c.l.b16 %v756
      %v1240 = vunpack.c.l.b16 %v757
      %v1241 = vunpack.c.l.b16 %v758
      %v1242 = vunpack.c.l.b16 %v759
      %v1243 = vunpack.c.l.b16 %v760
      %v1244 = vunpack.c.l.b16 %v761
      %v1245 = vunpack.c.l.b16 %v762
      %v1246 = vunpack.c.l.b16 %v763
      %v1247 = vunpack.c.l.b16 %v764
      %v1248 = vunpack.c.l.b16 %v765
      %v1249 = vpack.c.b16 %v1202, %v1201
      %v1250 = vpack.c.b16 %v1204, %v1203
      %v1251 = vpack.c.b16 %v1206, %v1205
      %v1252 = vpack.c.b16 %v1208, %v1207
      %v1253 = vpack.c.b16 %v1210, %v1209
      %v1254 = vpack.c.b16 %v1212, %v1211
      %v1255 = vpack.c.b16 %v1214, %v1213
      %v1256 = vpack.c.b16 %v1216, %v1215
      %v1257 = vpack.c.b16 %v1218, %v1217
      %v1258 = vpack.c.b16 %v1220, %v1219
      %v1259 = vpack.c.b16 %v1222, %v1221
      %v1260 = vpack.c.b16 %v1224, %v1223
      %v1261 = vpack.c.b16 %v1226, %v1225
      %v1262 = vpack.c.b16 %v1228, %v1227
      %v1263 = vpack.c.b16 %v1230, %v1229
      %v1264 = vpack.c.b16 %v1232, %v1231
      %v1265 = vpack.c.b16 %v1234, %v1233
      %v1266 = vpack.c.b16 %v1236, %v1235
      %v1267 = vpack.c.b16 %v1238, %v1237
      %v1268 = vpack.c.b16 %v1240, %v1239
      %v1269 = vpack.c.b16 %v1242, %v1241
      %v1270 = vpack.c.b16 %v1244, %v1243
      %v1271 = vpack.c.b16 %v1246, %v1245
      %v1272 = vpack.c.b16 %v1248, %v1247
      %1297 = vmatprep.subr.bf16.mxu0 0
      %1298 = vmatpush1.bf16.msra.mxu0 %v1249
      %1299 = vmatprep.subr.bf16.mxu0 0
      %1300 = vmatpush1.bf16.msra.mxu0 %v1250
      %1301 = vmatprep.subr.bf16.mxu0 0
      %1302 = vmatpush1.bf16.msra.mxu0 %v1251
      %1303 = vmatprep.subr.bf16.mxu0 0
      %1304 = vmatpush1.bf16.msra.mxu0 %v1252
      %1305 = vmatprep.subr.bf16.mxu0 0
      %1306 = vmatpush1.bf16.msra.mxu0 %v1253
      %1307 = vmatprep.subr.bf16.mxu0 0
      %1308 = vmatpush1.bf16.msra.mxu0 %v1254
      %1309 = vmatprep.subr.bf16.mxu0 0
      %1310 = vmatpush1.bf16.msra.mxu0 %v1255
      %1311 = vmatprep.subr.bf16.mxu0 0
      %1312 = vmatpush1.bf16.msra.mxu0 %v1256
      %1313 = vmatprep.subr.bf16.mxu0 0
      %1314 = vmatpush1.bf16.msra.mxu0 %v1257
      %1315 = vmatprep.subr.bf16.mxu0 0
      %1316 = vmatpush1.bf16.msra.mxu0 %v1258
      %1317 = vmatprep.subr.bf16.mxu0 0
      %1318 = vmatpush1.bf16.msra.mxu0 %v1259
      %1319 = vmatprep.subr.bf16.mxu0 0
      %1320 = vmatpush1.bf16.msra.mxu0 %v1260
      %1321 = vmatprep.subr.bf16.mxu0 0
      %1322 = vmatpush1.bf16.msra.mxu0 %v1261
      %1323 = vmatprep.subr.bf16.mxu0 0
      %1324 = vmatpush1.bf16.msra.mxu0 %v1262
      %1325 = vmatprep.subr.bf16.mxu0 0
      %1326 = vmatpush1.bf16.msra.mxu0 %v1263
      %1327 = vmatprep.subr.bf16.mxu0 0
      %1328 = vmatpush1.bf16.msra.mxu0 %v1264
      %1329 = vmatprep.mubr.bf16.mxu0 %v488
      %1330 = vmatmul.mubr.bf16.gmra.mrb[0].mxu0 %v665
      %v1331 = vpop.f32.mrb[0].mxu0
      %v1332 = vadd.f32 %v1091, %v1331
      %v1333 = vpop.f32.mrb[0].mxu0
      %v1334 = vpop.f32.mrb[0].mxu0
      %v1335 = vadd.f32 %v1094, %v1334
      %v1336 = vpop.f32.mrb[0].mxu0
      %1337 = vmatprep.mubr.bf16.mxu0 %v574
      %1338 = vmatmul.mubr.bf16.gmra.mrb[0].mxu0 %v666
      %v1339 = vpop.f32.mrb[0].mxu0
      %v1340 = vadd.f32 %v1099, %v1339
      %v1341 = vpop.f32.mrb[0].mxu0
      %v1342 = vpop.f32.mrb[0].mxu0
      %v1343 = vadd.f32 %v1102, %v1342
      %v1344 = vpop.f32.mrb[0].mxu0
      %1345 = vmatprep.mubr.bf16.mxu0 %v575
      %1346 = vmatmul.mubr.bf16.gmra.mrb[0].mxu0 %v667
      %v1347 = vpop.f32.mrb[0].mxu0
      %v1348 = vadd.f32 %v1107, %v1347
      %v1349 = vpop.f32.mrb[0].mxu0
      %v1350 = vpop.f32.mrb[0].mxu0
      %v1351 = vadd.f32 %v1110, %v1350
      %v1352 = vpop.f32.mrb[0].mxu0
      %1353 = vmatprep.mubr.bf16.mxu0 %v576
      %1354 = vmatmul.mubr.bf16.gmra.mrb[0].mxu0 %v668
      %v1355 = vpop.f32.mrb[0].mxu0
      %v1356 = vadd.f32 %v1115, %v1355
      %v1357 = vpop.f32.mrb[0].mxu0
      %v1358 = vpop.f32.mrb[0].mxu0
      %v1359 = vadd.f32 %v1118, %v1358
      %v1360 = vpop.f32.mrb[0].mxu0
      %1361 = vmatprep.mubr.bf16.mxu0 %v577
      %1362 = vmatmul.mubr.bf16.gmra.mrb[0].mxu0 %v669
      %v1363 = vpop.f32.mrb[0].mxu0
      %v1364 = vadd.f32 %v1123, %v1363
      %v1365 = vpop.f32.mrb[0].mxu0
      %v1366 = vpop.f32.mrb[0].mxu0
      %v1367 = vadd.f32 %v1126, %v1366
      %v1368 = vpop.f32.mrb[0].mxu0
      %1369 = vmatprep.mubr.bf16.mxu0 %v578
      %1370 = vmatmul.mubr.bf16.gmra.mrb[0].mxu0 %v670
      %v1371 = vpop.f32.mrb[0].mxu0
      %v1372 = vadd.f32 %v1131, %v1371
      %v1373 = vpop.f32.mrb[0].mxu0
      %v1374 = vpop.f32.mrb[0].mxu0
      %v1375 = vadd.f32 %v1134, %v1374
      %v1376 = vpop.f32.mrb[0].mxu0
      %1377 = vmatprep.mubr.bf16.mxu0 %v579
      %1378 = vmatmul.mubr.bf16.gmra.mrb[0].mxu0 %v671
      %v1379 = vpop.f32.mrb[0].mxu0
      %v1380 = vadd.f32 %v1139, %v1379
      %v1381 = vpop.f32.mrb[0].mxu0
      %v1382 = vpop.f32.mrb[0].mxu0
      %v1383 = vadd.f32 %v1142, %v1382
      %v1384 = vpop.f32.mrb[0].mxu0
      %1385 = vmatprep.mubr.bf16.mxu0 %v580
      %1386 = vmatmul.mubr.bf16.gmra.mrb[0].mxu0 %v672
      %v1387 = vpop.f32.mrb[0].mxu0
      %v1388 = vadd.f32 %v1147, %v1387
      %v1389 = vpop.f32.mrb[0].mxu0
      %v1390 = vpop.f32.mrb[0].mxu0
      %v1391 = vadd.f32 %v1150, %v1390
      %v1392 = vpop.f32.mrb[0].mxu0
      %1393 = vdwg.mxu0
      %1394 = vmatprep.subr.bf16.mxu0 0
      %1395 = vmatpush1.bf16.msra.mxu0 %v1265
      %1396 = vmatprep.subr.bf16.mxu0 0
      %1397 = vmatpush1.bf16.msra.mxu0 %v1266
      %1398 = vmatprep.subr.bf16.mxu0 0
      %1399 = vmatpush1.bf16.msra.mxu0 %v1267
      %1400 = vmatprep.subr.bf16.mxu0 0
      %1401 = vmatpush1.bf16.msra.mxu0 %v1268
      %1402 = vmatprep.subr.bf16.mxu0 0
      %1403 = vmatpush1.bf16.msra.mxu0 %v1269
      %1404 = vmatprep.subr.bf16.mxu0 0
      %1405 = vmatpush1.bf16.msra.mxu0 %v1270
      %1406 = vmatprep.subr.bf16.mxu0 0
      %1407 = vmatpush1.bf16.msra.mxu0 %v1271
      %1408 = vmatprep.subr.bf16.mxu0 0
      %1409 = vmatpush1.bf16.msra.mxu0 %v1272
      %1410 = vmatprep.subr.bf16.mxu0 0
      %1411 = vmatpush1.bf16.msra.mxu0 0
      %1412 = vmatprep.subr.bf16.mxu0 0
      %1413 = vmatpush1.bf16.msra.mxu0 0
      %1414 = vmatprep.subr.bf16.mxu0 0
      %1415 = vmatpush1.bf16.msra.mxu0 0
      %1416 = vmatprep.subr.bf16.mxu0 0
      %1417 = vmatpush1.bf16.msra.mxu0 0
      %1418 = vmatprep.subr.bf16.mxu0 0
      %1419 = vmatpush1.bf16.msra.mxu0 0
      %1420 = vmatprep.subr.bf16.mxu0 0
      %1421 = vmatpush1.bf16.msra.mxu0 0
      %1422 = vmatprep.subr.bf16.mxu0 0
      %1423 = vmatpush1.bf16.msra.mxu0 0
      %1424 = vmatprep.subr.bf16.mxu0 0
      %1425 = vmatpush1.bf16.msra.mxu0 0
      %1426 = vmatprep.mubr.bf16.mxu0 0
      %1427 = vmatmul.mubr.bf16.gmra.mrb[0].mxu0 %v708
      %v1428 = vpop.f32.mrb[0].mxu0
      %v1429 = vadd.f32 %v1332, %v1428
      %v1430 = vpop.f32.mrb[0].mxu0
      %v1431 = vpop.f32.mrb[0].mxu0
      %v1432 = vadd.f32 %v1335, %v1431
      %v1433 = vpop.f32.mrb[0].mxu0
      %1434 = vmatprep.mubr.bf16.mxu0 0
      %1435 = vmatmul.mubr.bf16.gmra.mrb[0].mxu0 %v709
      %v1436 = vpop.f32.mrb[0].mxu0
      %v1437 = vadd.f32 %v1340, %v1436
      %v1438 = vpop.f32.mrb[0].mxu0
      %v1439 = vpop.f32.mrb[0].mxu0
      %v1440 = vadd.f32 %v1343, %v1439
      %v1441 = vpop.f32.mrb[0].mxu0
      %1442 = vmatprep.mubr.bf16.mxu0 0
      %1443 = vmatmul.mubr.bf16.gmra.mrb[0].mxu0 %v710
      %v1444 = vpop.f32.mrb[0].mxu0
      %v1445 = vadd.f32 %v1348, %v1444
      %v1446 = vpop.f32.mrb[0].mxu0
      %v1447 = vpop.f32.mrb[0].mxu0
      %v1448 = vadd.f32 %v1351, %v1447
      %v1449 = vpop.f32.mrb[0].mxu0
      %1450 = vmatprep.mubr.bf16.mxu0 0
      %1451 = vmatmul.mubr.bf16.gmra.mrb[0].mxu0 %v711
      %v1452 = vpop.f32.mrb[0].mxu0
      %v1453 = vadd.f32 %v1356, %v1452
      %v1454 = vpop.f32.mrb[0].mxu0
      %v1455 = vpop.f32.mrb[0].mxu0
      %v1456 = vadd.f32 %v1359, %v1455
      %v1457 = vpop.f32.mrb[0].mxu0
      %1458 = vmatprep.mubr.bf16.mxu0 0
      %1459 = vmatmul.mubr.bf16.gmra.mrb[0].mxu0 %v712
      %v1460 = vpop.f32.mrb[0].mxu0
      %v1461 = vadd.f32 %v1364, %v1460
      %v1462 = vpop.f32.mrb[0].mxu0
      %v1463 = vpop.f32.mrb[0].mxu0
      %v1464 = vadd.f32 %v1367, %v1463
      %v1465 = vpop.f32.mrb[0].mxu0
      %1466 = vmatprep.mubr.bf16.mxu0 0
      %1467 = vmatmul.mubr.bf16.gmra.mrb[0].mxu0 %v713
      %v1468 = vpop.f32.mrb[0].mxu0
      %v1469 = vadd.f32 %v1372, %v1468
      %v1470 = vpop.f32.mrb[0].mxu0
      %v1471 = vpop.f32.mrb[0].mxu0
      %v1472 = vadd.f32 %v1375, %v1471
      %v1473 = vpop.f32.mrb[0].mxu0
      %1474 = vmatprep.mubr.bf16.mxu0 0
      %1475 = vmatmul.mubr.bf16.gmra.mrb[0].mxu0 %v714
      %v1476 = vpop.f32.mrb[0].mxu0
      %v1477 = vadd.f32 %v1380, %v1476
      %v1478 = vpop.f32.mrb[0].mxu0
      %v1479 = vpop.f32.mrb[0].mxu0
      %v1480 = vadd.f32 %v1383, %v1479
      %v1481 = vpop.f32.mrb[0].mxu0
      %1482 = vmatprep.mubr.bf16.mxu0 0
      %1483 = vmatmul.mubr.bf16.gmra.mrb[0].mxu0 %v715
      %v1484 = vpop.f32.mrb[0].mxu0
      %v1485 = vadd.f32 %v1388, %v1484
      %v1486 = vpop.f32.mrb[0].mxu0
      %v1487 = vpop.f32.mrb[0].mxu0
      %v1488 = vadd.f32 %v1391, %v1487
      %v1489 = vpop.f32.mrb[0].mxu0
      %1490 = vdwg.mxu0
      %s1491 = scalar_lea.vmem %s5, 384
      %v1492 = vld [vmem:[%s1491] sm:$0xf]
      %v1493 = vld [vmem:[%s1491 + $0x4] sm:$0xf]
      %v1494 = vld [vmem:[%s1491 + $0x8] sm:$0xf]
      %v1495 = vld [vmem:[%s1491 + $0xc] sm:$0xf]
      %v1496 = vld [vmem:[%s1491 + $0x10] sm:$0xf]
      %v1497 = vld [vmem:[%s1491 + $0x14] sm:$0xf]
      %v1498 = vld [vmem:[%s1491 + $0x18] sm:$0xf]
      %v1499 = vld [vmem:[%s1491 + $0x1c] sm:$0xf]
      %v1500 = vld [vmem:[%s1491 + $0x20] sm:$0xf]
      %v1501 = vld [vmem:[%s1491 + $0x24] sm:$0xf]
      %v1502 = vld [vmem:[%s1491 + $0x28] sm:$0xf]
      %v1503 = vld [vmem:[%s1491 + $0x2c] sm:$0xf]
      %v1504 = vld [vmem:[%s1491 + $0x30] sm:$0xf]
      %v1505 = vld [vmem:[%s1491 + $0x34] sm:$0xf]
      %v1506 = vld [vmem:[%s1491 + $0x38] sm:$0xf]
      %v1507 = vld [vmem:[%s1491 + $0x3c] sm:$0xf]
      %v1508 = vld [vmem:[%s1491 + $0x40] sm:$0xf]
      %v1509 = vld [vmem:[%s1491 + $0x44] sm:$0xf]
      %v1510 = vld [vmem:[%s1491 + $0x48] sm:$0xf]
      %v1511 = vld [vmem:[%s1491 + $0x4c] sm:$0xf]
      %v1512 = vld [vmem:[%s1491 + $0x50] sm:$0xf]
      %v1513 = vld [vmem:[%s1491 + $0x54] sm:$0xf]
      %v1514 = vld [vmem:[%s1491 + $0x58] sm:$0xf]
      %v1515 = vld [vmem:[%s1491 + $0x5c] sm:$0xf]
      %v1516 = vld [vmem:[%s1491 + $0x60] sm:$0xf]
      %v1517 = vld [vmem:[%s1491 + $0x64] sm:$0xf]
      %v1518 = vld [vmem:[%s1491 + $0x68] sm:$0xf]
      %v1519 = vld [vmem:[%s1491 + $0x6c] sm:$0xf]
      %v1520 = vld [vmem:[%s1491 + $0x70] sm:$0xf]
      %v1521 = vld [vmem:[%s1491 + $0x74] sm:$0xf]
      %v1522 = vld [vmem:[%s1491 + $0x78] sm:$0xf]
      %v1523 = vld [vmem:[%s1491 + $0x7c] sm:$0xf]
      %v1524 = vld [vmem:[%s1491 + $0x80] sm:$0xf]
      %v1525 = vld [vmem:[%s1491 + $0x84] sm:$0xf]
      %v1526 = vld [vmem:[%s1491 + $0x88] sm:$0xf]
      %v1527 = vld [vmem:[%s1491 + $0x8c] sm:$0xf]
      %v1528 = vld [vmem:[%s1491 + $0x90] sm:$0xf]
      %v1529 = vld [vmem:[%s1491 + $0x94] sm:$0xf]
      %v1530 = vld [vmem:[%s1491 + $0x98] sm:$0xf]
      %v1531 = vld [vmem:[%s1491 + $0x9c] sm:$0xf]
      %v1532 = vld [vmem:[%s1491 + $0xa0] sm:$0xf]
      %v1533 = vld [vmem:[%s1491 + $0xa4] sm:$0xf]
      %v1534 = vld [vmem:[%s1491 + $0xa8] sm:$0xf]
      %v1535 = vld [vmem:[%s1491 + $0xac] sm:$0xf]
      %v1536 = vld [vmem:[%s1491 + $0xb0] sm:$0xf]
      %v1537 = vld [vmem:[%s1491 + $0xb4] sm:$0xf]
      %v1538 = vld [vmem:[%s1491 + $0xb8] sm:$0xf]
      %v1539 = vld [vmem:[%s1491 + $0xbc] sm:$0xf]
      %v1588 = vunpack.c.l.b16 %v1492
      %v1589 = vunpack.c.l.b16 %v1493
      %v1590 = vunpack.c.l.b16 %v1494
      %v1591 = vunpack.c.l.b16 %v1495
      %v1592 = vunpack.c.l.b16 %v1496
      %v1593 = vunpack.c.l.b16 %v1497
      %v1594 = vunpack.c.l.b16 %v1498
      %v1595 = vunpack.c.l.b16 %v1499
      %v1596 = vunpack.c.l.b16 %v1500
      %v1597 = vunpack.c.l.b16 %v1501
      %v1598 = vunpack.c.l.b16 %v1502
      %v1599 = vunpack.c.l.b16 %v1503
      %v1600 = vunpack.c.l.b16 %v1504
      %v1601 = vunpack.c.l.b16 %v1505
      %v1602 = vunpack.c.l.b16 %v1506
      %v1603 = vunpack.c.l.b16 %v1507
      %v1604 = vunpack.c.l.b16 %v1508
      %v1605 = vunpack.c.l.b16 %v1509
      %v1606 = vunpack.c.l.b16 %v1510
      %v1607 = vunpack.c.l.b16 %v1511
      %v1608 = vunpack.c.l.b16 %v1512
      %v1609 = vunpack.c.l.b16 %v1513
      %v1610 = vunpack.c.l.b16 %v1514
      %v1611 = vunpack.c.l.b16 %v1515
      %v1612 = vunpack.c.l.b16 %v1516
      %v1613 = vunpack.c.l.b16 %v1517
      %v1614 = vunpack.c.l.b16 %v1518
      %v1615 = vunpack.c.l.b16 %v1519
      %v1616 = vunpack.c.l.b16 %v1520
      %v1617 = vunpack.c.l.b16 %v1521
      %v1618 = vunpack.c.l.b16 %v1522
      %v1619 = vunpack.c.l.b16 %v1523
      %v1620 = vunpack.c.l.b16 %v1524
      %v1621 = vunpack.c.l.b16 %v1525
      %v1622 = vunpack.c.l.b16 %v1526
      %v1623 = vunpack.c.l.b16 %v1527
      %v1624 = vunpack.c.l.b16 %v1528
      %v1625 = vunpack.c.l.b16 %v1529
      %v1626 = vunpack.c.l.b16 %v1530
      %v1627 = vunpack.c.l.b16 %v1531
      %v1628 = vunpack.c.l.b16 %v1532
      %v1629 = vunpack.c.l.b16 %v1533
      %v1630 = vunpack.c.l.b16 %v1534
      %v1631 = vunpack.c.l.b16 %v1535
      %v1632 = vunpack.c.l.b16 %v1536
      %v1633 = vunpack.c.l.b16 %v1537
      %v1634 = vunpack.c.l.b16 %v1538
      %v1635 = vunpack.c.l.b16 %v1539
      %v1636 = vpack.c.b16 %v1589, %v1588
      %v1637 = vpack.c.b16 %v1591, %v1590
      %v1638 = vpack.c.b16 %v1593, %v1592
      %v1639 = vpack.c.b16 %v1595, %v1594
      %v1640 = vpack.c.b16 %v1597, %v1596
      %v1641 = vpack.c.b16 %v1599, %v1598
      %v1642 = vpack.c.b16 %v1601, %v1600
      %v1643 = vpack.c.b16 %v1603, %v1602
      %v1644 = vpack.c.b16 %v1605, %v1604
      %v1645 = vpack.c.b16 %v1607, %v1606
      %v1646 = vpack.c.b16 %v1609, %v1608
      %v1647 = vpack.c.b16 %v1611, %v1610
      %v1648 = vpack.c.b16 %v1613, %v1612
      %v1649 = vpack.c.b16 %v1615, %v1614
      %v1650 = vpack.c.b16 %v1617, %v1616
      %v1651 = vpack.c.b16 %v1619, %v1618
      %v1652 = vpack.c.b16 %v1621, %v1620
      %v1653 = vpack.c.b16 %v1623, %v1622
      %v1654 = vpack.c.b16 %v1625, %v1624
      %v1655 = vpack.c.b16 %v1627, %v1626
      %v1656 = vpack.c.b16 %v1629, %v1628
      %v1657 = vpack.c.b16 %v1631, %v1630
      %v1658 = vpack.c.b16 %v1633, %v1632
      %v1659 = vpack.c.b16 %v1635, %v1634
      %1684 = vmatprep.subr.bf16.mxu0 0
      %1685 = vmatpush1.bf16.msra.mxu0 %v1636
      %1686 = vmatprep.subr.bf16.mxu0 0
      %1687 = vmatpush1.bf16.msra.mxu0 %v1637
      %1688 = vmatprep.subr.bf16.mxu0 0
      %1689 = vmatpush1.bf16.msra.mxu0 %v1638
      %1690 = vmatprep.subr.bf16.mxu0 0
      %1691 = vmatpush1.bf16.msra.mxu0 %v1639
      %1692 = vmatprep.subr.bf16.mxu0 0
      %1693 = vmatpush1.bf16.msra.mxu0 %v1640
      %1694 = vmatprep.subr.bf16.mxu0 0
      %1695 = vmatpush1.bf16.msra.mxu0 %v1641
      %1696 = vmatprep.subr.bf16.mxu0 0
      %1697 = vmatpush1.bf16.msra.mxu0 %v1642
      %1698 = vmatprep.subr.bf16.mxu0 0
      %1699 = vmatpush1.bf16.msra.mxu0 %v1643
      %1700 = vmatprep.subr.bf16.mxu0 0
      %1701 = vmatpush1.bf16.msra.mxu0 %v1644
      %1702 = vmatprep.subr.bf16.mxu0 0
      %1703 = vmatpush1.bf16.msra.mxu0 %v1645
      %1704 = vmatprep.subr.bf16.mxu0 0
      %1705 = vmatpush1.bf16.msra.mxu0 %v1646
      %1706 = vmatprep.subr.bf16.mxu0 0
      %1707 = vmatpush1.bf16.msra.mxu0 %v1647
      %1708 = vmatprep.subr.bf16.mxu0 0
      %1709 = vmatpush1.bf16.msra.mxu0 %v1648
      %1710 = vmatprep.subr.bf16.mxu0 0
      %1711 = vmatpush1.bf16.msra.mxu0 %v1649
      %1712 = vmatprep.subr.bf16.mxu0 0
      %1713 = vmatpush1.bf16.msra.mxu0 %v1650
      %1714 = vmatprep.subr.bf16.mxu0 0
      %1715 = vmatpush1.bf16.msra.mxu0 %v1651
      %1716 = vmatprep.mubr.bf16.mxu0 %v575
      %1717 = vmatmul.mubr.bf16.gmra.mrb[0].mxu0 %v667
      %v1718 = vpop.f32.mrb[0].mxu0
      %v1719 = vadd.f32 0.0, %v1718
      %v1720 = vpop.f32.mrb[0].mxu0
      %v1721 = vpop.f32.mrb[0].mxu0
      %v1722 = vadd.f32 0.0, %v1721
      %v1723 = vpop.f32.mrb[0].mxu0
      %1724 = vmatprep.mubr.bf16.mxu0 %v576
      %1725 = vmatmul.mubr.bf16.gmra.mrb[0].mxu0 %v668
      %v1726 = vpop.f32.mrb[0].mxu0
      %v1727 = vadd.f32 0.0, %v1726
      %v1728 = vpop.f32.mrb[0].mxu0
      %v1729 = vpop.f32.mrb[0].mxu0
      %v1730 = vadd.f32 0.0, %v1729
      %v1731 = vpop.f32.mrb[0].mxu0
      %1732 = vmatprep.mubr.bf16.mxu0 %v577
      %1733 = vmatmul.mubr.bf16.gmra.mrb[0].mxu0 %v669
      %v1734 = vpop.f32.mrb[0].mxu0
      %v1735 = vadd.f32 0.0, %v1734
      %v1736 = vpop.f32.mrb[0].mxu0
      %v1737 = vpop.f32.mrb[0].mxu0
      %v1738 = vadd.f32 0.0, %v1737
      %v1739 = vpop.f32.mrb[0].mxu0
      %1740 = vmatprep.mubr.bf16.mxu0 %v578
      %1741 = vmatmul.mubr.bf16.gmra.mrb[0].mxu0 %v670
      %v1742 = vpop.f32.mrb[0].mxu0
      %v1743 = vadd.f32 0.0, %v1742
      %v1744 = vpop.f32.mrb[0].mxu0
      %v1745 = vpop.f32.mrb[0].mxu0
      %v1746 = vadd.f32 0.0, %v1745
      %v1747 = vpop.f32.mrb[0].mxu0
      %1748 = vmatprep.mubr.bf16.mxu0 %v579
      %1749 = vmatmul.mubr.bf16.gmra.mrb[0].mxu0 %v671
      %v1750 = vpop.f32.mrb[0].mxu0
      %v1751 = vadd.f32 0.0, %v1750
      %v1752 = vpop.f32.mrb[0].mxu0
      %v1753 = vpop.f32.mrb[0].mxu0
      %v1754 = vadd.f32 0.0, %v1753
      %v1755 = vpop.f32.mrb[0].mxu0
      %1756 = vmatprep.mubr.bf16.mxu0 %v580
      %1757 = vmatmul.mubr.bf16.gmra.mrb[0].mxu0 %v672
      %v1758 = vpop.f32.mrb[0].mxu0
      %v1759 = vadd.f32 0.0, %v1758
      %v1760 = vpop.f32.mrb[0].mxu0
      %v1761 = vpop.f32.mrb[0].mxu0
      %v1762 = vadd.f32 0.0, %v1761
      %v1763 = vpop.f32.mrb[0].mxu0
      %1764 = vmatprep.mubr.bf16.mxu0 %v581
      %1765 = vmatmul.mubr.bf16.gmra.mrb[0].mxu0 %v673
      %v1766 = vpop.f32.mrb[0].mxu0
      %v1767 = vadd.f32 0.0, %v1766
      %v1768 = vpop.f32.mrb[0].mxu0
      %v1769 = vpop.f32.mrb[0].mxu0
      %v1770 = vadd.f32 0.0, %v1769
      %v1771 = vpop.f32.mrb[0].mxu0
      %1772 = vmatprep.mubr.bf16.mxu0 %v493
      %1773 = vmatmul.mubr.bf16.gmra.mrb[0].mxu0 %v674
      %v1774 = vpop.f32.mrb[0].mxu0
      %v1775 = vadd.f32 0.0, %v1774
      %v1776 = vpop.f32.mrb[0].mxu0
      %v1777 = vpop.f32.mrb[0].mxu0
      %v1778 = vadd.f32 0.0, %v1777
      %v1779 = vpop.f32.mrb[0].mxu0
      %1780 = vdwg.mxu0
      %1781 = vmatprep.subr.bf16.mxu0 0
      %1782 = vmatpush1.bf16.msra.mxu0 %v1652
      %1783 = vmatprep.subr.bf16.mxu0 0
      %1784 = vmatpush1.bf16.msra.mxu0 %v1653
      %1785 = vmatprep.subr.bf16.mxu0 0
      %1786 = vmatpush1.bf16.msra.mxu0 %v1654
      %1787 = vmatprep.subr.bf16.mxu0 0
      %1788 = vmatpush1.bf16.msra.mxu0 %v1655
      %1789 = vmatprep.subr.bf16.mxu0 0
      %1790 = vmatpush1.bf16.msra.mxu0 %v1656
      %1791 = vmatprep.subr.bf16.mxu0 0
      %1792 = vmatpush1.bf16.msra.mxu0 %v1657
      %1793 = vmatprep.subr.bf16.mxu0 0
      %1794 = vmatpush1.bf16.msra.mxu0 %v1658
      %1795 = vmatprep.subr.bf16.mxu0 0
      %1796 = vmatpush1.bf16.msra.mxu0 %v1659
      %1797 = vmatprep.subr.bf16.mxu0 0
      %1798 = vmatpush1.bf16.msra.mxu0 0
      %1799 = vmatprep.subr.bf16.mxu0 0
      %1800 = vmatpush1.bf16.msra.mxu0 0
      %1801 = vmatprep.subr.bf16.mxu0 0
      %1802 = vmatpush1.bf16.msra.mxu0 0
      %1803 = vmatprep.subr.bf16.mxu0 0
      %1804 = vmatpush1.bf16.msra.mxu0 0
      %1805 = vmatprep.subr.bf16.mxu0 0
      %1806 = vmatpush1.bf16.msra.mxu0 0
      %1807 = vmatprep.subr.bf16.mxu0 0
      %1808 = vmatpush1.bf16.msra.mxu0 0
      %1809 = vmatprep.subr.bf16.mxu0 0
      %1810 = vmatpush1.bf16.msra.mxu0 0
      %1811 = vmatprep.subr.bf16.mxu0 0
      %1812 = vmatpush1.bf16.msra.mxu0 0
      %1813 = vmatprep.mubr.bf16.mxu0 0
      %1814 = vmatmul.mubr.bf16.gmra.mrb[0].mxu0 %v710
      %v1815 = vpop.f32.mrb[0].mxu0
      %v1816 = vadd.f32 %v1719, %v1815
      %v1817 = vpop.f32.mrb[0].mxu0
      %v1818 = vpop.f32.mrb[0].mxu0
      %v1819 = vadd.f32 %v1722, %v1818
      %v1820 = vpop.f32.mrb[0].mxu0
      %1821 = vmatprep.mubr.bf16.mxu0 0
      %1822 = vmatmul.mubr.bf16.gmra.mrb[0].mxu0 %v711
      %v1823 = vpop.f32.mrb[0].mxu0
      %v1824 = vadd.f32 %v1727, %v1823
      %v1825 = vpop.f32.mrb[0].mxu0
      %v1826 = vpop.f32.mrb[0].mxu0
      %v1827 = vadd.f32 %v1730, %v1826
      %v1828 = vpop.f32.mrb[0].mxu0
      %1829 = vmatprep.mubr.bf16.mxu0 0
      %1830 = vmatmul.mubr.bf16.gmra.mrb[0].mxu0 %v712
      %v1831 = vpop.f32.mrb[0].mxu0
      %v1832 = vadd.f32 %v1735, %v1831
      %v1833 = vpop.f32.mrb[0].mxu0
      %v1834 = vpop.f32.mrb[0].mxu0
      %v1835 = vadd.f32 %v1738, %v1834
      %v1836 = vpop.f32.mrb[0].mxu0
      %1837 = vmatprep.mubr.bf16.mxu0 0
      %1838 = vmatmul.mubr.bf16.gmra.mrb[0].mxu0 %v713
      %v1839 = vpop.f32.mrb[0].mxu0
      %v1840 = vadd.f32 %v1743, %v1839
      %v1841 = vpop.f32.mrb[0].mxu0
      %v1842 = vpop.f32.mrb[0].mxu0
      %v1843 = vadd.f32 %v1746, %v1842
      %v1844 = vpop.f32.mrb[0].mxu0
      %1845 = vmatprep.mubr.bf16.mxu0 0
      %1846 = vmatmul.mubr.bf16.gmra.mrb[0].mxu0 %v714
      %v1847 = vpop.f32.mrb[0].mxu0
      %v1848 = vadd.f32 %v1751, %v1847
      %v1849 = vpop.f32.mrb[0].mxu0
      %v1850 = vpop.f32.mrb[0].mxu0
      %v1851 = vadd.f32 %v1754, %v1850
      %v1852 = vpop.f32.mrb[0].mxu0
      %1853 = vmatprep.mubr.bf16.mxu0 0
      %1854 = vmatmul.mubr.bf16.gmra.mrb[0].mxu0 %v715
      %v1855 = vpop.f32.mrb[0].mxu0
      %v1856 = vadd.f32 %v1759, %v1855
      %v1857 = vpop.f32.mrb[0].mxu0
      %v1858 = vpop.f32.mrb[0].mxu0
      %v1859 = vadd.f32 %v1762, %v1858
      %v1860 = vpop.f32.mrb[0].mxu0
      %1861 = vmatprep.mubr.bf16.mxu0 0
      %1862 = vmatmul.mubr.bf16.gmra.mrb[0].mxu0 %v716
      %v1863 = vpop.f32.mrb[0].mxu0
      %v1864 = vadd.f32 %v1767, %v1863
      %v1865 = vpop.f32.mrb[0].mxu0
      %v1866 = vpop.f32.mrb[0].mxu0
      %v1867 = vadd.f32 %v1770, %v1866
      %v1868 = vpop.f32.mrb[0].mxu0
      %1869 = vmatprep.mubr.bf16.mxu0 0
      %1870 = vmatmul.mubr.bf16.gmra.mrb[0].mxu0 %v717
      %v1871 = vpop.f32.mrb[0].mxu0
      %v1872 = vadd.f32 %v1775, %v1871
      %v1873 = vpop.f32.mrb[0].mxu0
      %v1874 = vpop.f32.mrb[0].mxu0
      %v1875 = vadd.f32 %v1778, %v1874
      %v1876 = vpop.f32.mrb[0].mxu0
      %1877 = vdwg.mxu0
      %v1878 = vadd.f32 %v1429, %v1816
      %v1879 = vadd.f32 %v1432, %v1819
      %v1880 = vadd.f32 %v1437, %v1824
      %v1881 = vadd.f32 %v1440, %v1827
      %v1882 = vadd.f32 %v1445, %v1832
      %v1883 = vadd.f32 %v1448, %v1835
      %v1884 = vadd.f32 %v1453, %v1840
      %v1885 = vadd.f32 %v1456, %v1843
      %v1886 = vadd.f32 %v1461, %v1848
      %v1887 = vadd.f32 %v1464, %v1851
      %v1888 = vadd.f32 %v1469, %v1856
      %v1889 = vadd.f32 %v1472, %v1859
      %v1890 = vadd.f32 %v1477, %v1864
      %v1891 = vadd.f32 %v1480, %v1867
      %v1892 = vadd.f32 %v1485, %v1872
      %v1893 = vadd.f32 %v1488, %v1875
      %v1894 = vld [vmem:[%s6] sm:$0x1]
      %v1896 = vlaneseq
      %v1897 = vshrl.u32 %v1896, 7
      %v1898 = vsub.s32 0, %v1897
      %v1899 = vrot.slane %v1894, %v1898
      %v1901 = vadd.f32 %v1878, %v1899
      %v1902 = vadd.f32 %v1879, %v1899
      %v1903 = vadd.f32 %v1880, %v1899
      %v1904 = vadd.f32 %v1881, %v1899
      %v1905 = vadd.f32 %v1882, %v1899
      %v1906 = vadd.f32 %v1883, %v1899
      %v1907 = vadd.f32 %v1884, %v1899
      %v1908 = vadd.f32 %v1885, %v1899
      %v1909 = vadd.f32 %v1886, %v1899
      %v1910 = vadd.f32 %v1887, %v1899
      %v1911 = vadd.f32 %v1888, %v1899
      %v1912 = vadd.f32 %v1889, %v1899
      %v1913 = vadd.f32 %v1890, %v1899
      %v1914 = vadd.f32 %v1891, %v1899
      %v1915 = vadd.f32 %v1892, %v1899
      %v1916 = vadd.f32 %v1893, %v1899
      %v1917 = vmax.f32 %v1901, 0.0
      %v1918 = vmax.f32 %v1902, 0.0
      %v1919 = vmax.f32 %v1903, 0.0
      %v1920 = vmax.f32 %v1904, 0.0
      %v1921 = vmax.f32 %v1905, 0.0
      %v1922 = vmax.f32 %v1906, 0.0
      %v1923 = vmax.f32 %v1907, 0.0
      %v1924 = vmax.f32 %v1908, 0.0
      %v1925 = vmax.f32 %v1909, 0.0
      %v1926 = vmax.f32 %v1910, 0.0
      %v1927 = vmax.f32 %v1911, 0.0
      %v1928 = vmax.f32 %v1912, 0.0
      %v1929 = vmax.f32 %v1913, 0.0
      %v1930 = vmax.f32 %v1914, 0.0
      %v1931 = vmax.f32 %v1915, 0.0
      %v1932 = vmax.f32 %v1916, 0.0
      %1933 = vst [vmem:[%s445] sm:$0xff] %v1917
      %1934 = vst [vmem:[%s445 + $0x8] sm:$0xff] %v1918
      %1935 = vst [vmem:[%s445 + $0x10] sm:$0xff] %v1919
      %1936 = vst [vmem:[%s445 + $0x18] sm:$0xff] %v1920
      %1937 = vst [vmem:[%s445 + $0x20] sm:$0xff] %v1921
      %1938 = vst [vmem:[%s445 + $0x28] sm:$0xff] %v1922
      %1939 = vst [vmem:[%s445 + $0x30] sm:$0xff] %v1923
      %1940 = vst [vmem:[%s445 + $0x38] sm:$0xff] %v1924
      %1941 = vst [vmem:[%s445 + $0x40] sm:$0xff] %v1925
      %1942 = vst [vmem:[%s445 + $0x48] sm:$0xff] %v1926
      %1943 = vst [vmem:[%s445 + $0x50] sm:$0xff] %v1927
      %1944 = vst [vmem:[%s445 + $0x58] sm:$0xff] %v1928
      %1945 = vst [vmem:[%s445 + $0x60] sm:$0xff] %v1929
      %1946 = vst [vmem:[%s445 + $0x68] sm:$0xff] %v1930
      %1947 = vst [vmem:[%s445 + $0x70] sm:$0xff] %v1931
      %1948 = vst [vmem:[%s445 + $0x78] sm:$0xff] %v1932
      %s1949 = smul.u32 8, %s23
      %p1950 = scmp.lt.s32.totalorder %s22, 1
      %s1951 = scalar_select %p1950, %s22, 1
      %p1952 = scmp.lt.s32.totalorder %s1949, 15
      %s1953 = scalar_select %p1952, %s1949, 15
      %s1954 = smul.addr %s1953, 2
      %s1955 = smul.addr %s1951, 32
      %s1956 = sadd.s32 %s1954, %s1955
      %s1957 = smul.addr %s1956, 8
      %s1958 = scalar_lea.vmem %s7, %s1957
      // Predicated region
      $region49: #{conv_block_forward.3} parent=47 // pred_check
        %p1959 = pneg %p234
      $region50: #{conv_block_forward.3} parent=47 // pred_check_branch
        %1961 = sbr.rel (%p1959) target = $region52
      $region51: #{conv_block_forward.3} parent=47 // pred_region
        %s1962 = smul.u32 8, %s23
      $region52: #{conv_block_forward.3} parent=47 // pred_fallthru
        _
    $region48: #{conv_block_forward.3} parent=5 // pred_fallthru
      _
    %p1963 = scmp.le.s32.totalorder 2, %s13
    // Predicated region
    $region53: #{conv_block_forward.3} parent=5 // pred_check
      %p1964 = pneg %p1963
    $region54: #{conv_block_forward.3} parent=5 // pred_check_branch
      %1966 = sbr.rel (%p1964) target = $region56
    $region55: #{conv_block_forward.3} parent=5 // pred_region
      %s1967 = ssub.s32 %s13, 2
      // Predicated region
      $region57: #{conv_block_forward.3} parent=55 // pred_check
        %p1968 = pneg %p240
      $region58: #{conv_block_forward.3} parent=55 // pred_check_branch
        %1970 = sbr.rel (%p1968) target = $region60
      $region59: #{conv_block_forward.3} parent=55 // pred_region
        %s1971 = smul.u32 8, %s25
        %p1972 = scmp.lt.s32.totalorder %s24, 1
        %s1973 = scalar_select %p1972, %s24, 1
        %p1974 = scmp.lt.s32.totalorder %s1971, 15
        %s1975 = scalar_select %p1974, %s1971, 15
        %s1976 = smul.addr %s1975, 2
        %s1977 = smul.addr %s1973, 32
        %s1978 = sadd.s32 %s1976, %s1977
        %s1979 = smul.addr %s1978, 8
        %s1980 = scalar_lea.vmem %s7, %s1979
      $region60: #{conv_block_forward.3} parent=55 // pred_fallthru
        _
    $region56: #{conv_block_forward.3} parent=5 // pred_fallthru
      _
  $region6: #{conv_block_forward.3} parent=0 // loop_footer
    %s17 = sadd.s32 1, %s13
  $region7: #{conv_block_forward.3} parent=0 // loop_footer_branch
    %12 = sbr.rel target = $region3
  $region8: #{conv_block_forward.3} parent=0 // loop_exit
    _

</llo_original>
